<compile_context>
chip_gen: v7x
topology: tpu7x:2x2x1
jax: 0.10.0
libtpu: 0.0.40
codegen_flags: <defaults>
</compile_context>

<pallas_src>
import jax
import jax.numpy as jnp
from jax.experimental import pallas as pl
from jax.experimental.pallas import tpu as pltpu


TILE_E = 512      # edge rows per grid step (multiple of 256 -> v6e/v7x MXU depth)
N_PAD = 128       # padded node count (lane dim of gather one-hot)
D_OUT_PAD = 128   # padded output feature dim (lane-dense stores)


# ----------------------------------------------------------------------------
# Pallas kernel
# ----------------------------------------------------------------------------
def node_model_kernel(
    rows_ref,                      # (2, TILE_E) int32: [row_in ; row_out], -1 = drop
    col_ref,                       # (TILE_E, 1) int32: shared gather index (dst)
    e_ref,                         # (TILE_E, D_EDGE) bf16 edge attributes
    xh_ref,                        # (N_PAD, 2*HIDDEN) bf16: x @ [W1x_in | W1x_out]
    w1e_ref, b1_ref,               # (D_EDGE, 2*HIDDEN) bf16 / (1, 2*HIDDEN) f32
    w2_ref, b2_ref,                # (2*HIDDEN, 2*FC) bf16 block-diag / (1, 2*FC) f32
    w3_ref, b3_ref,                # (2*FC, D_OUT_PAD) f32 / (1, D_OUT_PAD) f32
    out_ref,                       # (N_PAD, D_OUT_PAD) f32
    acc_ref,                       # (N_PAD, 2*FC) f32 scratch accumulator
):
    f32 = jnp.float32
    bf16 = jnp.bfloat16
    k = pl.program_id(0)

    @pl.when(k == 0)
    def _():
        acc_ref[...] = jnp.zeros_like(acc_ref)

    tile_e = e_ref.shape[0]
    n_pad = xh_ref.shape[0]
    fc = acc_ref.shape[1] // 2

    row_in = rows_ref[0:1, :]      # (1, TILE_E)
    row_out = rows_ref[1:2, :]     # (1, TILE_E)
    col = col_ref[...]             # (TILE_E, 1)

    lane_ids = jax.lax.broadcasted_iota(jnp.int32, (tile_e, n_pad), 1)  # gather
    node_ids = jax.lax.broadcasted_iota(jnp.int32, (n_pad, tile_e), 0)  # scatter

    # Layer 1 (both branches at once, no concat):
    #   cat([x[col], e]) @ W1  ==  onehot(col) @ xh  +  e @ [W1e_in | W1e_out]
    g = (lane_ids == col).astype(bf16)                                   # (E, N)
    h1 = (jnp.dot(g, xh_ref[...], preferred_element_type=f32)
          + jnp.dot(e_ref[...], w1e_ref[...], preferred_element_type=f32)
          + b1_ref[...])
    h1 = jnp.maximum(h1, 0.0).astype(bf16)                               # (E, 2H)

    # Layer 2: block-diagonal W2 keeps the two branches independent.
    h2 = jnp.dot(h1, w2_ref[...], preferred_element_type=f32) + b2_ref[...]
    h2 = jnp.maximum(h2, 0.0).astype(bf16)                               # (E, 2FC)
    h2_in = h2[:, :fc]
    h2_out = h2[:, fc:]

    # One-hot scatter-sum per branch; rows with id -1 (masked/padded) add 0.
    s_in = (node_ids == row_in).astype(bf16)                             # (N, E)
    s_out = (node_ids == row_out).astype(bf16)
    part_in = jnp.dot(s_in, h2_in, preferred_element_type=f32)           # (N, FC)
    part_out = jnp.dot(s_out, h2_out, preferred_element_type=f32)        # (N, FC)
    acc_ref[...] += jnp.concatenate([part_in, part_out], axis=1)         # (N, 2FC)

    @pl.when(k == pl.num_programs(0) - 1)
    def _():
        # node_mlp on cat((flow_in, flow_out)); single f32 matmul.
        out = jnp.dot(acc_ref[...], w3_ref[...], preferred_element_type=f32) + b3_ref[...]
        out_ref[...] = jnp.maximum(out, 0.0)


# ----------------------------------------------------------------------------
# Wrapper: static-shape padding, weight stacking/folding, pallas_call setup.
# ----------------------------------------------------------------------------
def node_model_pallas(x, edge_index, edge_attr, params,
                      *, tile_e=TILE_E, n_pad=N_PAD, d_out_pad=D_OUT_PAD):
    (w1o, b1o, w2o, b2o, w1i, b1i, w2i, b2i, w3, b3) = params
    n_nodes, d_node = x.shape
    n_edges, d_edge = edge_attr.shape
    hidden = w1o.shape[1]
    fc = w2o.shape[1]
    d_out = w3.shape[1]
    assert n_nodes <= n_pad and d_out <= d_out_pad
    assert tile_e % 128 == 0

    # Shrink the tile for tiny graphs (single grid step), otherwise keep 512.
    e_round = pl.cdiv(max(n_edges, 1), 128) * 128
    tile_e = min(tile_e, e_round)
    e_pad = pl.cdiv(max(n_edges, 1), tile_e) * tile_e
    n_tiles = e_pad // tile_e

    bf16 = jnp.bfloat16
    f32 = jnp.float32

    src = edge_index[0].astype(jnp.int32)
    dst = edge_index[1].astype(jnp.int32)
    mask_out = src < dst
    mask_in = src > dst

    def pad_idx(v, fill):
        return jnp.pad(v, (0, e_pad - n_edges), constant_values=fill)

    # Sentinel -1 scatter row => edge contributes nothing to that branch.
    row_in = pad_idx(jnp.where(mask_in, src, -1), -1)
    row_out = pad_idx(jnp.where(mask_out, src, -1), -1)
    rows = jnp.stack([row_in, row_out], axis=0)                  # (2, e_pad)
    col = pad_idx(dst, 0).reshape(e_pad, 1)                      # shared gather index

    e_attr = jnp.pad(edge_attr, ((0, e_pad - n_edges), (0, 0))).astype(bf16)
    x_p = jnp.pad(x, ((0, n_pad - n_nodes), (0, 0))).astype(f32)

    # Fold the x-rows of both layer-1 weights into x (column order: in | out).
    w1x_stk = jnp.concatenate([w1i[:d_node], w1o[:d_node]], axis=1)      # (Dn, 2H)
    xh = (x_p @ w1x_stk).astype(bf16)                                    # (N_PAD, 2H)
    w1e_stk = jnp.concatenate([w1i[d_node:], w1o[d_node:]], axis=1).astype(bf16)
    b1_stk = jnp.concatenate([b1i, b1o]).reshape(1, 2 * hidden).astype(f32)

    # Block-diagonal layer-2 weight keeps the branches independent in one matmul.
    zeros_hf = jnp.zeros((hidden, fc), f32)
    w2_blk = jnp.concatenate(
        [jnp.concatenate([w2i, zeros_hf], axis=1),
         jnp.concatenate([zeros_hf, w2o], axis=1)], axis=0).astype(bf16)  # (2H, 2FC)
    b2_stk = jnp.concatenate([b2i, b2o]).reshape(1, 2 * fc).astype(f32)

    pad_cols = ((0, 0), (0, d_out_pad - d_out))
    w3_p = jnp.pad(w3, pad_cols).astype(f32)                              # (2FC, Dout_pad)
    b3_p = jnp.pad(b3.reshape(1, d_out), pad_cols).astype(f32)

    in_specs = [
        pl.BlockSpec((2, tile_e), lambda k: (0, k)),            # rows (in, out)
        pl.BlockSpec((tile_e, 1), lambda k: (k, 0)),            # col (shared dst)
        pl.BlockSpec((tile_e, d_edge), lambda k: (k, 0)),       # edge_attr tile
        pl.BlockSpec((n_pad, 2 * hidden), lambda k: (0, 0)),    # xh (resident)
        pl.BlockSpec((d_edge, 2 * hidden), lambda k: (0, 0)),   # w1e_stk
        pl.BlockSpec((1, 2 * hidden), lambda k: (0, 0)),        # b1_stk
        pl.BlockSpec((2 * hidden, 2 * fc), lambda k: (0, 0)),   # w2_blk
        pl.BlockSpec((1, 2 * fc), lambda k: (0, 0)),            # b2_stk
        pl.BlockSpec((2 * fc, d_out_pad), lambda k: (0, 0)),    # w3
        pl.BlockSpec((1, d_out_pad), lambda k: (0, 0)),         # b3
    ]

    # Advisory cost estimate.
    flops = (2 * e_pad * (n_pad * 2 * hidden            # gather
                          + d_edge * 2 * hidden         # edge layer 1
                          + 2 * hidden * 2 * fc         # layer 2 (block diag)
                          + 2 * n_pad * fc)             # two scatters
             + 2 * n_pad * 2 * fc * d_out_pad)          # node_mlp finalize
    weights = (xh, w1e_stk, b1_stk, w2_blk, b2_stk, w3_p, b3_p)
    bytes_accessed = (sum(int(a.size) * a.dtype.itemsize
                          for a in (rows, col, e_attr) + weights)
                      + n_pad * d_out_pad * 4)

    out = pl.pallas_call(
        node_model_kernel,
        out_shape=jax.ShapeDtypeStruct((n_pad, d_out_pad), f32),
        grid_spec=pltpu.PrefetchScalarGridSpec(
            num_scalar_prefetch=0,
            grid=(n_tiles,),
            in_specs=in_specs,
            out_specs=pl.BlockSpec((n_pad, d_out_pad), lambda k: (0, 0)),
            scratch_shapes=[pltpu.VMEM((n_pad, 2 * fc), f32)],
        ),
        compiler_params=pltpu.CompilerParams(
            dimension_semantics=("arbitrary",),
            vmem_limit_bytes=32 * 1024 * 1024),
        cost_estimate=pl.CostEstimate(flops=flops, transcendentals=0,
                                      bytes_accessed=bytes_accessed),
    )(rows, col, e_attr, *weights)

    return out[:n_nodes, :d_out]


# ----------------------------------------------------------------------------
# Pure-JAX reference (f32), mirroring PyTorch NodeModel.forward (agg = sum).
# ----------------------------------------------------------------------------
def reference_forward(x, edge_index, edge_attr, params, n_nodes):
    (w1o, b1o, w2o, b2o, w1i, b1i, w2i, b2i, w3, b3) = params
    relu = lambda v: jnp.maximum(v, 0.0)

    def branch(mask, w1, b1, w2, b2):
        row = jnp.where(mask, edge_index[0], n_nodes)   # dead segment for masked
        col = jnp.where(mask, edge_index[1], 0)
        inp = jnp.concatenate([x[col], edge_attr], axis=1)
        h = relu(relu(inp @ w1 + b1) @ w2 + b2)
        h = jnp.where(mask[:, None], h, 0.0)
        return jax.ops.segment_sum(h, row, num_segments=n_nodes + 1)[:n_nodes]

    flow_out = branch(edge_index[0] < edge_index[1], w1o, b1o, w2o, b2o)
    flow_in = branch(edge_index[0] > edge_index[1], w1i, b1i, w2i, b2i)
    return relu(jnp.concatenate([flow_in, flow_out], axis=1) @ w3 + b3)


def mlp2_init(key, d_in, d_hidden, d_out):
    k1, k2 = jax.random.split(key)
    w1 = jax.random.normal(k1, (d_in, d_hidden), jnp.float32) * 0.1
    b1 = jnp.full((d_hidden,), 0.01, jnp.float32)
    w2 = jax.random.normal(k2, (d_hidden, d_out), jnp.float32) * 0.1
    b2 = jnp.full((d_out,), 0.01, jnp.float32)
    return w1, b1, w2, b2


if __name__ == "__main__":
    key = jax.random.PRNGKey(0)
    k_x, k_e, k_src, k_dst, k_p1, k_p2, k_p3 = jax.random.split(key, 7)

    # Small problem sizes (E chosen so the grid has 2 edge tiles -> exercises
    # the accumulate-across-steps path).
    N = 12         # nodes
    E = 600        # edges
    D_NODE = 32    # node feature dim
    D_EDGE = 16    # edge feature dim
    HIDDEN = 64    # flow MLP hidden dim  (2*HIDDEN = 128 stacked lanes)
    FC = 32        # flow MLP output dim  (2*FC = 64 stacked lanes)
    D_OUT = 32     # node_mlp output dim

    x = jax.random.normal(k_x, (N, D_NODE), jnp.float32)
    edge_attr = jax.random.normal(k_e, (E, D_EDGE), jnp.float32)
    src = jax.random.randint(k_src, (E,), 0, N)
    dst = jax.random.randint(k_dst, (E,), 0, N)
    edge_index = jnp.stack([src, dst], axis=0)  # (2, E)

    # Parameters (deterministic init).
    w1o, b1o, w2o, b2o = mlp2_init(k_p1, D_NODE + D_EDGE, HIDDEN, FC)   # flow_out_mlp
    w1i, b1i, w2i, b2i = mlp2_init(k_p2, D_NODE + D_EDGE, HIDDEN, FC)   # flow_in_mlp
    w3 = jax.random.normal(k_p3, (2 * FC, D_OUT), jnp.float32) * 0.1    # node_mlp
    b3 = jnp.full((D_OUT,), 0.01, jnp.float32)
    params = (w1o, b1o, w2o, b2o, w1i, b1i, w2i, b2i, w3, b3)

    # Run the Pallas kernel.
    y = node_model_pallas(x, edge_index, edge_attr, params)
    y = jax.block_until_ready(y)

    # Check against the pure-JAX f32 reference (kernel uses bf16 MXU operands).
    y_ref = reference_forward(x, edge_index, edge_attr, params, N)
    assert y.shape == (N, D_OUT)
    assert jnp.allclose(y, y_ref, atol=0.1, rtol=0.05), "mismatch vs reference"

    print("KERNEL_OK")
</pallas_src>

<mosaic_0001>
module attributes {stable_mosaic.version = 11 : i64} {
  func.func @node_model_kernel(%arg0: i32, %arg1: memref<2x512xi32, #tpu.memory_space<vmem>>, %arg2: memref<512x1xi32, #tpu.memory_space<vmem>>, %arg3: memref<512x16xbf16, #tpu.memory_space<vmem>>, %arg4: memref<128x128xbf16, #tpu.memory_space<vmem>>, %arg5: memref<16x128xbf16, #tpu.memory_space<vmem>>, %arg6: memref<1x128xf32, #tpu.memory_space<vmem>>, %arg7: memref<128x64xbf16, #tpu.memory_space<vmem>>, %arg8: memref<1x64xf32, #tpu.memory_space<vmem>>, %arg9: memref<64x128xf32, #tpu.memory_space<vmem>>, %arg10: memref<1x128xf32, #tpu.memory_space<vmem>>, %arg11: memref<128x128xf32, #tpu.memory_space<vmem>>, %arg12: memref<128x64xf32, #tpu.memory_space<vmem>>) attributes {dimension_semantics = [#tpu.dimension_semantics<arbitrary>], iteration_bounds = array<i64: 2>, scalar_prefetch = 0 : i64, scratch_operands = 1 : i64, tpu.core_type = #tpu.core_type<tc>, window_params = [{transform_indices = @transform_0, window_bounds = array<i64: 2, 512>}, {transform_indices = @transform_1, window_bounds = array<i64: 512, 1>}, {transform_indices = @transform_2, window_bounds = array<i64: 512, 16>}, {pipeline_mode = #tpu.pipeline_mode<synchronous>, transform_indices = @transform_3, window_bounds = array<i64: 128, 128>}, {pipeline_mode = #tpu.pipeline_mode<synchronous>, transform_indices = @transform_4, window_bounds = array<i64: 16, 128>}, {pipeline_mode = #tpu.pipeline_mode<synchronous>, transform_indices = @transform_5, window_bounds = array<i64: 1, 128>}, {pipeline_mode = #tpu.pipeline_mode<synchronous>, transform_indices = @transform_6, window_bounds = array<i64: 128, 64>}, {pipeline_mode = #tpu.pipeline_mode<synchronous>, transform_indices = @transform_7, window_bounds = array<i64: 1, 64>}, {pipeline_mode = #tpu.pipeline_mode<synchronous>, transform_indices = @transform_8, window_bounds = array<i64: 64, 128>}, {pipeline_mode = #tpu.pipeline_mode<synchronous>, transform_indices = @transform_9, window_bounds = array<i64: 1, 128>}, {pipeline_mode = #tpu.pipeline_mode<synchronous>, transform_indices = @transform_10, window_bounds = array<i64: 128, 128>}]} {
    %c0_i32 = arith.constant 0 : i32
    %0 = arith.cmpi eq, %arg0, %c0_i32 : i32
    %1 = arith.extui %0 : i1 to i32
    %c0_i32_0 = arith.constant 0 : i32
    %2 = arith.cmpi ne, %1, %c0_i32_0 : i32
    scf.if %2 {
      %cst_28 = arith.constant 0.000000e+00 : f32
      %54 = vector.broadcast %cst_28 : f32 to vector<128x64xf32>
      %c0_29 = arith.constant 0 : index
      %c0_30 = arith.constant 0 : index
      %55 = vector.load %arg12[%c0_29, %c0_30] : memref<128x64xf32, #tpu.memory_space<vmem>>, vector<128x64xf32>
      tpu.vector_store %arg12[%c0_29, %c0_30], %54 {strides = array<i32>} : memref<128x64xf32, #tpu.memory_space<vmem>>, vector<128x64xf32>,
    } else {
    }
    %c0 = arith.constant 0 : index
    %c0_1 = arith.constant 0 : index
    %3 = vector.load %arg1[%c0, %c0_1] : memref<2x512xi32, #tpu.memory_space<vmem>>, vector<1x512xi32>
    %c1 = arith.constant 1 : index
    %c0_2 = arith.constant 0 : index
    %4 = vector.load %arg1[%c1, %c0_2] : memref<2x512xi32, #tpu.memory_space<vmem>>, vector<1x512xi32>
    %c0_3 = arith.constant 0 : index
    %c0_4 = arith.constant 0 : index
    %5 = vector.load %arg2[%c0_3, %c0_4] : memref<512x1xi32, #tpu.memory_space<vmem>>, vector<512x1xi32>
    %6 = tpu.iota {dimensions = array<i32: 1>} : vector<512x128xi32>
    %7 = tpu.iota {dimensions = array<i32: 0>} : vector<128x512xi32>
    %8 = vector.broadcast %5 : vector<512x1xi32> to vector<512x128xi32>
    %9 = arith.cmpi eq, %6, %8 : vector<512x128xi32>
    %10 = arith.extui %9 : vector<512x128xi1> to vector<512x128xi32>
    %11 = arith.sitofp %10 : vector<512x128xi32> to vector<512x128xf32>
    %12 = arith.truncf %11 : vector<512x128xf32> to vector<512x128xbf16>
    %c0_5 = arith.constant 0 : index
    %c0_6 = arith.constant 0 : index
    %13 = vector.load %arg4[%c0_5, %c0_6] : memref<128x128xbf16, #tpu.memory_space<vmem>>, vector<128x128xbf16>
    %cst = arith.constant dense<0.000000e+00> : vector<512x128xf32>
    %14 = tpu.matmul %12, %13, %cst {dimension_numbers = #tpu.dot_dimension_numbers<[1], [0], [0], [1], [0, 0, 1, 1], [], []>} : vector<512x128xbf16>, vector<128x128xbf16>, vector<512x128xf32> -> vector<512x128xf32>
    %c0_7 = arith.constant 0 : index
    %c0_8 = arith.constant 0 : index
    %15 = vector.load %arg3[%c0_7, %c0_8] : memref<512x16xbf16, #tpu.memory_space<vmem>>, vector<512x16xbf16>
    %c0_9 = arith.constant 0 : index
    %c0_10 = arith.constant 0 : index
    %16 = vector.load %arg5[%c0_9, %c0_10] : memref<16x128xbf16, #tpu.memory_space<vmem>>, vector<16x128xbf16>
    %cst_11 = arith.constant dense<0.000000e+00> : vector<512x128xf32>
    %17 = tpu.matmul %15, %16, %cst_11 {dimension_numbers = #tpu.dot_dimension_numbers<[1], [0], [0], [1], [0, 0, 1, 1], [], []>} : vector<512x16xbf16>, vector<16x128xbf16>, vector<512x128xf32> -> vector<512x128xf32>
    %18 = arith.addf %14, %17 : vector<512x128xf32>
    %c0_12 = arith.constant 0 : index
    %c0_13 = arith.constant 0 : index
    %19 = vector.load %arg6[%c0_12, %c0_13] : memref<1x128xf32, #tpu.memory_space<vmem>>, vector<1x128xf32>
    %20 = vector.broadcast %19 : vector<1x128xf32> to vector<512x128xf32>
    %21 = arith.addf %18, %20 : vector<512x128xf32>
    %cst_14 = arith.constant 0.000000e+00 : f32
    %22 = vector.broadcast %cst_14 : f32 to vector<512x128xf32>
    %23 = arith.maximumf %21, %22 : vector<512x128xf32>
    %24 = arith.truncf %23 : vector<512x128xf32> to vector<512x128xbf16>
    %c0_15 = arith.constant 0 : index
    %c0_16 = arith.constant 0 : index
    %25 = vector.load %arg7[%c0_15, %c0_16] : memref<128x64xbf16, #tpu.memory_space<vmem>>, vector<128x64xbf16>
    %cst_17 = arith.constant dense<0.000000e+00> : vector<512x64xf32>
    %26 = tpu.matmul %24, %25, %cst_17 {dimension_numbers = #tpu.dot_dimension_numbers<[1], [0], [0], [1], [0, 0, 1, 1], [], []>} : vector<512x128xbf16>, vector<128x64xbf16>, vector<512x64xf32> -> vector<512x64xf32>
    %c0_18 = arith.constant 0 : index
    %c0_19 = arith.constant 0 : index
    %27 = vector.load %arg8[%c0_18, %c0_19] : memref<1x64xf32, #tpu.memory_space<vmem>>, vector<1x64xf32>
    %28 = vector.broadcast %27 : vector<1x64xf32> to vector<512x64xf32>
    %29 = arith.addf %26, %28 : vector<512x64xf32>
    %cst_20 = arith.constant 0.000000e+00 : f32
    %30 = vector.broadcast %cst_20 : f32 to vector<512x64xf32>
    %31 = arith.maximumf %29, %30 : vector<512x64xf32>
    %32 = arith.truncf %31 : vector<512x64xf32> to vector<512x64xbf16>
    %33 = vector.extract_strided_slice %32 {offsets = [0, 0], sizes = [512, 32], strides = [1, 1]} : vector<512x64xbf16> to vector<512x32xbf16>
    %34 = vector.extract_strided_slice %32 {offsets = [0, 32], sizes = [512, 32], strides = [1, 1]} : vector<512x64xbf16> to vector<512x32xbf16>
    %35 = vector.broadcast %3 : vector<1x512xi32> to vector<128x512xi32>
    %36 = arith.cmpi eq, %7, %35 : vector<128x512xi32>
    %37 = arith.extui %36 : vector<128x512xi1> to vector<128x512xi32>
    %38 = arith.sitofp %37 : vector<128x512xi32> to vector<128x512xf32>
    %39 = arith.truncf %38 : vector<128x512xf32> to vector<128x512xbf16>
    %40 = vector.broadcast %4 : vector<1x512xi32> to vector<128x512xi32>
    %41 = arith.cmpi eq, %7, %40 : vector<128x512xi32>
    %42 = arith.extui %41 : vector<128x512xi1> to vector<128x512xi32>
    %43 = arith.sitofp %42 : vector<128x512xi32> to vector<128x512xf32>
    %44 = arith.truncf %43 : vector<128x512xf32> to vector<128x512xbf16>
    %cst_21 = arith.constant dense<0.000000e+00> : vector<128x32xf32>
    %45 = tpu.matmul %39, %33, %cst_21 {dimension_numbers = #tpu.dot_dimension_numbers<[1], [0], [0], [1], [0, 0, 1, 1], [], []>} : vector<128x512xbf16>, vector<512x32xbf16>, vector<128x32xf32> -> vector<128x32xf32>
    %cst_22 = arith.constant dense<0.000000e+00> : vector<128x32xf32>
    %46 = tpu.matmul %44, %34, %cst_22 {dimension_numbers = #tpu.dot_dimension_numbers<[1], [0], [0], [1], [0, 0, 1, 1], [], []>} : vector<128x512xbf16>, vector<512x32xbf16>, vector<128x32xf32> -> vector<128x32xf32>
    %c0_23 = arith.constant 0 : index
    %c0_24 = arith.constant 0 : index
    %47 = vector.load %arg12[%c0_23, %c0_24] : memref<128x64xf32, #tpu.memory_space<vmem>>, vector<128x64xf32>
    %48 = tpu.concatenate %45, %46 in 1 : vector<128x32xf32>, vector<128x32xf32> -> vector<128x64xf32>
    %49 = arith.addf %47, %48 : vector<128x64xf32>
    %c0_25 = arith.constant 0 : index
    %c0_26 = arith.constant 0 : index
    %50 = vector.load %arg12[%c0_25, %c0_26] : memref<128x64xf32, #tpu.memory_space<vmem>>, vector<128x64xf32>
    tpu.vector_store %arg12[%c0_25, %c0_26], %49 {strides = array<i32>} : memref<128x64xf32, #tpu.memory_space<vmem>>, vector<128x64xf32>,
    %c1_i32 = arith.constant 1 : i32
    %51 = arith.cmpi eq, %arg0, %c1_i32 : i32
    %52 = arith.extui %51 : i1 to i32
    %c0_i32_27 = arith.constant 0 : i32
    %53 = arith.cmpi ne, %52, %c0_i32_27 : i32
    scf.if %53 {
      %c0_28 = arith.constant 0 : index
      %c0_29 = arith.constant 0 : index
      %54 = vector.load %arg12[%c0_28, %c0_29] : memref<128x64xf32, #tpu.memory_space<vmem>>, vector<128x64xf32>
      %c0_30 = arith.constant 0 : index
      %c0_31 = arith.constant 0 : index
      %55 = vector.load %arg9[%c0_30, %c0_31] : memref<64x128xf32, #tpu.memory_space<vmem>>, vector<64x128xf32>
      %cst_32 = arith.constant dense<0.000000e+00> : vector<128x128xf32>
      %56 = tpu.matmul %54, %55, %cst_32 {dimension_numbers = #tpu.dot_dimension_numbers<[1], [0], [0], [1], [0, 0, 1, 1], [], []>} : vector<128x64xf32>, vector<64x128xf32>, vector<128x128xf32> -> vector<128x128xf32>
      %c0_33 = arith.constant 0 : index
      %c0_34 = arith.constant 0 : index
      %57 = vector.load %arg10[%c0_33, %c0_34] : memref<1x128xf32, #tpu.memory_space<vmem>>, vector<1x128xf32>
      %58 = vector.broadcast %57 : vector<1x128xf32> to vector<128x128xf32>
      %59 = arith.addf %56, %58 : vector<128x128xf32>
      %cst_35 = arith.constant 0.000000e+00 : f32
      %60 = vector.broadcast %cst_35 : f32 to vector<128x128xf32>
      %61 = arith.maximumf %59, %60 : vector<128x128xf32>
      %c0_36 = arith.constant 0 : index
      %c0_37 = arith.constant 0 : index
      %62 = vector.load %arg11[%c0_36, %c0_37] : memref<128x128xf32, #tpu.memory_space<vmem>>, vector<128x128xf32>
      tpu.vector_store %arg11[%c0_36, %c0_37], %61 {strides = array<i32>} : memref<128x128xf32, #tpu.memory_space<vmem>>, vector<128x128xf32>,
    } else {
    }
    return
  }
  func.func @transform_0(%arg0: i32) -> (i32, i32) {
    %c0_i32 = arith.constant 0 : i32
    %c0_i32_0 = arith.constant 0 : i32
    return %c0_i32, %arg0 : i32, i32
  }
  func.func @transform_1(%arg0: i32) -> (i32, i32) {
    %c0_i32 = arith.constant 0 : i32
    %c0_i32_0 = arith.constant 0 : i32
    return %arg0, %c0_i32 : i32, i32
  }
  func.func @transform_2(%arg0: i32) -> (i32, i32) {
    %c0_i32 = arith.constant 0 : i32
    %c0_i32_0 = arith.constant 0 : i32
    return %arg0, %c0_i32 : i32, i32
  }
  func.func @transform_3(%arg0: i32) -> (i32, i32) {
    %c0_i32 = arith.constant 0 : i32
    %c0_i32_0 = arith.constant 0 : i32
    %c0_i32_1 = arith.constant 0 : i32
    return %c0_i32, %c0_i32_0 : i32, i32
  }
  func.func @transform_4(%arg0: i32) -> (i32, i32) {
    %c0_i32 = arith.constant 0 : i32
    %c0_i32_0 = arith.constant 0 : i32
    %c0_i32_1 = arith.constant 0 : i32
    return %c0_i32, %c0_i32_0 : i32, i32
  }
  func.func @transform_5(%arg0: i32) -> (i32, i32) {
    %c0_i32 = arith.constant 0 : i32
    %c0_i32_0 = arith.constant 0 : i32
    %c0_i32_1 = arith.constant 0 : i32
    return %c0_i32, %c0_i32_0 : i32, i32
  }
  func.func @transform_6(%arg0: i32) -> (i32, i32) {
    %c0_i32 = arith.constant 0 : i32
    %c0_i32_0 = arith.constant 0 : i32
    %c0_i32_1 = arith.constant 0 : i32
    return %c0_i32, %c0_i32_0 : i32, i32
  }
  func.func @transform_7(%arg0: i32) -> (i32, i32) {
    %c0_i32 = arith.constant 0 : i32
    %c0_i32_0 = arith.constant 0 : i32
    %c0_i32_1 = arith.constant 0 : i32
    return %c0_i32, %c0_i32_0 : i32, i32
  }
  func.func @transform_8(%arg0: i32) -> (i32, i32) {
    %c0_i32 = arith.constant 0 : i32
    %c0_i32_0 = arith.constant 0 : i32
    %c0_i32_1 = arith.constant 0 : i32
    return %c0_i32, %c0_i32_0 : i32, i32
  }
  func.func @transform_9(%arg0: i32) -> (i32, i32) {
    %c0_i32 = arith.constant 0 : i32
    %c0_i32_0 = arith.constant 0 : i32
    %c0_i32_1 = arith.constant 0 : i32
    return %c0_i32, %c0_i32_0 : i32, i32
  }
  func.func @transform_10(%arg0: i32) -> (i32, i32) {
    %c0_i32 = arith.constant 0 : i32
    %c0_i32_0 = arith.constant 0 : i32
    %c0_i32_1 = arith.constant 0 : i32
    return %c0_i32, %c0_i32_0 : i32, i32
  }
}

</mosaic_0001>

<llo_original>
// kernel: tpu_custom_call.1
$region0: #{tpu_custom_call.1}
  #allocation0 [shape = 'u32[]', space=smem, size = 0x4, offset = 0x4, fixed_abs, tag = 'smem constant byte address 0x4 - core index']
  #allocation1 [shape = 'u32[144,128]{1,0:T(1,128)}', space=vmem, size = 0x12000, scoped, tag = 'internal scratch']
  #allocation2 [shape = 'f32[128,64]{1,0:T(8,128)}', space=vmem, size = 0x10000, scoped, tag = 'scratch operand']
  %s0 = inlined_call_operand.vmem [shape: s32[2,1024], index: 0, kind: input, shape index: {}]
  %s1 = inlined_call_operand.vmem [shape: s32[1024,1], index: 1, kind: input, shape index: {}]
  %s2 = inlined_call_operand.vmem [shape: bf16[1024,16], index: 2, kind: input, shape index: {}]
  %s3 = inlined_call_operand.vmem [shape: bf16[128,128], index: 3, kind: input, shape index: {}]
  %s4 = inlined_call_operand.vmem [shape: bf16[16,128], index: 4, kind: input, shape index: {}]
  %s5 = inlined_call_operand.vmem [shape: f32[1,128], index: 5, kind: input, shape index: {}]
  %s6 = inlined_call_operand.vmem [shape: bf16[128,64], index: 6, kind: input, shape index: {}]
  %s7 = inlined_call_operand.vmem [shape: f32[1,64], index: 7, kind: input, shape index: {}]
  %s8 = inlined_call_operand.vmem [shape: f32[64,128], index: 8, kind: input, shape index: {}]
  %s9 = inlined_call_operand.vmem [shape: f32[1,128], index: 9, kind: input, shape index: {}]
  %s10 = inlined_call_operand.hbm [shape: f32[128,128], index: 10, kind: output, shape index: {}]
  %s11 = sld [smem:[#allocation0]]
  $region81: #{tpu_custom_call.1} parent=0
    _
  %s13 = ssub.s32 1, %s11
  %s14 = scalar_select 0, %s13, %s11
  $region1: #{tpu_custom_call.1} parent=0
    #allocation3 [shape = 'u8[65536]{0}', space=vmem, size = 0x10000, scoped, tag = 'output window, operand 0, single buffered']
    #allocation4 [shape = 's32[2]{0}', space=sflag, size = 0x8, scoped, tag = 'scoped memory for tpu_custom_call.1']
    %15 = vsyncpa [#allocation4], 0
    loop: start=0, step=1, limit=4
    $region2: #{tpu_custom_call.1} parent=1 // loop_pre_header
      _
    $region3: #{tpu_custom_call.1} parent=1 // loop_header
      %s17 = sphi 0, %s21
      %p18 = scmp.ge.s32.totalorder %s17, 4
      %s27 = sphi 0, %s29
      %s30 = sphi 0, %s27
      %s31 = sphi 0, %s30
      %s47 = sphi 0, %s31
      %s53 = sphi 0, %s55
      %s56 = sphi 0, %s53
      %s57 = sphi 0, %s56
      %s73 = sphi 0, %s57
      %s79 = sphi 0, %s81
      %s82 = sphi 0, %s79
      %s83 = sphi 0, %s82
      %s99 = sphi 0, %s83
      %s103 = sphi 0, %s103
      %s105 = sphi 0, %s103
      %s106 = sphi 0, %s105
      %s120 = sphi 0, %s106
      %s124 = sphi 0, %s124
      %s126 = sphi 0, %s124
      %s127 = sphi 0, %s126
      %s141 = sphi 0, %s127
      %s145 = sphi 0, %s145
      %s147 = sphi 0, %s145
      %s148 = sphi 0, %s147
      %s162 = sphi 0, %s148
      %s166 = sphi 0, %s166
      %s168 = sphi 0, %s166
      %s169 = sphi 0, %s168
      %s183 = sphi 0, %s169
      %s187 = sphi 0, %s187
      %s189 = sphi 0, %s187
      %s190 = sphi 0, %s189
      %s204 = sphi 0, %s190
      %s208 = sphi 0, %s208
      %s210 = sphi 0, %s208
      %s211 = sphi 0, %s210
      %s225 = sphi 0, %s211
      %s229 = sphi 0, %s229
      %s231 = sphi 0, %s229
      %s232 = sphi 0, %s231
      %s246 = sphi 0, %s232
      %s250 = sphi 0, %s250
      %s252 = sphi 0, %s250
      %s253 = sphi 0, %s252
      %s267 = sphi 0, %s253
    $region4: #{tpu_custom_call.1} parent=1 // loop_header_branch
      %20 = sbr.rel (%p18) target = $region8
    $region5: #{tpu_custom_call.1} parent=1 // loop_body
      %s22 = ssub.s32 %s17, 1
      %s23 = ssub.s32 %s17, 2
      %s24 = sadd.s32 %s17, 1
      %s25 = ssub.s32 %s17, %s24
      %p26 = scmp.eq.s32.totalorder %s25, 0
      %s28 = sadd.s32 %s27, 1
      %s29 = scalar_select %p26, %s27, %s28
      %p32 = pneg %p26
      %p33 = scmp.eq.s32.totalorder %s17, 1
      %p34 = por %p32, %p33
      %p35 = scmp.ne.s32.totalorder %s27, %s30
      %p36 = scmp.eq.s32.totalorder %s17, 0
      %p37 = por %p35, %p36
      %p38 = scmp.ne.s32.totalorder %s27, %s30
      %p39 = scmp.eq.s32.totalorder %s22, 1
      %p40 = por %p38, %p39
      %p41 = scmp.ne.s32.totalorder %s30, %s31
      %p42 = scmp.eq.s32.totalorder %s22, 0
      %p43 = por %p41, %p42
      %p44 = scmp.ne.s32.totalorder %s30, %s31
      %p45 = scmp.eq.s32.totalorder %s23, 1
      %p46 = por %p44, %p45
      %p48 = scmp.ne.s32.totalorder %s31, %s47
      %p49 = scmp.eq.s32.totalorder %s23, 0
      %p50 = por %p48, %p49
      %s51 = ssub.s32 %s17, %s24
      %p52 = scmp.eq.s32.totalorder %s51, 0
      %s54 = sadd.s32 %s53, 1
      %s55 = scalar_select %p52, %s53, %s54
      %p58 = pneg %p52
      %p59 = scmp.eq.s32.totalorder %s17, 1
      %p60 = por %p58, %p59
      %p61 = scmp.ne.s32.totalorder %s53, %s56
      %p62 = scmp.eq.s32.totalorder %s17, 0
      %p63 = por %p61, %p62
      %p64 = scmp.ne.s32.totalorder %s53, %s56
      %p65 = scmp.eq.s32.totalorder %s22, 1
      %p66 = por %p64, %p65
      %p67 = scmp.ne.s32.totalorder %s56, %s57
      %p68 = scmp.eq.s32.totalorder %s22, 0
      %p69 = por %p67, %p68
      %p70 = scmp.ne.s32.totalorder %s56, %s57
      %p71 = scmp.eq.s32.totalorder %s23, 1
      %p72 = por %p70, %p71
      %p74 = scmp.ne.s32.totalorder %s57, %s73
      %p75 = scmp.eq.s32.totalorder %s23, 0
      %p76 = por %p74, %p75
      %s77 = ssub.s32 %s17, %s24
      %p78 = scmp.eq.s32.totalorder %s77, 0
      %s80 = sadd.s32 %s79, 1
      %s81 = scalar_select %p78, %s79, %s80
      %p84 = pneg %p78
      %p85 = scmp.eq.s32.totalorder %s17, 1
      %p86 = por %p84, %p85
      %p87 = scmp.ne.s32.totalorder %s79, %s82
      %p88 = scmp.eq.s32.totalorder %s17, 0
      %p89 = por %p87, %p88
      %p90 = scmp.ne.s32.totalorder %s79, %s82
      %p91 = scmp.eq.s32.totalorder %s22, 1
      %p92 = por %p90, %p91
      %p93 = scmp.ne.s32.totalorder %s82, %s83
      %p94 = scmp.eq.s32.totalorder %s22, 0
      %p95 = por %p93, %p94
      %p96 = scmp.ne.s32.totalorder %s82, %s83
      %p97 = scmp.eq.s32.totalorder %s23, 1
      %p98 = por %p96, %p97
      %p100 = scmp.ne.s32.totalorder %s83, %s99
      %p101 = scmp.eq.s32.totalorder %s23, 0
      %p102 = por %p100, %p101
      %s104 = sadd.s32 %s103, 1
      %p107 = scmp.eq.s32.totalorder %s17, 1
      %p108 = scmp.ne.s32.totalorder %s103, %s105
      %p109 = scmp.eq.s32.totalorder %s17, 0
      %p110 = por %p108, %p109
      %p111 = scmp.ne.s32.totalorder %s103, %s105
      %p112 = scmp.eq.s32.totalorder %s22, 1
      %p113 = por %p111, %p112
      %p114 = scmp.ne.s32.totalorder %s105, %s106
      %p115 = scmp.eq.s32.totalorder %s22, 0
      %p116 = por %p114, %p115
      %p117 = scmp.ne.s32.totalorder %s105, %s106
      %p118 = scmp.eq.s32.totalorder %s23, 1
      %p119 = por %p117, %p118
      %p121 = scmp.ne.s32.totalorder %s106, %s120
      %p122 = scmp.eq.s32.totalorder %s23, 0
      %p123 = por %p121, %p122
      %s125 = sadd.s32 %s124, 1
      %p128 = scmp.eq.s32.totalorder %s17, 1
      %p129 = scmp.ne.s32.totalorder %s124, %s126
      %p130 = scmp.eq.s32.totalorder %s17, 0
      %p131 = por %p129, %p130
      %p132 = scmp.ne.s32.totalorder %s124, %s126
      %p133 = scmp.eq.s32.totalorder %s22, 1
      %p134 = por %p132, %p133
      %p135 = scmp.ne.s32.totalorder %s126, %s127
      %p136 = scmp.eq.s32.totalorder %s22, 0
      %p137 = por %p135, %p136
      %p138 = scmp.ne.s32.totalorder %s126, %s127
      %p139 = scmp.eq.s32.totalorder %s23, 1
      %p140 = por %p138, %p139
      %p142 = scmp.ne.s32.totalorder %s127, %s141
      %p143 = scmp.eq.s32.totalorder %s23, 0
      %p144 = por %p142, %p143
      %s146 = sadd.s32 %s145, 1
      %p149 = scmp.eq.s32.totalorder %s17, 1
      %p150 = scmp.ne.s32.totalorder %s145, %s147
      %p151 = scmp.eq.s32.totalorder %s17, 0
      %p152 = por %p150, %p151
      %p153 = scmp.ne.s32.totalorder %s145, %s147
      %p154 = scmp.eq.s32.totalorder %s22, 1
      %p155 = por %p153, %p154
      %p156 = scmp.ne.s32.totalorder %s147, %s148
      %p157 = scmp.eq.s32.totalorder %s22, 0
      %p158 = por %p156, %p157
      %p159 = scmp.ne.s32.totalorder %s147, %s148
      %p160 = scmp.eq.s32.totalorder %s23, 1
      %p161 = por %p159, %p160
      %p163 = scmp.ne.s32.totalorder %s148, %s162
      %p164 = scmp.eq.s32.totalorder %s23, 0
      %p165 = por %p163, %p164
      %s167 = sadd.s32 %s166, 1
      %p170 = scmp.eq.s32.totalorder %s17, 1
      %p171 = scmp.ne.s32.totalorder %s166, %s168
      %p172 = scmp.eq.s32.totalorder %s17, 0
      %p173 = por %p171, %p172
      %p174 = scmp.ne.s32.totalorder %s166, %s168
      %p175 = scmp.eq.s32.totalorder %s22, 1
      %p176 = por %p174, %p175
      %p177 = scmp.ne.s32.totalorder %s168, %s169
      %p178 = scmp.eq.s32.totalorder %s22, 0
      %p179 = por %p177, %p178
      %p180 = scmp.ne.s32.totalorder %s168, %s169
      %p181 = scmp.eq.s32.totalorder %s23, 1
      %p182 = por %p180, %p181
      %p184 = scmp.ne.s32.totalorder %s169, %s183
      %p185 = scmp.eq.s32.totalorder %s23, 0
      %p186 = por %p184, %p185
      %s188 = sadd.s32 %s187, 1
      %p191 = scmp.eq.s32.totalorder %s17, 1
      %p192 = scmp.ne.s32.totalorder %s187, %s189
      %p193 = scmp.eq.s32.totalorder %s17, 0
      %p194 = por %p192, %p193
      %p195 = scmp.ne.s32.totalorder %s187, %s189
      %p196 = scmp.eq.s32.totalorder %s22, 1
      %p197 = por %p195, %p196
      %p198 = scmp.ne.s32.totalorder %s189, %s190
      %p199 = scmp.eq.s32.totalorder %s22, 0
      %p200 = por %p198, %p199
      %p201 = scmp.ne.s32.totalorder %s189, %s190
      %p202 = scmp.eq.s32.totalorder %s23, 1
      %p203 = por %p201, %p202
      %p205 = scmp.ne.s32.totalorder %s190, %s204
      %p206 = scmp.eq.s32.totalorder %s23, 0
      %p207 = por %p205, %p206
      %s209 = sadd.s32 %s208, 1
      %p212 = scmp.eq.s32.totalorder %s17, 1
      %p213 = scmp.ne.s32.totalorder %s208, %s210
      %p214 = scmp.eq.s32.totalorder %s17, 0
      %p215 = por %p213, %p214
      %p216 = scmp.ne.s32.totalorder %s208, %s210
      %p217 = scmp.eq.s32.totalorder %s22, 1
      %p218 = por %p216, %p217
      %p219 = scmp.ne.s32.totalorder %s210, %s211
      %p220 = scmp.eq.s32.totalorder %s22, 0
      %p221 = por %p219, %p220
      %p222 = scmp.ne.s32.totalorder %s210, %s211
      %p223 = scmp.eq.s32.totalorder %s23, 1
      %p224 = por %p222, %p223
      %p226 = scmp.ne.s32.totalorder %s211, %s225
      %p227 = scmp.eq.s32.totalorder %s23, 0
      %p228 = por %p226, %p227
      %s230 = sadd.s32 %s229, 1
      %p233 = scmp.eq.s32.totalorder %s17, 1
      %p234 = scmp.ne.s32.totalorder %s229, %s231
      %p235 = scmp.eq.s32.totalorder %s17, 0
      %p236 = por %p234, %p235
      %p237 = scmp.ne.s32.totalorder %s229, %s231
      %p238 = scmp.eq.s32.totalorder %s22, 1
      %p239 = por %p237, %p238
      %p240 = scmp.ne.s32.totalorder %s231, %s232
      %p241 = scmp.eq.s32.totalorder %s22, 0
      %p242 = por %p240, %p241
      %p243 = scmp.ne.s32.totalorder %s231, %s232
      %p244 = scmp.eq.s32.totalorder %s23, 1
      %p245 = por %p243, %p244
      %p247 = scmp.ne.s32.totalorder %s232, %s246
      %p248 = scmp.eq.s32.totalorder %s23, 0
      %p249 = por %p247, %p248
      %s251 = sadd.s32 %s250, 1
      %p254 = scmp.eq.s32.totalorder %s17, 1
      %p255 = scmp.ne.s32.totalorder %s250, %s252
      %p256 = scmp.eq.s32.totalorder %s17, 0
      %p257 = por %p255, %p256
      %p258 = scmp.ne.s32.totalorder %s250, %s252
      %p259 = scmp.eq.s32.totalorder %s22, 1
      %p260 = por %p258, %p259
      %p261 = scmp.ne.s32.totalorder %s252, %s253
      %p262 = scmp.eq.s32.totalorder %s22, 0
      %p263 = por %p261, %p262
      %p264 = scmp.ne.s32.totalorder %s252, %s253
      %p265 = scmp.eq.s32.totalorder %s23, 1
      %p266 = por %p264, %p265
      %p268 = scmp.ne.s32.totalorder %s253, %s267
      %p269 = scmp.eq.s32.totalorder %s23, 0
      %p270 = por %p268, %p269
      %p271 = scmp.le.s32.totalorder 1, %s17
      %p272 = scmp.lt.s32.totalorder %s17, 3
      %p273 = pnand %p271, %p272
      %p274 = pneg %p273
      // Predicated region
      $region9: #{tpu_custom_call.1} parent=5 // pred_check
        _
      $region10: #{tpu_custom_call.1} parent=5 // pred_check_branch
        %276 = sbr.rel (%p273) target = $region12
      $region11: #{tpu_custom_call.1} parent=5 // pred_region
        %s277 = ssub.s32 %s17, 1
        // Predicated region
        $region13: #{tpu_custom_call.1} parent=11 // pred_check
          %p278 = pneg %p116
        $region14: #{tpu_custom_call.1} parent=11 // pred_check_branch
          %280 = sbr.rel (%p278) target = $region16
        $region15: #{tpu_custom_call.1} parent=11 // pred_region
          _
        $region16: #{tpu_custom_call.1} parent=11 // pred_fallthru
          _
        // Predicated region
        $region17: #{tpu_custom_call.1} parent=11 // pred_check
          %p281 = pneg %p137
        $region18: #{tpu_custom_call.1} parent=11 // pred_check_branch
          %283 = sbr.rel (%p281) target = $region20
        $region19: #{tpu_custom_call.1} parent=11 // pred_region
          _
        $region20: #{tpu_custom_call.1} parent=11 // pred_fallthru
          _
        // Predicated region
        $region21: #{tpu_custom_call.1} parent=11 // pred_check
          %p284 = pneg %p158
        $region22: #{tpu_custom_call.1} parent=11 // pred_check_branch
          %286 = sbr.rel (%p284) target = $region24
        $region23: #{tpu_custom_call.1} parent=11 // pred_region
          _
        $region24: #{tpu_custom_call.1} parent=11 // pred_fallthru
          _
        // Predicated region
        $region25: #{tpu_custom_call.1} parent=11 // pred_check
          %p287 = pneg %p179
        $region26: #{tpu_custom_call.1} parent=11 // pred_check_branch
          %289 = sbr.rel (%p287) target = $region28
        $region27: #{tpu_custom_call.1} parent=11 // pred_region
          _
        $region28: #{tpu_custom_call.1} parent=11 // pred_fallthru
          _
        // Predicated region
        $region29: #{tpu_custom_call.1} parent=11 // pred_check
          %p290 = pneg %p200
        $region30: #{tpu_custom_call.1} parent=11 // pred_check_branch
          %292 = sbr.rel (%p290) target = $region32
        $region31: #{tpu_custom_call.1} parent=11 // pred_region
          _
        $region32: #{tpu_custom_call.1} parent=11 // pred_fallthru
          _
        // Predicated region
        $region33: #{tpu_custom_call.1} parent=11 // pred_check
          %p293 = pneg %p221
        $region34: #{tpu_custom_call.1} parent=11 // pred_check_branch
          %295 = sbr.rel (%p293) target = $region36
        $region35: #{tpu_custom_call.1} parent=11 // pred_region
          _
        $region36: #{tpu_custom_call.1} parent=11 // pred_fallthru
          _
        // Predicated region
        $region37: #{tpu_custom_call.1} parent=11 // pred_check
          %p296 = pneg %p242
        $region38: #{tpu_custom_call.1} parent=11 // pred_check_branch
          %298 = sbr.rel (%p296) target = $region40
        $region39: #{tpu_custom_call.1} parent=11 // pred_region
          _
        $region40: #{tpu_custom_call.1} parent=11 // pred_fallthru
          _
      $region12: #{tpu_custom_call.1} parent=5 // pred_fallthru
        _
      %p299 = scmp.lt.s32.totalorder %s17, 2
      // Predicated region
      $region41: #{tpu_custom_call.1} parent=5 // pred_check
        %p300 = pneg %p299
      $region42: #{tpu_custom_call.1} parent=5 // pred_check_branch
        %302 = sbr.rel (%p300) target = $region44
      $region43: #{tpu_custom_call.1} parent=5 // pred_region
        // Predicated region
        $region45: #{tpu_custom_call.1} parent=43 // pred_check
          %p303 = pneg %p37
        $region46: #{tpu_custom_call.1} parent=43 // pred_check_branch
          %305 = sbr.rel (%p303) target = $region48
        $region47: #{tpu_custom_call.1} parent=43 // pred_region
          %s306 = smul.u32 4, %s17
          %p307 = scmp.lt.s32.totalorder %s306, 7
          %s308 = scalar_select %p307, %s306, 7
          %s309 = smul.addr %s308, 2
          %s310 = scalar_lea.vmem %s0, %s309
          %s311 = smul.u32 4, %s17
        $region48: #{tpu_custom_call.1} parent=43 // pred_fallthru
          _
        // Predicated region
        $region49: #{tpu_custom_call.1} parent=43 // pred_check
          %p312 = pneg %p63
        $region50: #{tpu_custom_call.1} parent=43 // pred_check_branch
          %314 = sbr.rel (%p312) target = $region52
        $region51: #{tpu_custom_call.1} parent=43 // pred_region
          %s315 = smul.u32 64, %s17
          %p316 = scmp.lt.s32.totalorder %s315, 127
          %s317 = scalar_select %p316, %s315, 127
          %s318 = smul.addr %s317, 8
          %s319 = scalar_lea.vmem %s1, %s318
          %s320 = smul.u32 64, %s17
        $region52: #{tpu_custom_call.1} parent=43 // pred_fallthru
          _
        // Predicated region
        $region53: #{tpu_custom_call.1} parent=43 // pred_check
          %p321 = pneg %p89
        $region54: #{tpu_custom_call.1} parent=43 // pred_check_branch
          %323 = sbr.rel (%p321) target = $region56
        $region55: #{tpu_custom_call.1} parent=43 // pred_region
          %s324 = smul.u32 64, %s17
          %p325 = scmp.lt.s32.totalorder %s324, 127
          %s326 = scalar_select %p325, %s324, 127
          %s327 = smul.addr %s326, 4
          %s328 = scalar_lea.vmem %s2, %s327
          %s329 = smul.u32 64, %s17
        $region56: #{tpu_custom_call.1} parent=43 // pred_fallthru
          _
      $region44: #{tpu_custom_call.1} parent=5 // pred_fallthru
        _
      %p330 = scmp.le.s32.totalorder 1, %s17
      %p331 = scmp.lt.s32.totalorder %s17, 3
      %p332 = pnand %p330, %p331
      %p333 = pneg %p332
      // Predicated region
      $region57: #{tpu_custom_call.1} parent=5 // pred_check
        _
      $region58: #{tpu_custom_call.1} parent=5 // pred_check_branch
        %335 = sbr.rel (%p332) target = $region60
      $region59: #{tpu_custom_call.1} parent=5 // pred_region
        %s336 = ssub.s32 %s17, 1
        %s337 = smul.u32 4, %s22
        %p338 = scmp.lt.s32.totalorder %s337, 7
        %s339 = scalar_select %p338, %s337, 7
        %s340 = smul.addr %s339, 2
        %s341 = scalar_lea.vmem %s0, %s340
        %p342 = pneg %p43
        %p343 = pneg %p40
        %s344 = smul.u32 64, %s22
        %p345 = scmp.lt.s32.totalorder %s344, 127
        %s346 = scalar_select %p345, %s344, 127
        %s347 = smul.addr %s346, 8
        %s348 = scalar_lea.vmem %s1, %s347
        %p349 = pneg %p69
        %p350 = pneg %p66
        %s351 = smul.u32 64, %s22
        %p352 = scmp.lt.s32.totalorder %s351, 127
        %s353 = scalar_select %p352, %s351, 127
        %s354 = smul.addr %s353, 4
        %s355 = scalar_lea.vmem %s2, %s354
        %p356 = pneg %p95
        %p357 = pneg %p92
        %p358 = pneg %p116
        %p359 = pneg %p113
        %p360 = pneg %p137
        %p361 = pneg %p134
        %p362 = pneg %p158
        %p363 = pneg %p155
        %p364 = pneg %p179
        %p365 = pneg %p176
        %p366 = pneg %p200
        %p367 = pneg %p197
        %p368 = pneg %p221
        %p369 = pneg %p218
        %p370 = pneg %p242
        %p371 = pneg %p239
        %p372 = pneg %p263
        %p373 = pneg %p260
        %s374 = smul.u32 4, %s22
        %p375 = scmp.lt.s32.totalorder %s374, 7
        %s376 = scalar_select %p375, %s374, 7
        %s377 = smul.addr %s376, 2
        %s378 = scalar_lea.vmem %s0, %s377
        %s379 = smul.u32 4, %s22
        %s380 = smul.u32 64, %s22
        %p381 = scmp.lt.s32.totalorder %s380, 127
        %s382 = scalar_select %p381, %s380, 127
        %s383 = smul.addr %s382, 8
        %s384 = scalar_lea.vmem %s1, %s383
        %s385 = smul.u32 64, %s22
        %s386 = smul.u32 64, %s22
        %p387 = scmp.lt.s32.totalorder %s386, 127
        %s388 = scalar_select %p387, %s386, 127
        %s389 = smul.addr %s388, 4
        %s390 = scalar_lea.vmem %s2, %s389
        %s391 = smul.u32 64, %s22
        %p393 = scmp.eq.s32.totalorder %s22, 0
        // Predicated region
        $region61: #{tpu_custom_call.1} parent=59 // pred_check
          %p394 = pneg %p393
        $region62: #{tpu_custom_call.1} parent=59 // pred_check_branch
          %396 = sbr.rel (%p394) target = $region64
        $region63: #{tpu_custom_call.1} parent=59 // pred_region
          %vm397 = vcmask 523264
          %398 = vst.msk [vmem:[#allocation2] sm:$0xff] %vm397, 0.0
          %399 = vst.msk [vmem:[#allocation2 + $0x8] sm:$0xff] %vm397, 0.0
          %400 = vst.msk [vmem:[#allocation2 + $0x10] sm:$0xff] %vm397, 0.0
          %401 = vst.msk [vmem:[#allocation2 + $0x18] sm:$0xff] %vm397, 0.0
          %402 = vst.msk [vmem:[#allocation2 + $0x20] sm:$0xff] %vm397, 0.0
          %403 = vst.msk [vmem:[#allocation2 + $0x28] sm:$0xff] %vm397, 0.0
          %404 = vst.msk [vmem:[#allocation2 + $0x30] sm:$0xff] %vm397, 0.0
          %405 = vst.msk [vmem:[#allocation2 + $0x38] sm:$0xff] %vm397, 0.0
          %406 = vst.msk [vmem:[#allocation2 + $0x40] sm:$0xff] %vm397, 0.0
          %407 = vst.msk [vmem:[#allocation2 + $0x48] sm:$0xff] %vm397, 0.0
          %408 = vst.msk [vmem:[#allocation2 + $0x50] sm:$0xff] %vm397, 0.0
          %409 = vst.msk [vmem:[#allocation2 + $0x58] sm:$0xff] %vm397, 0.0
          %410 = vst.msk [vmem:[#allocation2 + $0x60] sm:$0xff] %vm397, 0.0
          %411 = vst.msk [vmem:[#allocation2 + $0x68] sm:$0xff] %vm397, 0.0
          %412 = vst.msk [vmem:[#allocation2 + $0x70] sm:$0xff] %vm397, 0.0
          %413 = vst.msk [vmem:[#allocation2 + $0x78] sm:$0xff] %vm397, 0.0
        $region64: #{tpu_custom_call.1} parent=59 // pred_fallthru
          _
        %v414 = vld [vmem:[%s378] ss:$2 sm:$0xf]
        %s415 = scalar_lea.vmem %s378, 1
        %v416 = vld [vmem:[%s415] ss:$2 sm:$0xf]
        %v417 = vld [vmem:[%s384] sm:$0xff]
        %v418 = vld [vmem:[%s384 + $0x8] sm:$0xff]
        %v419 = vld [vmem:[%s384 + $0x10] sm:$0xff]
        %v420 = vld [vmem:[%s384 + $0x18] sm:$0xff]
        %v421 = vld [vmem:[%s384 + $0x20] sm:$0xff]
        %v422 = vld [vmem:[%s384 + $0x28] sm:$0xff]
        %v423 = vld [vmem:[%s384 + $0x30] sm:$0xff]
        %v424 = vld [vmem:[%s384 + $0x38] sm:$0xff]
        %v425 = vld [vmem:[%s384 + $0x40] sm:$0xff]
        %v426 = vld [vmem:[%s384 + $0x48] sm:$0xff]
        %v427 = vld [vmem:[%s384 + $0x50] sm:$0xff]
        %v428 = vld [vmem:[%s384 + $0x58] sm:$0xff]
        %v429 = vld [vmem:[%s384 + $0x60] sm:$0xff]
        %v430 = vld [vmem:[%s384 + $0x68] sm:$0xff]
        %v431 = vld [vmem:[%s384 + $0x70] sm:$0xff]
        %v432 = vld [vmem:[%s384 + $0x78] sm:$0xff]
        %v433 = vld [vmem:[%s384 + $0x80] sm:$0xff]
        %v434 = vld [vmem:[%s384 + $0x88] sm:$0xff]
        %v435 = vld [vmem:[%s384 + $0x90] sm:$0xff]
        %v436 = vld [vmem:[%s384 + $0x98] sm:$0xff]
        %v437 = vld [vmem:[%s384 + $0xa0] sm:$0xff]
        %v438 = vld [vmem:[%s384 + $0xa8] sm:$0xff]
        %v439 = vld [vmem:[%s384 + $0xb0] sm:$0xff]
        %v440 = vld [vmem:[%s384 + $0xb8] sm:$0xff]
        %v441 = vld [vmem:[%s384 + $0xc0] sm:$0xff]
        %v442 = vld [vmem:[%s384 + $0xc8] sm:$0xff]
        %v443 = vld [vmem:[%s384 + $0xd0] sm:$0xff]
        %v444 = vld [vmem:[%s384 + $0xd8] sm:$0xff]
        %v445 = vld [vmem:[%s384 + $0xe0] sm:$0xff]
        %v446 = vld [vmem:[%s384 + $0xe8] sm:$0xff]
        %v447 = vld [vmem:[%s384 + $0xf0] sm:$0xff]
        %v448 = vld [vmem:[%s384 + $0xf8] sm:$0xff]
        %v449 = vld [vmem:[%s384 + $0x100] sm:$0xff]
        %v450 = vld [vmem:[%s384 + $0x108] sm:$0xff]
        %v451 = vld [vmem:[%s384 + $0x110] sm:$0xff]
        %v452 = vld [vmem:[%s384 + $0x118] sm:$0xff]
        %v453 = vld [vmem:[%s384 + $0x120] sm:$0xff]
        %v454 = vld [vmem:[%s384 + $0x128] sm:$0xff]
        %v455 = vld [vmem:[%s384 + $0x130] sm:$0xff]
        %v456 = vld [vmem:[%s384 + $0x138] sm:$0xff]
        %v457 = vld [vmem:[%s384 + $0x140] sm:$0xff]
        %v458 = vld [vmem:[%s384 + $0x148] sm:$0xff]
        %v459 = vld [vmem:[%s384 + $0x150] sm:$0xff]
        %v460 = vld [vmem:[%s384 + $0x158] sm:$0xff]
        %v461 = vld [vmem:[%s384 + $0x160] sm:$0xff]
        %v462 = vld [vmem:[%s384 + $0x168] sm:$0xff]
        %v463 = vld [vmem:[%s384 + $0x170] sm:$0xff]
        %v464 = vld [vmem:[%s384 + $0x178] sm:$0xff]
        %v465 = vld [vmem:[%s384 + $0x180] sm:$0xff]
        %v466 = vld [vmem:[%s384 + $0x188] sm:$0xff]
        %v467 = vld [vmem:[%s384 + $0x190] sm:$0xff]
        %v468 = vld [vmem:[%s384 + $0x198] sm:$0xff]
        %v469 = vld [vmem:[%s384 + $0x1a0] sm:$0xff]
        %v470 = vld [vmem:[%s384 + $0x1a8] sm:$0xff]
        %v471 = vld [vmem:[%s384 + $0x1b0] sm:$0xff]
        %v472 = vld [vmem:[%s384 + $0x1b8] sm:$0xff]
        %v473 = vld [vmem:[%s384 + $0x1c0] sm:$0xff]
        %v474 = vld [vmem:[%s384 + $0x1c8] sm:$0xff]
        %v475 = vld [vmem:[%s384 + $0x1d0] sm:$0xff]
        %v476 = vld [vmem:[%s384 + $0x1d8] sm:$0xff]
        %v477 = vld [vmem:[%s384 + $0x1e0] sm:$0xff]
        %v478 = vld [vmem:[%s384 + $0x1e8] sm:$0xff]
        %v479 = vld [vmem:[%s384 + $0x1f0] sm:$0xff]
        %v480 = vld [vmem:[%s384 + $0x1f8] sm:$0xff]
        %v481 = vlaneseq
        %v482 = vand.u32 %v481, 127
        %v483 = vlaneseq
        %v484 = vshrl.u32 %v483, 7
        %v485 = vadd.s32 %v484, 8
        %v486 = vadd.s32 %v484, 16
        %v487 = vadd.s32 %v484, 24
        %v488 = vadd.s32 %v484, 32
        %v489 = vadd.s32 %v484, 40
        %v490 = vadd.s32 %v484, 48
        %v491 = vadd.s32 %v484, 56
        %v492 = vadd.s32 %v484, 64
        %v493 = vadd.s32 %v484, 72
        %v494 = vadd.s32 %v484, 80
        %v495 = vadd.s32 %v484, 88
        %v496 = vadd.s32 %v484, 96
        %v497 = vadd.s32 %v484, 104
        %v498 = vadd.s32 %v484, 112
        %v499 = vadd.s32 %v484, 120
        %500 = vset.pattern.permute.xlu0 0
        %501 = vperm.xlu0 %500, %v417
        %v502 = vpop.permute.xlu0 %501
        %503 = vset.pattern.permute.xlu0 0
        %504 = vperm.xlu0 %503, %v418
        %v505 = vpop.permute.xlu0 %504
        %506 = vset.pattern.permute.xlu0 0
        %507 = vperm.xlu0 %506, %v419
        %v508 = vpop.permute.xlu0 %507
        %509 = vset.pattern.permute.xlu0 0
        %510 = vperm.xlu0 %509, %v420
        %v511 = vpop.permute.xlu0 %510
        %512 = vset.pattern.permute.xlu0 0
        %513 = vperm.xlu0 %512, %v421
        %v514 = vpop.permute.xlu0 %513
        %515 = vset.pattern.permute.xlu0 0
        %516 = vperm.xlu0 %515, %v422
        %v517 = vpop.permute.xlu0 %516
        %518 = vset.pattern.permute.xlu0 0
        %519 = vperm.xlu0 %518, %v423
        %v520 = vpop.permute.xlu0 %519
        %521 = vset.pattern.permute.xlu0 0
        %522 = vperm.xlu0 %521, %v424
        %v523 = vpop.permute.xlu0 %522
        %524 = vset.pattern.permute.xlu0 0
        %525 = vperm.xlu0 %524, %v425
        %v526 = vpop.permute.xlu0 %525
        %527 = vset.pattern.permute.xlu0 0
        %528 = vperm.xlu0 %527, %v426
        %v529 = vpop.permute.xlu0 %528
        %530 = vset.pattern.permute.xlu0 0
        %531 = vperm.xlu0 %530, %v427
        %v532 = vpop.permute.xlu0 %531
        %533 = vset.pattern.permute.xlu0 0
        %534 = vperm.xlu0 %533, %v428
        %v535 = vpop.permute.xlu0 %534
        %536 = vset.pattern.permute.xlu0 0
        %537 = vperm.xlu0 %536, %v429
        %v538 = vpop.permute.xlu0 %537
        %539 = vset.pattern.permute.xlu0 0
        %540 = vperm.xlu0 %539, %v430
        %v541 = vpop.permute.xlu0 %540
        %542 = vset.pattern.permute.xlu0 0
        %543 = vperm.xlu0 %542, %v431
        %v544 = vpop.permute.xlu0 %543
        %545 = vset.pattern.permute.xlu0 0
        %546 = vperm.xlu0 %545, %v432
        %v547 = vpop.permute.xlu0 %546
        %548 = vset.pattern.permute.xlu0 0
        %549 = vperm.xlu0 %548, %v433
        %v550 = vpop.permute.xlu0 %549
        %551 = vset.pattern.permute.xlu0 0
        %552 = vperm.xlu0 %551, %v434
        %v553 = vpop.permute.xlu0 %552
        %554 = vset.pattern.permute.xlu0 0
        %555 = vperm.xlu0 %554, %v435
        %v556 = vpop.permute.xlu0 %555
        %557 = vset.pattern.permute.xlu0 0
        %558 = vperm.xlu0 %557, %v436
        %v559 = vpop.permute.xlu0 %558
        %560 = vset.pattern.permute.xlu0 0
        %561 = vperm.xlu0 %560, %v437
        %v562 = vpop.permute.xlu0 %561
        %563 = vset.pattern.permute.xlu0 0
        %564 = vperm.xlu0 %563, %v438
        %v565 = vpop.permute.xlu0 %564
        %566 = vset.pattern.permute.xlu0 0
        %567 = vperm.xlu0 %566, %v439
        %v568 = vpop.permute.xlu0 %567
        %569 = vset.pattern.permute.xlu0 0
        %570 = vperm.xlu0 %569, %v440
        %v571 = vpop.permute.xlu0 %570
        %572 = vset.pattern.permute.xlu0 0
        %573 = vperm.xlu0 %572, %v441
        %v574 = vpop.permute.xlu0 %573
        %575 = vset.pattern.permute.xlu0 0
        %576 = vperm.xlu0 %575, %v442
        %v577 = vpop.permute.xlu0 %576
        %578 = vset.pattern.permute.xlu0 0
        %579 = vperm.xlu0 %578, %v443
        %v580 = vpop.permute.xlu0 %579
        %581 = vset.pattern.permute.xlu0 0
        %582 = vperm.xlu0 %581, %v444
        %v583 = vpop.permute.xlu0 %582
        %584 = vset.pattern.permute.xlu0 0
        %585 = vperm.xlu0 %584, %v445
        %v586 = vpop.permute.xlu0 %585
        %587 = vset.pattern.permute.xlu0 0
        %588 = vperm.xlu0 %587, %v446
        %v589 = vpop.permute.xlu0 %588
        %590 = vset.pattern.permute.xlu0 0
        %591 = vperm.xlu0 %590, %v447
        %v592 = vpop.permute.xlu0 %591
        %593 = vset.pattern.permute.xlu0 0
        %594 = vperm.xlu0 %593, %v448
        %v595 = vpop.permute.xlu0 %594
        %596 = vset.pattern.permute.xlu0 0
        %597 = vperm.xlu0 %596, %v449
        %v598 = vpop.permute.xlu0 %597
        %599 = vset.pattern.permute.xlu0 0
        %600 = vperm.xlu0 %599, %v450
        %v601 = vpop.permute.xlu0 %600
        %602 = vset.pattern.permute.xlu0 0
        %603 = vperm.xlu0 %602, %v451
        %v604 = vpop.permute.xlu0 %603
        %605 = vset.pattern.permute.xlu0 0
        %606 = vperm.xlu0 %605, %v452
        %v607 = vpop.permute.xlu0 %606
        %608 = vset.pattern.permute.xlu0 0
        %609 = vperm.xlu0 %608, %v453
        %v610 = vpop.permute.xlu0 %609
        %611 = vset.pattern.permute.xlu0 0
        %612 = vperm.xlu0 %611, %v454
        %v613 = vpop.permute.xlu0 %612
        %614 = vset.pattern.permute.xlu0 0
        %615 = vperm.xlu0 %614, %v455
        %v616 = vpop.permute.xlu0 %615
        %617 = vset.pattern.permute.xlu0 0
        %618 = vperm.xlu0 %617, %v456
        %v619 = vpop.permute.xlu0 %618
        %620 = vset.pattern.permute.xlu0 0
        %621 = vperm.xlu0 %620, %v457
        %v622 = vpop.permute.xlu0 %621
        %623 = vset.pattern.permute.xlu0 0
        %624 = vperm.xlu0 %623, %v458
        %v625 = vpop.permute.xlu0 %624
        %626 = vset.pattern.permute.xlu0 0
        %627 = vperm.xlu0 %626, %v459
        %v628 = vpop.permute.xlu0 %627
        %629 = vset.pattern.permute.xlu0 0
        %630 = vperm.xlu0 %629, %v460
        %v631 = vpop.permute.xlu0 %630
        %632 = vset.pattern.permute.xlu0 0
        %633 = vperm.xlu0 %632, %v461
        %v634 = vpop.permute.xlu0 %633
        %635 = vset.pattern.permute.xlu0 0
        %636 = vperm.xlu0 %635, %v462
        %v637 = vpop.permute.xlu0 %636
        %638 = vset.pattern.permute.xlu0 0
        %639 = vperm.xlu0 %638, %v463
        %v640 = vpop.permute.xlu0 %639
        %641 = vset.pattern.permute.xlu0 0
        %642 = vperm.xlu0 %641, %v464
        %v643 = vpop.permute.xlu0 %642
        %644 = vset.pattern.permute.xlu0 0
        %645 = vperm.xlu0 %644, %v465
        %v646 = vpop.permute.xlu0 %645
        %647 = vset.pattern.permute.xlu0 0
        %648 = vperm.xlu0 %647, %v466
        %v649 = vpop.permute.xlu0 %648
        %650 = vset.pattern.permute.xlu0 0
        %651 = vperm.xlu0 %650, %v467
        %v652 = vpop.permute.xlu0 %651
        %653 = vset.pattern.permute.xlu0 0
        %654 = vperm.xlu0 %653, %v468
        %v655 = vpop.permute.xlu0 %654
        %656 = vset.pattern.permute.xlu0 0
        %657 = vperm.xlu0 %656, %v469
        %v658 = vpop.permute.xlu0 %657
        %659 = vset.pattern.permute.xlu0 0
        %660 = vperm.xlu0 %659, %v470
        %v661 = vpop.permute.xlu0 %660
        %662 = vset.pattern.permute.xlu0 0
        %663 = vperm.xlu0 %662, %v471
        %v664 = vpop.permute.xlu0 %663
        %665 = vset.pattern.permute.xlu0 0
        %666 = vperm.xlu0 %665, %v472
        %v667 = vpop.permute.xlu0 %666
        %668 = vset.pattern.permute.xlu0 0
        %669 = vperm.xlu0 %668, %v473
        %v670 = vpop.permute.xlu0 %669
        %671 = vset.pattern.permute.xlu0 0
        %672 = vperm.xlu0 %671, %v474
        %v673 = vpop.permute.xlu0 %672
        %674 = vset.pattern.permute.xlu0 0
        %675 = vperm.xlu0 %674, %v475
        %v676 = vpop.permute.xlu0 %675
        %677 = vset.pattern.permute.xlu0 0
        %678 = vperm.xlu0 %677, %v476
        %v679 = vpop.permute.xlu0 %678
        %680 = vset.pattern.permute.xlu0 0
        %681 = vperm.xlu0 %680, %v477
        %v682 = vpop.permute.xlu0 %681
        %683 = vset.pattern.permute.xlu0 0
        %684 = vperm.xlu0 %683, %v478
        %v685 = vpop.permute.xlu0 %684
        %686 = vset.pattern.permute.xlu0 0
        %687 = vperm.xlu0 %686, %v479
        %v688 = vpop.permute.xlu0 %687
        %689 = vset.pattern.permute.xlu0 0
        %690 = vperm.xlu0 %689, %v480
        %v691 = vpop.permute.xlu0 %690
        %vm692 = vcmp.eq.s32.totalorder %v482, %v502
        %vm693 = vcmp.eq.s32.totalorder %v482, %v505
        %vm694 = vcmp.eq.s32.totalorder %v482, %v508
        %vm695 = vcmp.eq.s32.totalorder %v482, %v511
        %vm696 = vcmp.eq.s32.totalorder %v482, %v514
        %vm697 = vcmp.eq.s32.totalorder %v482, %v517
        %vm698 = vcmp.eq.s32.totalorder %v482, %v520
        %vm699 = vcmp.eq.s32.totalorder %v482, %v523
        %vm700 = vcmp.eq.s32.totalorder %v482, %v526
        %vm701 = vcmp.eq.s32.totalorder %v482, %v529
        %vm702 = vcmp.eq.s32.totalorder %v482, %v532
        %vm703 = vcmp.eq.s32.totalorder %v482, %v535
        %vm704 = vcmp.eq.s32.totalorder %v482, %v538
        %vm705 = vcmp.eq.s32.totalorder %v482, %v541
        %vm706 = vcmp.eq.s32.totalorder %v482, %v544
        %vm707 = vcmp.eq.s32.totalorder %v482, %v547
        %vm708 = vcmp.eq.s32.totalorder %v482, %v550
        %vm709 = vcmp.eq.s32.totalorder %v482, %v553
        %vm710 = vcmp.eq.s32.totalorder %v482, %v556
        %vm711 = vcmp.eq.s32.totalorder %v482, %v559
        %vm712 = vcmp.eq.s32.totalorder %v482, %v562
        %vm713 = vcmp.eq.s32.totalorder %v482, %v565
        %vm714 = vcmp.eq.s32.totalorder %v482, %v568
        %vm715 = vcmp.eq.s32.totalorder %v482, %v571
        %vm716 = vcmp.eq.s32.totalorder %v482, %v574
        %vm717 = vcmp.eq.s32.totalorder %v482, %v577
        %vm718 = vcmp.eq.s32.totalorder %v482, %v580
        %vm719 = vcmp.eq.s32.totalorder %v482, %v583
        %vm720 = vcmp.eq.s32.totalorder %v482, %v586
        %vm721 = vcmp.eq.s32.totalorder %v482, %v589
        %vm722 = vcmp.eq.s32.totalorder %v482, %v592
        %vm723 = vcmp.eq.s32.totalorder %v482, %v595
        %vm724 = vcmp.eq.s32.totalorder %v482, %v598
        %vm725 = vcmp.eq.s32.totalorder %v482, %v601
        %vm726 = vcmp.eq.s32.totalorder %v482, %v604
        %vm727 = vcmp.eq.s32.totalorder %v482, %v607
        %vm728 = vcmp.eq.s32.totalorder %v482, %v610
        %vm729 = vcmp.eq.s32.totalorder %v482, %v613
        %vm730 = vcmp.eq.s32.totalorder %v482, %v616
        %vm731 = vcmp.eq.s32.totalorder %v482, %v619
        %vm732 = vcmp.eq.s32.totalorder %v482, %v622
        %vm733 = vcmp.eq.s32.totalorder %v482, %v625
        %vm734 = vcmp.eq.s32.totalorder %v482, %v628
        %vm735 = vcmp.eq.s32.totalorder %v482, %v631
        %vm736 = vcmp.eq.s32.totalorder %v482, %v634
        %vm737 = vcmp.eq.s32.totalorder %v482, %v637
        %vm738 = vcmp.eq.s32.totalorder %v482, %v640
        %vm739 = vcmp.eq.s32.totalorder %v482, %v643
        %vm740 = vcmp.eq.s32.totalorder %v482, %v646
        %vm741 = vcmp.eq.s32.totalorder %v482, %v649
        %vm742 = vcmp.eq.s32.totalorder %v482, %v652
        %vm743 = vcmp.eq.s32.totalorder %v482, %v655
        %vm744 = vcmp.eq.s32.totalorder %v482, %v658
        %vm745 = vcmp.eq.s32.totalorder %v482, %v661
        %vm746 = vcmp.eq.s32.totalorder %v482, %v664
        %vm747 = vcmp.eq.s32.totalorder %v482, %v667
        %vm748 = vcmp.eq.s32.totalorder %v482, %v670
        %vm749 = vcmp.eq.s32.totalorder %v482, %v673
        %vm750 = vcmp.eq.s32.totalorder %v482, %v676
        %vm751 = vcmp.eq.s32.totalorder %v482, %v679
        %vm752 = vcmp.eq.s32.totalorder %v482, %v682
        %vm753 = vcmp.eq.s32.totalorder %v482, %v685
        %vm754 = vcmp.eq.s32.totalorder %v482, %v688
        %vm755 = vcmp.eq.s32.totalorder %v482, %v691
        %v756 = vsel %vm692, 1, 0
        %v757 = vsel %vm693, 1, 0
        %v758 = vsel %vm694, 1, 0
        %v759 = vsel %vm695, 1, 0
        %v760 = vsel %vm696, 1, 0
        %v761 = vsel %vm697, 1, 0
        %v762 = vsel %vm698, 1, 0
        %v763 = vsel %vm699, 1, 0
        %v764 = vsel %vm700, 1, 0
        %v765 = vsel %vm701, 1, 0
        %v766 = vsel %vm702, 1, 0
        %v767 = vsel %vm703, 1, 0
        %v768 = vsel %vm704, 1, 0
        %v769 = vsel %vm705, 1, 0
        %v770 = vsel %vm706, 1, 0
        %v771 = vsel %vm707, 1, 0
        %v772 = vsel %vm708, 1, 0
        %v773 = vsel %vm709, 1, 0
        %v774 = vsel %vm710, 1, 0
        %v775 = vsel %vm711, 1, 0
        %v776 = vsel %vm712, 1, 0
        %v777 = vsel %vm713, 1, 0
        %v778 = vsel %vm714, 1, 0
        %v779 = vsel %vm715, 1, 0
        %v780 = vsel %vm716, 1, 0
        %v781 = vsel %vm717, 1, 0
        %v782 = vsel %vm718, 1, 0
        %v783 = vsel %vm719, 1, 0
        %v784 = vsel %vm720, 1, 0
        %v785 = vsel %vm721, 1, 0
        %v786 = vsel %vm722, 1, 0
        %v787 = vsel %vm723, 1, 0
        %v788 = vsel %vm724, 1, 0
        %v789 = vsel %vm725, 1, 0
        %v790 = vsel %vm726, 1, 0
        %v791 = vsel %vm727, 1, 0
        %v792 = vsel %vm728, 1, 0
        %v793 = vsel %vm729, 1, 0
        %v794 = vsel %vm730, 1, 0
        %v795 = vsel %vm731, 1, 0
        %v796 = vsel %vm732, 1, 0
        %v797 = vsel %vm733, 1, 0
        %v798 = vsel %vm734, 1, 0
        %v799 = vsel %vm735, 1, 0
        %v800 = vsel %vm736, 1, 0
        %v801 = vsel %vm737, 1, 0
        %v802 = vsel %vm738, 1, 0
        %v803 = vsel %vm739, 1, 0
        %v804 = vsel %vm740, 1, 0
        %v805 = vsel %vm741, 1, 0
        %v806 = vsel %vm742, 1, 0
        %v807 = vsel %vm743, 1, 0
        %v808 = vsel %vm744, 1, 0
        %v809 = vsel %vm745, 1, 0
        %v810 = vsel %vm746, 1, 0
        %v811 = vsel %vm747, 1, 0
        %v812 = vsel %vm748, 1, 0
        %v813 = vsel %vm749, 1, 0
        %v814 = vsel %vm750, 1, 0
        %v815 = vsel %vm751, 1, 0
        %v816 = vsel %vm752, 1, 0
        %v817 = vsel %vm753, 1, 0
        %v818 = vsel %vm754, 1, 0
        %v819 = vsel %vm755, 1, 0
        %v820 = vcvt.s32.f32 %v756
        %v821 = vcvt.s32.f32 %v757
        %v822 = vcvt.s32.f32 %v758
        %v823 = vcvt.s32.f32 %v759
        %v824 = vcvt.s32.f32 %v760
        %v825 = vcvt.s32.f32 %v761
        %v826 = vcvt.s32.f32 %v762
        %v827 = vcvt.s32.f32 %v763
        %v828 = vcvt.s32.f32 %v764
        %v829 = vcvt.s32.f32 %v765
        %v830 = vcvt.s32.f32 %v766
        %v831 = vcvt.s32.f32 %v767
        %v832 = vcvt.s32.f32 %v768
        %v833 = vcvt.s32.f32 %v769
        %v834 = vcvt.s32.f32 %v770
        %v835 = vcvt.s32.f32 %v771
        %v836 = vcvt.s32.f32 %v772
        %v837 = vcvt.s32.f32 %v773
        %v838 = vcvt.s32.f32 %v774
        %v839 = vcvt.s32.f32 %v775
        %v840 = vcvt.s32.f32 %v776
        %v841 = vcvt.s32.f32 %v777
        %v842 = vcvt.s32.f32 %v778
        %v843 = vcvt.s32.f32 %v779
        %v844 = vcvt.s32.f32 %v780
        %v845 = vcvt.s32.f32 %v781
        %v846 = vcvt.s32.f32 %v782
        %v847 = vcvt.s32.f32 %v783
        %v848 = vcvt.s32.f32 %v784
        %v849 = vcvt.s32.f32 %v785
        %v850 = vcvt.s32.f32 %v786
        %v851 = vcvt.s32.f32 %v787
        %v852 = vcvt.s32.f32 %v788
        %v853 = vcvt.s32.f32 %v789
        %v854 = vcvt.s32.f32 %v790
        %v855 = vcvt.s32.f32 %v791
        %v856 = vcvt.s32.f32 %v792
        %v857 = vcvt.s32.f32 %v793
        %v858 = vcvt.s32.f32 %v794
        %v859 = vcvt.s32.f32 %v795
        %v860 = vcvt.s32.f32 %v796
        %v861 = vcvt.s32.f32 %v797
        %v862 = vcvt.s32.f32 %v798
        %v863 = vcvt.s32.f32 %v799
        %v864 = vcvt.s32.f32 %v800
        %v865 = vcvt.s32.f32 %v801
        %v866 = vcvt.s32.f32 %v802
        %v867 = vcvt.s32.f32 %v803
        %v868 = vcvt.s32.f32 %v804
        %v869 = vcvt.s32.f32 %v805
        %v870 = vcvt.s32.f32 %v806
        %v871 = vcvt.s32.f32 %v807
        %v872 = vcvt.s32.f32 %v808
        %v873 = vcvt.s32.f32 %v809
        %v874 = vcvt.s32.f32 %v810
        %v875 = vcvt.s32.f32 %v811
        %v876 = vcvt.s32.f32 %v812
        %v877 = vcvt.s32.f32 %v813
        %v878 = vcvt.s32.f32 %v814
        %v879 = vcvt.s32.f32 %v815
        %v880 = vcvt.s32.f32 %v816
        %v881 = vcvt.s32.f32 %v817
        %v882 = vcvt.s32.f32 %v818
        %v883 = vcvt.s32.f32 %v819
        %v884 = vpack.c.bf16 %v821, %v820
        %v885 = vpack.c.bf16 %v823, %v822
        %v886 = vpack.c.bf16 %v825, %v824
        %v887 = vpack.c.bf16 %v827, %v826
        %v888 = vpack.c.bf16 %v829, %v828
        %v889 = vpack.c.bf16 %v831, %v830
        %v890 = vpack.c.bf16 %v833, %v832
        %v891 = vpack.c.bf16 %v835, %v834
        %v892 = vpack.c.bf16 %v837, %v836
        %v893 = vpack.c.bf16 %v839, %v838
        %v894 = vpack.c.bf16 %v841, %v840
        %v895 = vpack.c.bf16 %v843, %v842
        %v896 = vpack.c.bf16 %v845, %v844
        %v897 = vpack.c.bf16 %v847, %v846
        %v898 = vpack.c.bf16 %v849, %v848
        %v899 = vpack.c.bf16 %v851, %v850
        %v900 = vpack.c.bf16 %v853, %v852
        %v901 = vpack.c.bf16 %v855, %v854
        %v902 = vpack.c.bf16 %v857, %v856
        %v903 = vpack.c.bf16 %v859, %v858
        %v904 = vpack.c.bf16 %v861, %v860
        %v905 = vpack.c.bf16 %v863, %v862
        %v906 = vpack.c.bf16 %v865, %v864
        %v907 = vpack.c.bf16 %v867, %v866
        %v908 = vpack.c.bf16 %v869, %v868
        %v909 = vpack.c.bf16 %v871, %v870
        %v910 = vpack.c.bf16 %v873, %v872
        %v911 = vpack.c.bf16 %v875, %v874
        %v912 = vpack.c.bf16 %v877, %v876
        %v913 = vpack.c.bf16 %v879, %v878
        %v914 = vpack.c.bf16 %v881, %v880
        %v915 = vpack.c.bf16 %v883, %v882
        %v916 = vld [vmem:[%s3] sm:$0xf]
        %v917 = vld [vmem:[%s3 + $0x4] sm:$0xf]
        %v918 = vld [vmem:[%s3 + $0x8] sm:$0xf]
        %v919 = vld [vmem:[%s3 + $0xc] sm:$0xf]
        %v920 = vld [vmem:[%s3 + $0x10] sm:$0xf]
        %v921 = vld [vmem:[%s3 + $0x14] sm:$0xf]
        %v922 = vld [vmem:[%s3 + $0x18] sm:$0xf]
        %v923 = vld [vmem:[%s3 + $0x1c] sm:$0xf]
        %v924 = vld [vmem:[%s3 + $0x20] sm:$0xf]
        %v925 = vld [vmem:[%s3 + $0x24] sm:$0xf]
        %v926 = vld [vmem:[%s3 + $0x28] sm:$0xf]
        %v927 = vld [vmem:[%s3 + $0x2c] sm:$0xf]
        %v928 = vld [vmem:[%s3 + $0x30] sm:$0xf]
        %v929 = vld [vmem:[%s3 + $0x34] sm:$0xf]
        %v930 = vld [vmem:[%s3 + $0x38] sm:$0xf]
        %v931 = vld [vmem:[%s3 + $0x3c] sm:$0xf]
        %v932 = vld [vmem:[%s390] sm:$0xf]
        %v933 = vld [vmem:[%s390 + $0x4] sm:$0xf]
        %v934 = vld [vmem:[%s390 + $0x8] sm:$0xf]
        %v935 = vld [vmem:[%s390 + $0xc] sm:$0xf]
        %v936 = vld [vmem:[%s390 + $0x10] sm:$0xf]
        %v937 = vld [vmem:[%s390 + $0x14] sm:$0xf]
        %v938 = vld [vmem:[%s390 + $0x18] sm:$0xf]
        %v939 = vld [vmem:[%s390 + $0x1c] sm:$0xf]
        %v940 = vld [vmem:[%s390 + $0x20] sm:$0xf]
        %v941 = vld [vmem:[%s390 + $0x24] sm:$0xf]
        %v942 = vld [vmem:[%s390 + $0x28] sm:$0xf]
        %v943 = vld [vmem:[%s390 + $0x2c] sm:$0xf]
        %v944 = vld [vmem:[%s390 + $0x30] sm:$0xf]
        %v945 = vld [vmem:[%s390 + $0x34] sm:$0xf]
        %v946 = vld [vmem:[%s390 + $0x38] sm:$0xf]
        %v947 = vld [vmem:[%s390 + $0x3c] sm:$0xf]
        %v948 = vld [vmem:[%s390 + $0x40] sm:$0xf]
        %v949 = vld [vmem:[%s390 + $0x44] sm:$0xf]
        %v950 = vld [vmem:[%s390 + $0x48] sm:$0xf]
        %v951 = vld [vmem:[%s390 + $0x4c] sm:$0xf]
        %v952 = vld [vmem:[%s390 + $0x50] sm:$0xf]
        %v953 = vld [vmem:[%s390 + $0x54] sm:$0xf]
        %v954 = vld [vmem:[%s390 + $0x58] sm:$0xf]
        %v955 = vld [vmem:[%s390 + $0x5c] sm:$0xf]
        %v956 = vld [vmem:[%s390 + $0x60] sm:$0xf]
        %v957 = vld [vmem:[%s390 + $0x64] sm:$0xf]
        %v958 = vld [vmem:[%s390 + $0x68] sm:$0xf]
        %v959 = vld [vmem:[%s390 + $0x6c] sm:$0xf]
        %v960 = vld [vmem:[%s390 + $0x70] sm:$0xf]
        %v961 = vld [vmem:[%s390 + $0x74] sm:$0xf]
        %v962 = vld [vmem:[%s390 + $0x78] sm:$0xf]
        %v963 = vld [vmem:[%s390 + $0x7c] sm:$0xf]
        %v964 = vld [vmem:[%s390 + $0x80] sm:$0xf]
        %v965 = vld [vmem:[%s390 + $0x84] sm:$0xf]
        %v966 = vld [vmem:[%s390 + $0x88] sm:$0xf]
        %v967 = vld [vmem:[%s390 + $0x8c] sm:$0xf]
        %v968 = vld [vmem:[%s390 + $0x90] sm:$0xf]
        %v969 = vld [vmem:[%s390 + $0x94] sm:$0xf]
        %v970 = vld [vmem:[%s390 + $0x98] sm:$0xf]
        %v971 = vld [vmem:[%s390 + $0x9c] sm:$0xf]
        %v972 = vld [vmem:[%s390 + $0xa0] sm:$0xf]
        %v973 = vld [vmem:[%s390 + $0xa4] sm:$0xf]
        %v974 = vld [vmem:[%s390 + $0xa8] sm:$0xf]
        %v975 = vld [vmem:[%s390 + $0xac] sm:$0xf]
        %v976 = vld [vmem:[%s390 + $0xb0] sm:$0xf]
        %v977 = vld [vmem:[%s390 + $0xb4] sm:$0xf]
        %v978 = vld [vmem:[%s390 + $0xb8] sm:$0xf]
        %v979 = vld [vmem:[%s390 + $0xbc] sm:$0xf]
        %v980 = vld [vmem:[%s390 + $0xc0] sm:$0xf]
        %v981 = vld [vmem:[%s390 + $0xc4] sm:$0xf]
        %v982 = vld [vmem:[%s390 + $0xc8] sm:$0xf]
        %v983 = vld [vmem:[%s390 + $0xcc] sm:$0xf]
        %v984 = vld [vmem:[%s390 + $0xd0] sm:$0xf]
        %v985 = vld [vmem:[%s390 + $0xd4] sm:$0xf]
        %v986 = vld [vmem:[%s390 + $0xd8] sm:$0xf]
        %v987 = vld [vmem:[%s390 + $0xdc] sm:$0xf]
        %v988 = vld [vmem:[%s390 + $0xe0] sm:$0xf]
        %v989 = vld [vmem:[%s390 + $0xe4] sm:$0xf]
        %v990 = vld [vmem:[%s390 + $0xe8] sm:$0xf]
        %v991 = vld [vmem:[%s390 + $0xec] sm:$0xf]
        %v992 = vld [vmem:[%s390 + $0xf0] sm:$0xf]
        %v993 = vld [vmem:[%s390 + $0xf4] sm:$0xf]
        %v994 = vld [vmem:[%s390 + $0xf8] sm:$0xf]
        %v995 = vld [vmem:[%s390 + $0xfc] sm:$0xf]
        %v996 = vld [vmem:[%s4] sm:$0xf]
        %v997 = vld [vmem:[%s4 + $0x4] sm:$0xf]
        %v1062 = vunpack.c.l.b16 %v932
        %v1063 = vunpack.c.l.b16 %v933
        %v1064 = vunpack.c.l.b16 %v934
        %v1065 = vunpack.c.l.b16 %v935
        %v1066 = vunpack.c.l.b16 %v936
        %v1067 = vunpack.c.l.b16 %v937
        %v1068 = vunpack.c.l.b16 %v938
        %v1069 = vunpack.c.l.b16 %v939
        %v1070 = vunpack.c.l.b16 %v940
        %v1071 = vunpack.c.l.b16 %v941
        %v1072 = vunpack.c.l.b16 %v942
        %v1073 = vunpack.c.l.b16 %v943
        %v1074 = vunpack.c.l.b16 %v944
        %v1075 = vunpack.c.l.b16 %v945
        %v1076 = vunpack.c.l.b16 %v946
        %v1077 = vunpack.c.l.b16 %v947
        %v1078 = vunpack.c.l.b16 %v948
        %v1079 = vunpack.c.l.b16 %v949
        %v1080 = vunpack.c.l.b16 %v950
        %v1081 = vunpack.c.l.b16 %v951
        %v1082 = vunpack.c.l.b16 %v952
        %v1083 = vunpack.c.l.b16 %v953
        %v1084 = vunpack.c.l.b16 %v954
        %v1085 = vunpack.c.l.b16 %v955
        %v1086 = vunpack.c.l.b16 %v956
        %v1087 = vunpack.c.l.b16 %v957
        %v1088 = vunpack.c.l.b16 %v958
        %v1089 = vunpack.c.l.b16 %v959
        %v1090 = vunpack.c.l.b16 %v960
        %v1091 = vunpack.c.l.b16 %v961
        %v1092 = vunpack.c.l.b16 %v962
        %v1093 = vunpack.c.l.b16 %v963
        %v1094 = vunpack.c.l.b16 %v964
        %v1095 = vunpack.c.l.b16 %v965
        %v1096 = vunpack.c.l.b16 %v966
        %v1097 = vunpack.c.l.b16 %v967
        %v1098 = vunpack.c.l.b16 %v968
        %v1099 = vunpack.c.l.b16 %v969
        %v1100 = vunpack.c.l.b16 %v970
        %v1101 = vunpack.c.l.b16 %v971
        %v1102 = vunpack.c.l.b16 %v972
        %v1103 = vunpack.c.l.b16 %v973
        %v1104 = vunpack.c.l.b16 %v974
        %v1105 = vunpack.c.l.b16 %v975
        %v1106 = vunpack.c.l.b16 %v976
        %v1107 = vunpack.c.l.b16 %v977
        %v1108 = vunpack.c.l.b16 %v978
        %v1109 = vunpack.c.l.b16 %v979
        %v1110 = vunpack.c.l.b16 %v980
        %v1111 = vunpack.c.l.b16 %v981
        %v1112 = vunpack.c.l.b16 %v982
        %v1113 = vunpack.c.l.b16 %v983
        %v1114 = vunpack.c.l.b16 %v984
        %v1115 = vunpack.c.l.b16 %v985
        %v1116 = vunpack.c.l.b16 %v986
        %v1117 = vunpack.c.l.b16 %v987
        %v1118 = vunpack.c.l.b16 %v988
        %v1119 = vunpack.c.l.b16 %v989
        %v1120 = vunpack.c.l.b16 %v990
        %v1121 = vunpack.c.l.b16 %v991
        %v1122 = vunpack.c.l.b16 %v992
        %v1123 = vunpack.c.l.b16 %v993
        %v1124 = vunpack.c.l.b16 %v994
        %v1125 = vunpack.c.l.b16 %v995
        %v1126 = vpack.c.b16 %v1063, %v1062
        %v1127 = vpack.c.b16 %v1065, %v1064
        %v1128 = vpack.c.b16 %v1067, %v1066
        %v1129 = vpack.c.b16 %v1069, %v1068
        %v1130 = vpack.c.b16 %v1071, %v1070
        %v1131 = vpack.c.b16 %v1073, %v1072
        %v1132 = vpack.c.b16 %v1075, %v1074
        %v1133 = vpack.c.b16 %v1077, %v1076
        %v1134 = vpack.c.b16 %v1079, %v1078
        %v1135 = vpack.c.b16 %v1081, %v1080
        %v1136 = vpack.c.b16 %v1083, %v1082
        %v1137 = vpack.c.b16 %v1085, %v1084
        %v1138 = vpack.c.b16 %v1087, %v1086
        %v1139 = vpack.c.b16 %v1089, %v1088
        %v1140 = vpack.c.b16 %v1091, %v1090
        %v1141 = vpack.c.b16 %v1093, %v1092
        %v1142 = vpack.c.b16 %v1095, %v1094
        %v1143 = vpack.c.b16 %v1097, %v1096
        %v1144 = vpack.c.b16 %v1099, %v1098
        %v1145 = vpack.c.b16 %v1101, %v1100
        %v1146 = vpack.c.b16 %v1103, %v1102
        %v1147 = vpack.c.b16 %v1105, %v1104
        %v1148 = vpack.c.b16 %v1107, %v1106
        %v1149 = vpack.c.b16 %v1109, %v1108
        %v1150 = vpack.c.b16 %v1111, %v1110
        %v1151 = vpack.c.b16 %v1113, %v1112
        %v1152 = vpack.c.b16 %v1115, %v1114
        %v1153 = vpack.c.b16 %v1117, %v1116
        %v1154 = vpack.c.b16 %v1119, %v1118
        %v1155 = vpack.c.b16 %v1121, %v1120
        %v1156 = vpack.c.b16 %v1123, %v1122
        %v1157 = vpack.c.b16 %v1125, %v1124
        %v1160 = vunpack.c.l.b16 %v996
        %v1161 = vunpack.c.l.b16 %v997
        %v1162 = vpack.c.b16 %v1161, %v1160
        %vm1164 = vcmask 130048
        %v1166 = vsel %vm1164, %v1126, 0
        %v1169 = vsel %vm1164, %v1127, 0
        %v1172 = vsel %vm1164, %v1128, 0
        %v1175 = vsel %vm1164, %v1129, 0
        %v1178 = vsel %vm1164, %v1130, 0
        %v1181 = vsel %vm1164, %v1131, 0
        %v1184 = vsel %vm1164, %v1132, 0
        %v1187 = vsel %vm1164, %v1133, 0
        %v1190 = vsel %vm1164, %v1134, 0
        %v1193 = vsel %vm1164, %v1135, 0
        %v1196 = vsel %vm1164, %v1136, 0
        %v1199 = vsel %vm1164, %v1137, 0
        %v1202 = vsel %vm1164, %v1138, 0
        %v1205 = vsel %vm1164, %v1139, 0
        %v1208 = vsel %vm1164, %v1140, 0
        %v1211 = vsel %vm1164, %v1141, 0
        %v1214 = vsel %vm1164, %v1142, 0
        %v1217 = vsel %vm1164, %v1143, 0
        %v1220 = vsel %vm1164, %v1144, 0
        %v1223 = vsel %vm1164, %v1145, 0
        %v1226 = vsel %vm1164, %v1146, 0
        %v1229 = vsel %vm1164, %v1147, 0
        %v1232 = vsel %vm1164, %v1148, 0
        %v1235 = vsel %vm1164, %v1149, 0
        %v1238 = vsel %vm1164, %v1150, 0
        %v1241 = vsel %vm1164, %v1151, 0
        %v1244 = vsel %vm1164, %v1152, 0
        %v1247 = vsel %vm1164, %v1153, 0
        %v1250 = vsel %vm1164, %v1154, 0
        %v1253 = vsel %vm1164, %v1155, 0
        %v1256 = vsel %vm1164, %v1156, 0
        %v1259 = vsel %vm1164, %v1157, 0
        %1261 = vmatprep.subr.bf16.mxu0 0
        %1262 = vmatpush1.bf16.msra.mxu0 %v1162
        %1263 = vmatprep.subr.bf16.mxu0 0
        %1264 = vmatpush1.bf16.msra.mxu0 0
        %1265 = vmatprep.subr.bf16.mxu0 0
        %1266 = vmatpush1.bf16.msra.mxu0 0
        %1267 = vmatprep.subr.bf16.mxu0 0
        %1268 = vmatpush1.bf16.msra.mxu0 0
        %1269 = vmatprep.subr.bf16.mxu0 0
        %1270 = vmatpush1.bf16.msra.mxu0 0
        %1271 = vmatprep.subr.bf16.mxu0 0
        %1272 = vmatpush1.bf16.msra.mxu0 0
        %1273 = vmatprep.subr.bf16.mxu0 0
        %1274 = vmatpush1.bf16.msra.mxu0 0
        %1275 = vmatprep.subr.bf16.mxu0 0
        %1276 = vmatpush1.bf16.msra.mxu0 0
        %1277 = vmatprep.subr.bf16.mxu0 0
        %1278 = vmatpush1.bf16.msra.mxu0 0
        %1279 = vmatprep.subr.bf16.mxu0 0
        %1280 = vmatpush1.bf16.msra.mxu0 0
        %1281 = vmatprep.subr.bf16.mxu0 0
        %1282 = vmatpush1.bf16.msra.mxu0 0
        %1283 = vmatprep.subr.bf16.mxu0 0
        %1284 = vmatpush1.bf16.msra.mxu0 0
        %1285 = vmatprep.subr.bf16.mxu0 0
        %1286 = vmatpush1.bf16.msra.mxu0 0
        %1287 = vmatprep.subr.bf16.mxu0 0
        %1288 = vmatpush1.bf16.msra.mxu0 0
        %1289 = vmatprep.subr.bf16.mxu0 0
        %1290 = vmatpush1.bf16.msra.mxu0 0
        %1291 = vmatprep.subr.bf16.mxu0 0
        %1292 = vmatpush1.bf16.msra.mxu0 0
        %1293 = vmatprep.mubr.bf16.mxu0 0
        %1294 = vmatmul.mubr.bf16.gmra.mrb[0].mxu0 %v1166
        %v1295 = vpop.f32.mrb[0].mxu0
        %v1296 = vadd.f32 0.0, %v1295
        %v1297 = vpop.f32.mrb[0].mxu0
        %v1298 = vpop.f32.mrb[0].mxu0
        %v1299 = vadd.f32 0.0, %v1298
        %v1300 = vpop.f32.mrb[0].mxu0
        %1301 = vmatprep.mubr.bf16.mxu0 0
        %1302 = vmatmul.mubr.bf16.gmra.mrb[0].mxu0 %v1169
        %v1303 = vpop.f32.mrb[0].mxu0
        %v1304 = vadd.f32 0.0, %v1303
        %v1305 = vpop.f32.mrb[0].mxu0
        %v1306 = vpop.f32.mrb[0].mxu0
        %v1307 = vadd.f32 0.0, %v1306
        %v1308 = vpop.f32.mrb[0].mxu0
        %1309 = vmatprep.mubr.bf16.mxu0 0
        %1310 = vmatmul.mubr.bf16.gmra.mrb[0].mxu0 %v1172
        %v1311 = vpop.f32.mrb[0].mxu0
        %v1312 = vadd.f32 0.0, %v1311
        %v1313 = vpop.f32.mrb[0].mxu0
        %v1314 = vpop.f32.mrb[0].mxu0
        %v1315 = vadd.f32 0.0, %v1314
        %v1316 = vpop.f32.mrb[0].mxu0
        %1317 = vmatprep.mubr.bf16.mxu0 0
        %1318 = vmatmul.mubr.bf16.gmra.mrb[0].mxu0 %v1175
        %v1319 = vpop.f32.mrb[0].mxu0
        %v1320 = vadd.f32 0.0, %v1319
        %v1321 = vpop.f32.mrb[0].mxu0
        %v1322 = vpop.f32.mrb[0].mxu0
        %v1323 = vadd.f32 0.0, %v1322
        %v1324 = vpop.f32.mrb[0].mxu0
        %1325 = vmatprep.mubr.bf16.mxu0 0
        %1326 = vmatmul.mubr.bf16.gmra.mrb[0].mxu0 %v1178
        %v1327 = vpop.f32.mrb[0].mxu0
        %v1328 = vadd.f32 0.0, %v1327
        %v1329 = vpop.f32.mrb[0].mxu0
        %v1330 = vpop.f32.mrb[0].mxu0
        %v1331 = vadd.f32 0.0, %v1330
        %v1332 = vpop.f32.mrb[0].mxu0
        %1333 = vmatprep.mubr.bf16.mxu0 0
        %1334 = vmatmul.mubr.bf16.gmra.mrb[0].mxu0 %v1181
        %v1335 = vpop.f32.mrb[0].mxu0
        %v1336 = vadd.f32 0.0, %v1335
        %v1337 = vpop.f32.mrb[0].mxu0
        %v1338 = vpop.f32.mrb[0].mxu0
        %v1339 = vadd.f32 0.0, %v1338
        %v1340 = vpop.f32.mrb[0].mxu0
        %1341 = vmatprep.mubr.bf16.mxu0 0
        %1342 = vmatmul.mubr.bf16.gmra.mrb[0].mxu0 %v1184
        %v1343 = vpop.f32.mrb[0].mxu0
        %v1344 = vadd.f32 0.0, %v1343
        %v1345 = vpop.f32.mrb[0].mxu0
        %v1346 = vpop.f32.mrb[0].mxu0
        %v1347 = vadd.f32 0.0, %v1346
        %v1348 = vpop.f32.mrb[0].mxu0
        %1349 = vmatprep.mubr.bf16.mxu0 0
        %1350 = vmatmul.mubr.bf16.gmra.mrb[0].mxu0 %v1187
        %v1351 = vpop.f32.mrb[0].mxu0
        %v1352 = vadd.f32 0.0, %v1351
        %v1353 = vpop.f32.mrb[0].mxu0
        %v1354 = vpop.f32.mrb[0].mxu0
        %v1355 = vadd.f32 0.0, %v1354
        %v1356 = vpop.f32.mrb[0].mxu0
        %1357 = vmatprep.mubr.bf16.mxu0 0
        %1358 = vmatmul.mubr.bf16.gmra.mrb[0].mxu0 %v1190
        %v1359 = vpop.f32.mrb[0].mxu0
        %v1360 = vadd.f32 0.0, %v1359
        %v1361 = vpop.f32.mrb[0].mxu0
        %v1362 = vpop.f32.mrb[0].mxu0
        %v1363 = vadd.f32 0.0, %v1362
        %v1364 = vpop.f32.mrb[0].mxu0
        %1365 = vmatprep.mubr.bf16.mxu0 0
        %1366 = vmatmul.mubr.bf16.gmra.mrb[0].mxu0 %v1193
        %v1367 = vpop.f32.mrb[0].mxu0
        %v1368 = vadd.f32 0.0, %v1367
        %v1369 = vpop.f32.mrb[0].mxu0
        %v1370 = vpop.f32.mrb[0].mxu0
        %v1371 = vadd.f32 0.0, %v1370
        %v1372 = vpop.f32.mrb[0].mxu0
        %1373 = vmatprep.mubr.bf16.mxu0 0
        %1374 = vmatmul.mubr.bf16.gmra.mrb[0].mxu0 %v1196
        %v1375 = vpop.f32.mrb[0].mxu0
        %v1376 = vadd.f32 0.0, %v1375
        %v1377 = vpop.f32.mrb[0].mxu0
        %v1378 = vpop.f32.mrb[0].mxu0
        %v1379 = vadd.f32 0.0, %v1378
        %v1380 = vpop.f32.mrb[0].mxu0
        %1381 = vmatprep.mubr.bf16.mxu0 0
        %1382 = vmatmul.mubr.bf16.gmra.mrb[0].mxu0 %v1199
        %v1383 = vpop.f32.mrb[0].mxu0
        %v1384 = vadd.f32 0.0, %v1383
        %v1385 = vpop.f32.mrb[0].mxu0
        %v1386 = vpop.f32.mrb[0].mxu0
        %v1387 = vadd.f32 0.0, %v1386
        %v1388 = vpop.f32.mrb[0].mxu0
        %1389 = vmatprep.mubr.bf16.mxu0 0
        %1390 = vmatmul.mubr.bf16.gmra.mrb[0].mxu0 %v1202
        %v1391 = vpop.f32.mrb[0].mxu0
        %v1392 = vadd.f32 0.0, %v1391
        %v1393 = vpop.f32.mrb[0].mxu0
        %v1394 = vpop.f32.mrb[0].mxu0
        %v1395 = vadd.f32 0.0, %v1394
        %v1396 = vpop.f32.mrb[0].mxu0
        %1397 = vmatprep.mubr.bf16.mxu0 0
        %1398 = vmatmul.mubr.bf16.gmra.mrb[0].mxu0 %v1205
        %v1399 = vpop.f32.mrb[0].mxu0
        %v1400 = vadd.f32 0.0, %v1399
        %v1401 = vpop.f32.mrb[0].mxu0
        %v1402 = vpop.f32.mrb[0].mxu0
        %v1403 = vadd.f32 0.0, %v1402
        %v1404 = vpop.f32.mrb[0].mxu0
        %1405 = vmatprep.mubr.bf16.mxu0 0
        %1406 = vmatmul.mubr.bf16.gmra.mrb[0].mxu0 %v1208
        %v1407 = vpop.f32.mrb[0].mxu0
        %v1408 = vadd.f32 0.0, %v1407
        %v1409 = vpop.f32.mrb[0].mxu0
        %v1410 = vpop.f32.mrb[0].mxu0
        %v1411 = vadd.f32 0.0, %v1410
        %v1412 = vpop.f32.mrb[0].mxu0
        %1413 = vmatprep.mubr.bf16.mxu0 0
        %1414 = vmatmul.mubr.bf16.gmra.mrb[0].mxu0 %v1211
        %v1415 = vpop.f32.mrb[0].mxu0
        %v1416 = vadd.f32 0.0, %v1415
        %v1417 = vpop.f32.mrb[0].mxu0
        %v1418 = vpop.f32.mrb[0].mxu0
        %v1419 = vadd.f32 0.0, %v1418
        %v1420 = vpop.f32.mrb[0].mxu0
        %1421 = vmatprep.mubr.bf16.mxu0 0
        %1422 = vmatmul.mubr.bf16.gmra.mrb[0].mxu0 %v1214
        %v1423 = vpop.f32.mrb[0].mxu0
        %v1424 = vadd.f32 0.0, %v1423
        %v1425 = vpop.f32.mrb[0].mxu0
        %v1426 = vpop.f32.mrb[0].mxu0
        %v1427 = vadd.f32 0.0, %v1426
        %v1428 = vpop.f32.mrb[0].mxu0
        %1429 = vmatprep.mubr.bf16.mxu0 0
        %1430 = vmatmul.mubr.bf16.gmra.mrb[0].mxu0 %v1217
        %v1431 = vpop.f32.mrb[0].mxu0
        %v1432 = vadd.f32 0.0, %v1431
        %v1433 = vpop.f32.mrb[0].mxu0
        %v1434 = vpop.f32.mrb[0].mxu0
        %v1435 = vadd.f32 0.0, %v1434
        %v1436 = vpop.f32.mrb[0].mxu0
        %1437 = vmatprep.mubr.bf16.mxu0 0
        %1438 = vmatmul.mubr.bf16.gmra.mrb[0].mxu0 %v1220
        %v1439 = vpop.f32.mrb[0].mxu0
        %v1440 = vadd.f32 0.0, %v1439
        %v1441 = vpop.f32.mrb[0].mxu0
        %v1442 = vpop.f32.mrb[0].mxu0
        %v1443 = vadd.f32 0.0, %v1442
        %v1444 = vpop.f32.mrb[0].mxu0
        %1445 = vmatprep.mubr.bf16.mxu0 0
        %1446 = vmatmul.mubr.bf16.gmra.mrb[0].mxu0 %v1223
        %v1447 = vpop.f32.mrb[0].mxu0
        %v1448 = vadd.f32 0.0, %v1447
        %v1449 = vpop.f32.mrb[0].mxu0
        %v1450 = vpop.f32.mrb[0].mxu0
        %v1451 = vadd.f32 0.0, %v1450
        %v1452 = vpop.f32.mrb[0].mxu0
        %1453 = vmatprep.mubr.bf16.mxu0 0
        %1454 = vmatmul.mubr.bf16.gmra.mrb[0].mxu0 %v1226
        %v1455 = vpop.f32.mrb[0].mxu0
        %v1456 = vadd.f32 0.0, %v1455
        %v1457 = vpop.f32.mrb[0].mxu0
        %v1458 = vpop.f32.mrb[0].mxu0
        %v1459 = vadd.f32 0.0, %v1458
        %v1460 = vpop.f32.mrb[0].mxu0
        %1461 = vmatprep.mubr.bf16.mxu0 0
        %1462 = vmatmul.mubr.bf16.gmra.mrb[0].mxu0 %v1229
        %v1463 = vpop.f32.mrb[0].mxu0
        %v1464 = vadd.f32 0.0, %v1463
        %v1465 = vpop.f32.mrb[0].mxu0
        %v1466 = vpop.f32.mrb[0].mxu0
        %v1467 = vadd.f32 0.0, %v1466
        %v1468 = vpop.f32.mrb[0].mxu0
        %1469 = vmatprep.mubr.bf16.mxu0 0
        %1470 = vmatmul.mubr.bf16.gmra.mrb[0].mxu0 %v1232
        %v1471 = vpop.f32.mrb[0].mxu0
        %v1472 = vadd.f32 0.0, %v1471
        %v1473 = vpop.f32.mrb[0].mxu0
        %v1474 = vpop.f32.mrb[0].mxu0
        %v1475 = vadd.f32 0.0, %v1474
        %v1476 = vpop.f32.mrb[0].mxu0
        %1477 = vmatprep.mubr.bf16.mxu0 0
        %1478 = vmatmul.mubr.bf16.gmra.mrb[0].mxu0 %v1235
        %v1479 = vpop.f32.mrb[0].mxu0
        %v1480 = vadd.f32 0.0, %v1479
        %v1481 = vpop.f32.mrb[0].mxu0
        %v1482 = vpop.f32.mrb[0].mxu0
        %v1483 = vadd.f32 0.0, %v1482
        %v1484 = vpop.f32.mrb[0].mxu0
        %1485 = vmatprep.mubr.bf16.mxu0 0
        %1486 = vmatmul.mubr.bf16.gmra.mrb[0].mxu0 %v1238
        %v1487 = vpop.f32.mrb[0].mxu0
        %v1488 = vadd.f32 0.0, %v1487
        %v1489 = vpop.f32.mrb[0].mxu0
        %v1490 = vpop.f32.mrb[0].mxu0
        %v1491 = vadd.f32 0.0, %v1490
        %v1492 = vpop.f32.mrb[0].mxu0
        %1493 = vmatprep.mubr.bf16.mxu0 0
        %1494 = vmatmul.mubr.bf16.gmra.mrb[0].mxu0 %v1241
        %v1495 = vpop.f32.mrb[0].mxu0
        %v1496 = vadd.f32 0.0, %v1495
        %v1497 = vpop.f32.mrb[0].mxu0
        %v1498 = vpop.f32.mrb[0].mxu0
        %v1499 = vadd.f32 0.0, %v1498
        %v1500 = vpop.f32.mrb[0].mxu0
        %1501 = vmatprep.mubr.bf16.mxu0 0
        %1502 = vmatmul.mubr.bf16.gmra.mrb[0].mxu0 %v1244
        %v1503 = vpop.f32.mrb[0].mxu0
        %v1504 = vadd.f32 0.0, %v1503
        %v1505 = vpop.f32.mrb[0].mxu0
        %v1506 = vpop.f32.mrb[0].mxu0
        %v1507 = vadd.f32 0.0, %v1506
        %v1508 = vpop.f32.mrb[0].mxu0
        %1509 = vmatprep.mubr.bf16.mxu0 0
        %1510 = vmatmul.mubr.bf16.gmra.mrb[0].mxu0 %v1247
        %v1511 = vpop.f32.mrb[0].mxu0
        %v1512 = vadd.f32 0.0, %v1511
        %v1513 = vpop.f32.mrb[0].mxu0
        %v1514 = vpop.f32.mrb[0].mxu0
        %v1515 = vadd.f32 0.0, %v1514
        %v1516 = vpop.f32.mrb[0].mxu0
        %1517 = vmatprep.mubr.bf16.mxu0 0
        %1518 = vmatmul.mubr.bf16.gmra.mrb[0].mxu0 %v1250
        %v1519 = vpop.f32.mrb[0].mxu0
        %v1520 = vadd.f32 0.0, %v1519
        %v1521 = vpop.f32.mrb[0].mxu0
        %v1522 = vpop.f32.mrb[0].mxu0
        %v1523 = vadd.f32 0.0, %v1522
        %v1524 = vpop.f32.mrb[0].mxu0
        %1525 = vmatprep.mubr.bf16.mxu0 0
        %1526 = vmatmul.mubr.bf16.gmra.mrb[0].mxu0 %v1253
        %v1527 = vpop.f32.mrb[0].mxu0
        %v1528 = vadd.f32 0.0, %v1527
        %v1529 = vpop.f32.mrb[0].mxu0
        %v1530 = vpop.f32.mrb[0].mxu0
        %v1531 = vadd.f32 0.0, %v1530
        %v1532 = vpop.f32.mrb[0].mxu0
        %1533 = vmatprep.mubr.bf16.mxu0 0
        %1534 = vmatmul.mubr.bf16.gmra.mrb[0].mxu0 %v1256
        %v1535 = vpop.f32.mrb[0].mxu0
        %v1536 = vadd.f32 0.0, %v1535
        %v1537 = vpop.f32.mrb[0].mxu0
        %v1538 = vpop.f32.mrb[0].mxu0
        %v1539 = vadd.f32 0.0, %v1538
        %v1540 = vpop.f32.mrb[0].mxu0
        %1541 = vmatprep.mubr.bf16.mxu0 0
        %1542 = vmatmul.mubr.bf16.gmra.mrb[0].mxu0 %v1259
        %v1543 = vpop.f32.mrb[0].mxu0
        %v1544 = vadd.f32 0.0, %v1543
        %v1545 = vpop.f32.mrb[0].mxu0
        %v1546 = vpop.f32.mrb[0].mxu0
        %v1547 = vadd.f32 0.0, %v1546
        %v1548 = vpop.f32.mrb[0].mxu0
        %1549 = vdwg.mxu0
        %v1566 = vunpack.c.l.b16 %v916
        %v1567 = vunpack.c.l.b16 %v917
        %v1568 = vunpack.c.l.b16 %v918
        %v1569 = vunpack.c.l.b16 %v919
        %v1570 = vunpack.c.l.b16 %v920
        %v1571 = vunpack.c.l.b16 %v921
        %v1572 = vunpack.c.l.b16 %v922
        %v1573 = vunpack.c.l.b16 %v923
        %v1574 = vunpack.c.l.b16 %v924
        %v1575 = vunpack.c.l.b16 %v925
        %v1576 = vunpack.c.l.b16 %v926
        %v1577 = vunpack.c.l.b16 %v927
        %v1578 = vunpack.c.l.b16 %v928
        %v1579 = vunpack.c.l.b16 %v929
        %v1580 = vunpack.c.l.b16 %v930
        %v1581 = vunpack.c.l.b16 %v931
        %v1582 = vpack.c.b16 %v1567, %v1566
        %v1583 = vpack.c.b16 %v1569, %v1568
        %v1584 = vpack.c.b16 %v1571, %v1570
        %v1585 = vpack.c.b16 %v1573, %v1572
        %v1586 = vpack.c.b16 %v1575, %v1574
        %v1587 = vpack.c.b16 %v1577, %v1576
        %v1588 = vpack.c.b16 %v1579, %v1578
        %v1589 = vpack.c.b16 %v1581, %v1580
        %1598 = vmatprep.subr.bf16.mxu0 0
        %1599 = vmatpush1.bf16.msra.mxu0 %v1582
        %1600 = vmatprep.subr.bf16.mxu0 0
        %1601 = vmatpush1.bf16.msra.mxu0 %v1583
        %1602 = vmatprep.subr.bf16.mxu0 0
        %1603 = vmatpush1.bf16.msra.mxu0 %v1584
        %1604 = vmatprep.subr.bf16.mxu0 0
        %1605 = vmatpush1.bf16.msra.mxu0 %v1585
        %1606 = vmatprep.subr.bf16.mxu0 0
        %1607 = vmatpush1.bf16.msra.mxu0 %v1586
        %1608 = vmatprep.subr.bf16.mxu0 0
        %1609 = vmatpush1.bf16.msra.mxu0 %v1587
        %1610 = vmatprep.subr.bf16.mxu0 0
        %1611 = vmatpush1.bf16.msra.mxu0 %v1588
        %1612 = vmatprep.subr.bf16.mxu0 0
        %1613 = vmatpush1.bf16.msra.mxu0 %v1589
        %1614 = vmatprep.subr.bf16.mxu0 0
        %1615 = vmatpush1.bf16.msra.mxu0 0
        %1616 = vmatprep.subr.bf16.mxu0 0
        %1617 = vmatpush1.bf16.msra.mxu0 0
        %1618 = vmatprep.subr.bf16.mxu0 0
        %1619 = vmatpush1.bf16.msra.mxu0 0
        %1620 = vmatprep.subr.bf16.mxu0 0
        %1621 = vmatpush1.bf16.msra.mxu0 0
        %1622 = vmatprep.subr.bf16.mxu0 0
        %1623 = vmatpush1.bf16.msra.mxu0 0
        %1624 = vmatprep.subr.bf16.mxu0 0
        %1625 = vmatpush1.bf16.msra.mxu0 0
        %1626 = vmatprep.subr.bf16.mxu0 0
        %1627 = vmatpush1.bf16.msra.mxu0 0
        %1628 = vmatprep.subr.bf16.mxu0 0
        %1629 = vmatpush1.bf16.msra.mxu0 0
        %1630 = vmatprep.mubr.bf16.mxu0 0
        %1631 = vmatmul.mubr.bf16.gmra.mrb[0].mxu0 %v884
        %v1632 = vpop.f32.mrb[0].mxu0
        %v1633 = vadd.f32 %v1296, %v1632
        %v1634 = vpop.f32.mrb[0].mxu0
        %v1635 = vpop.f32.mrb[0].mxu0
        %v1636 = vadd.f32 %v1299, %v1635
        %v1637 = vpop.f32.mrb[0].mxu0
        %1638 = vmatprep.mubr.bf16.mxu0 0
        %1639 = vmatmul.mubr.bf16.gmra.mrb[0].mxu0 %v885
        %v1640 = vpop.f32.mrb[0].mxu0
        %v1641 = vadd.f32 %v1304, %v1640
        %v1642 = vpop.f32.mrb[0].mxu0
        %v1643 = vpop.f32.mrb[0].mxu0
        %v1644 = vadd.f32 %v1307, %v1643
        %v1645 = vpop.f32.mrb[0].mxu0
        %1646 = vmatprep.mubr.bf16.mxu0 0
        %1647 = vmatmul.mubr.bf16.gmra.mrb[0].mxu0 %v886
        %v1648 = vpop.f32.mrb[0].mxu0
        %v1649 = vadd.f32 %v1312, %v1648
        %v1650 = vpop.f32.mrb[0].mxu0
        %v1651 = vpop.f32.mrb[0].mxu0
        %v1652 = vadd.f32 %v1315, %v1651
        %v1653 = vpop.f32.mrb[0].mxu0
        %1654 = vmatprep.mubr.bf16.mxu0 0
        %1655 = vmatmul.mubr.bf16.gmra.mrb[0].mxu0 %v887
        %v1656 = vpop.f32.mrb[0].mxu0
        %v1657 = vadd.f32 %v1320, %v1656
        %v1658 = vpop.f32.mrb[0].mxu0
        %v1659 = vpop.f32.mrb[0].mxu0
        %v1660 = vadd.f32 %v1323, %v1659
        %v1661 = vpop.f32.mrb[0].mxu0
        %1662 = vmatprep.mubr.bf16.mxu0 0
        %1663 = vmatmul.mubr.bf16.gmra.mrb[0].mxu0 %v888
        %v1664 = vpop.f32.mrb[0].mxu0
        %v1665 = vadd.f32 %v1328, %v1664
        %v1666 = vpop.f32.mrb[0].mxu0
        %v1667 = vpop.f32.mrb[0].mxu0
        %v1668 = vadd.f32 %v1331, %v1667
        %v1669 = vpop.f32.mrb[0].mxu0
        %1670 = vmatprep.mubr.bf16.mxu0 0
        %1671 = vmatmul.mubr.bf16.gmra.mrb[0].mxu0 %v889
        %v1672 = vpop.f32.mrb[0].mxu0
        %v1673 = vadd.f32 %v1336, %v1672
        %v1674 = vpop.f32.mrb[0].mxu0
        %v1675 = vpop.f32.mrb[0].mxu0
        %v1676 = vadd.f32 %v1339, %v1675
        %v1677 = vpop.f32.mrb[0].mxu0
        %1678 = vmatprep.mubr.bf16.mxu0 0
        %1679 = vmatmul.mubr.bf16.gmra.mrb[0].mxu0 %v890
        %v1680 = vpop.f32.mrb[0].mxu0
        %v1681 = vadd.f32 %v1344, %v1680
        %v1682 = vpop.f32.mrb[0].mxu0
        %v1683 = vpop.f32.mrb[0].mxu0
        %v1684 = vadd.f32 %v1347, %v1683
        %v1685 = vpop.f32.mrb[0].mxu0
        %1686 = vmatprep.mubr.bf16.mxu0 0
        %1687 = vmatmul.mubr.bf16.gmra.mrb[0].mxu0 %v891
        %v1688 = vpop.f32.mrb[0].mxu0
        %v1689 = vadd.f32 %v1352, %v1688
        %v1690 = vpop.f32.mrb[0].mxu0
        %v1691 = vpop.f32.mrb[0].mxu0
        %v1692 = vadd.f32 %v1355, %v1691
        %v1693 = vpop.f32.mrb[0].mxu0
        %1694 = vmatprep.mubr.bf16.mxu0 0
        %1695 = vmatmul.mubr.bf16.gmra.mrb[0].mxu0 %v892
        %v1696 = vpop.f32.mrb[0].mxu0
        %v1697 = vadd.f32 %v1360, %v1696
        %v1698 = vpop.f32.mrb[0].mxu0
        %v1699 = vpop.f32.mrb[0].mxu0
        %v1700 = vadd.f32 %v1363, %v1699
        %v1701 = vpop.f32.mrb[0].mxu0
        %1702 = vmatprep.mubr.bf16.mxu0 0
        %1703 = vmatmul.mubr.bf16.gmra.mrb[0].mxu0 %v893
        %v1704 = vpop.f32.mrb[0].mxu0
        %v1705 = vadd.f32 %v1368, %v1704
        %v1706 = vpop.f32.mrb[0].mxu0
        %v1707 = vpop.f32.mrb[0].mxu0
        %v1708 = vadd.f32 %v1371, %v1707
        %v1709 = vpop.f32.mrb[0].mxu0
        %1710 = vmatprep.mubr.bf16.mxu0 0
        %1711 = vmatmul.mubr.bf16.gmra.mrb[0].mxu0 %v894
        %v1712 = vpop.f32.mrb[0].mxu0
        %v1713 = vadd.f32 %v1376, %v1712
        %v1714 = vpop.f32.mrb[0].mxu0
        %v1715 = vpop.f32.mrb[0].mxu0
        %v1716 = vadd.f32 %v1379, %v1715
        %v1717 = vpop.f32.mrb[0].mxu0
        %1718 = vmatprep.mubr.bf16.mxu0 0
        %1719 = vmatmul.mubr.bf16.gmra.mrb[0].mxu0 %v895
        %v1720 = vpop.f32.mrb[0].mxu0
        %v1721 = vadd.f32 %v1384, %v1720
        %v1722 = vpop.f32.mrb[0].mxu0
        %v1723 = vpop.f32.mrb[0].mxu0
        %v1724 = vadd.f32 %v1387, %v1723
        %v1725 = vpop.f32.mrb[0].mxu0
        %1726 = vmatprep.mubr.bf16.mxu0 0
        %1727 = vmatmul.mubr.bf16.gmra.mrb[0].mxu0 %v896
        %v1728 = vpop.f32.mrb[0].mxu0
        %v1729 = vadd.f32 %v1392, %v1728
        %v1730 = vpop.f32.mrb[0].mxu0
        %v1731 = vpop.f32.mrb[0].mxu0
        %v1732 = vadd.f32 %v1395, %v1731
        %v1733 = vpop.f32.mrb[0].mxu0
        %1734 = vmatprep.mubr.bf16.mxu0 0
        %1735 = vmatmul.mubr.bf16.gmra.mrb[0].mxu0 %v897
        %v1736 = vpop.f32.mrb[0].mxu0
        %v1737 = vadd.f32 %v1400, %v1736
        %v1738 = vpop.f32.mrb[0].mxu0
        %v1739 = vpop.f32.mrb[0].mxu0
        %v1740 = vadd.f32 %v1403, %v1739
        %v1741 = vpop.f32.mrb[0].mxu0
        %1742 = vmatprep.mubr.bf16.mxu0 0
        %1743 = vmatmul.mubr.bf16.gmra.mrb[0].mxu0 %v898
        %v1744 = vpop.f32.mrb[0].mxu0
        %v1745 = vadd.f32 %v1408, %v1744
        %v1746 = vpop.f32.mrb[0].mxu0
        %v1747 = vpop.f32.mrb[0].mxu0
        %v1748 = vadd.f32 %v1411, %v1747
        %v1749 = vpop.f32.mrb[0].mxu0
        %1750 = vmatprep.mubr.bf16.mxu0 0
        %1751 = vmatmul.mubr.bf16.gmra.mrb[0].mxu0 %v899
        %v1752 = vpop.f32.mrb[0].mxu0
        %v1753 = vadd.f32 %v1416, %v1752
        %v1754 = vpop.f32.mrb[0].mxu0
        %v1755 = vpop.f32.mrb[0].mxu0
        %v1756 = vadd.f32 %v1419, %v1755
        %v1757 = vpop.f32.mrb[0].mxu0
        %1758 = vmatprep.mubr.bf16.mxu0 0
        %1759 = vmatmul.mubr.bf16.gmra.mrb[0].mxu0 %v900
        %v1760 = vpop.f32.mrb[0].mxu0
        %v1761 = vadd.f32 %v1424, %v1760
        %v1762 = vpop.f32.mrb[0].mxu0
        %v1763 = vpop.f32.mrb[0].mxu0
        %v1764 = vadd.f32 %v1427, %v1763
        %v1765 = vpop.f32.mrb[0].mxu0
        %1766 = vmatprep.mubr.bf16.mxu0 0
        %1767 = vmatmul.mubr.bf16.gmra.mrb[0].mxu0 %v901
        %v1768 = vpop.f32.mrb[0].mxu0
        %v1769 = vadd.f32 %v1432, %v1768
        %v1770 = vpop.f32.mrb[0].mxu0
        %v1771 = vpop.f32.mrb[0].mxu0
        %v1772 = vadd.f32 %v1435, %v1771
        %v1773 = vpop.f32.mrb[0].mxu0
        %1774 = vmatprep.mubr.bf16.mxu0 0
        %1775 = vmatmul.mubr.bf16.gmra.mrb[0].mxu0 %v902
        %v1776 = vpop.f32.mrb[0].mxu0
        %v1777 = vadd.f32 %v1440, %v1776
        %v1778 = vpop.f32.mrb[0].mxu0
        %v1779 = vpop.f32.mrb[0].mxu0
        %v1780 = vadd.f32 %v1443, %v1779
        %v1781 = vpop.f32.mrb[0].mxu0
        %1782 = vmatprep.mubr.bf16.mxu0 0
        %1783 = vmatmul.mubr.bf16.gmra.mrb[0].mxu0 %v903
        %v1784 = vpop.f32.mrb[0].mxu0
        %v1785 = vadd.f32 %v1448, %v1784
        %v1786 = vpop.f32.mrb[0].mxu0
        %v1787 = vpop.f32.mrb[0].mxu0
        %v1788 = vadd.f32 %v1451, %v1787
        %v1789 = vpop.f32.mrb[0].mxu0
        %1790 = vmatprep.mubr.bf16.mxu0 0
        %1791 = vmatmul.mubr.bf16.gmra.mrb[0].mxu0 %v904
        %v1792 = vpop.f32.mrb[0].mxu0
        %v1793 = vadd.f32 %v1456, %v1792
        %v1794 = vpop.f32.mrb[0].mxu0
        %v1795 = vpop.f32.mrb[0].mxu0
        %v1796 = vadd.f32 %v1459, %v1795
        %v1797 = vpop.f32.mrb[0].mxu0
        %1798 = vmatprep.mubr.bf16.mxu0 0
        %1799 = vmatmul.mubr.bf16.gmra.mrb[0].mxu0 %v905
        %v1800 = vpop.f32.mrb[0].mxu0
        %v1801 = vadd.f32 %v1464, %v1800
        %v1802 = vpop.f32.mrb[0].mxu0
        %v1803 = vpop.f32.mrb[0].mxu0
        %v1804 = vadd.f32 %v1467, %v1803
        %v1805 = vpop.f32.mrb[0].mxu0
        %1806 = vmatprep.mubr.bf16.mxu0 0
        %1807 = vmatmul.mubr.bf16.gmra.mrb[0].mxu0 %v906
        %v1808 = vpop.f32.mrb[0].mxu0
        %v1809 = vadd.f32 %v1472, %v1808
        %v1810 = vpop.f32.mrb[0].mxu0
        %v1811 = vpop.f32.mrb[0].mxu0
        %v1812 = vadd.f32 %v1475, %v1811
        %v1813 = vpop.f32.mrb[0].mxu0
        %1814 = vmatprep.mubr.bf16.mxu0 0
        %1815 = vmatmul.mubr.bf16.gmra.mrb[0].mxu0 %v907
        %v1816 = vpop.f32.mrb[0].mxu0
        %v1817 = vadd.f32 %v1480, %v1816
        %v1818 = vpop.f32.mrb[0].mxu0
        %v1819 = vpop.f32.mrb[0].mxu0
        %v1820 = vadd.f32 %v1483, %v1819
        %v1821 = vpop.f32.mrb[0].mxu0
        %1822 = vmatprep.mubr.bf16.mxu0 0
        %1823 = vmatmul.mubr.bf16.gmra.mrb[0].mxu0 %v908
        %v1824 = vpop.f32.mrb[0].mxu0
        %v1825 = vadd.f32 %v1488, %v1824
        %v1826 = vpop.f32.mrb[0].mxu0
        %v1827 = vpop.f32.mrb[0].mxu0
        %v1828 = vadd.f32 %v1491, %v1827
        %v1829 = vpop.f32.mrb[0].mxu0
        %1830 = vmatprep.mubr.bf16.mxu0 0
        %1831 = vmatmul.mubr.bf16.gmra.mrb[0].mxu0 %v909
        %v1832 = vpop.f32.mrb[0].mxu0
        %v1833 = vadd.f32 %v1496, %v1832
        %v1834 = vpop.f32.mrb[0].mxu0
        %v1835 = vpop.f32.mrb[0].mxu0
        %v1836 = vadd.f32 %v1499, %v1835
        %v1837 = vpop.f32.mrb[0].mxu0
        %1838 = vmatprep.mubr.bf16.mxu0 0
        %1839 = vmatmul.mubr.bf16.gmra.mrb[0].mxu0 %v910
        %v1840 = vpop.f32.mrb[0].mxu0
        %v1841 = vadd.f32 %v1504, %v1840
        %v1842 = vpop.f32.mrb[0].mxu0
        %v1843 = vpop.f32.mrb[0].mxu0
        %v1844 = vadd.f32 %v1507, %v1843
        %v1845 = vpop.f32.mrb[0].mxu0
        %1846 = vmatprep.mubr.bf16.mxu0 0
        %1847 = vmatmul.mubr.bf16.gmra.mrb[0].mxu0 %v911
        %v1848 = vpop.f32.mrb[0].mxu0
        %v1849 = vadd.f32 %v1512, %v1848
        %v1850 = vpop.f32.mrb[0].mxu0
        %v1851 = vpop.f32.mrb[0].mxu0
        %v1852 = vadd.f32 %v1515, %v1851
        %v1853 = vpop.f32.mrb[0].mxu0
        %1854 = vmatprep.mubr.bf16.mxu0 0
        %1855 = vmatmul.mubr.bf16.gmra.mrb[0].mxu0 %v912
        %v1856 = vpop.f32.mrb[0].mxu0
        %v1857 = vadd.f32 %v1520, %v1856
        %v1858 = vpop.f32.mrb[0].mxu0
        %v1859 = vpop.f32.mrb[0].mxu0
        %v1860 = vadd.f32 %v1523, %v1859
        %v1861 = vpop.f32.mrb[0].mxu0
        %1862 = vmatprep.mubr.bf16.mxu0 0
        %1863 = vmatmul.mubr.bf16.gmra.mrb[0].mxu0 %v913
        %v1864 = vpop.f32.mrb[0].mxu0
        %v1865 = vadd.f32 %v1528, %v1864
        %v1866 = vpop.f32.mrb[0].mxu0
        %v1867 = vpop.f32.mrb[0].mxu0
        %v1868 = vadd.f32 %v1531, %v1867
        %v1869 = vpop.f32.mrb[0].mxu0
        %1870 = vmatprep.mubr.bf16.mxu0 0
        %1871 = vmatmul.mubr.bf16.gmra.mrb[0].mxu0 %v914
        %v1872 = vpop.f32.mrb[0].mxu0
        %v1873 = vadd.f32 %v1536, %v1872
        %v1874 = vpop.f32.mrb[0].mxu0
        %v1875 = vpop.f32.mrb[0].mxu0
        %v1876 = vadd.f32 %v1539, %v1875
        %v1877 = vpop.f32.mrb[0].mxu0
        %1878 = vmatprep.mubr.bf16.mxu0 0
        %1879 = vmatmul.mubr.bf16.gmra.mrb[0].mxu0 %v915
        %v1880 = vpop.f32.mrb[0].mxu0
        %v1881 = vadd.f32 %v1544, %v1880
        %v1882 = vpop.f32.mrb[0].mxu0
        %v1883 = vpop.f32.mrb[0].mxu0
        %v1884 = vadd.f32 %v1547, %v1883
        %v1885 = vpop.f32.mrb[0].mxu0
        %1886 = vdwg.mxu0
        %v1887 = vld [vmem:[%s5] sm:$0x1]
        %v1889 = vlaneseq
        %v1890 = vshrl.u32 %v1889, 7
        %v1891 = vsub.s32 0, %v1890
        %v1892 = vrot.slane %v1887, %v1891
        %v1894 = vadd.f32 %v1633, %v1892
        %v1895 = vadd.f32 %v1636, %v1892
        %v1896 = vadd.f32 %v1641, %v1892
        %v1897 = vadd.f32 %v1644, %v1892
        %v1898 = vadd.f32 %v1649, %v1892
        %v1899 = vadd.f32 %v1652, %v1892
        %v1900 = vadd.f32 %v1657, %v1892
        %v1901 = vadd.f32 %v1660, %v1892
        %v1902 = vadd.f32 %v1665, %v1892
        %v1903 = vadd.f32 %v1668, %v1892
        %v1904 = vadd.f32 %v1673, %v1892
        %v1905 = vadd.f32 %v1676, %v1892
        %v1906 = vadd.f32 %v1681, %v1892
        %v1907 = vadd.f32 %v1684, %v1892
        %v1908 = vadd.f32 %v1689, %v1892
        %v1909 = vadd.f32 %v1692, %v1892
        %v1910 = vadd.f32 %v1697, %v1892
        %v1911 = vadd.f32 %v1700, %v1892
        %v1912 = vadd.f32 %v1705, %v1892
        %v1913 = vadd.f32 %v1708, %v1892
        %v1914 = vadd.f32 %v1713, %v1892
        %v1915 = vadd.f32 %v1716, %v1892
        %v1916 = vadd.f32 %v1721, %v1892
        %v1917 = vadd.f32 %v1724, %v1892
        %v1918 = vadd.f32 %v1729, %v1892
        %v1919 = vadd.f32 %v1732, %v1892
        %v1920 = vadd.f32 %v1737, %v1892
        %v1921 = vadd.f32 %v1740, %v1892
        %v1922 = vadd.f32 %v1745, %v1892
        %v1923 = vadd.f32 %v1748, %v1892
        %v1924 = vadd.f32 %v1753, %v1892
        %v1925 = vadd.f32 %v1756, %v1892
        %v1926 = vadd.f32 %v1761, %v1892
        %v1927 = vadd.f32 %v1764, %v1892
        %v1928 = vadd.f32 %v1769, %v1892
        %v1929 = vadd.f32 %v1772, %v1892
        %v1930 = vadd.f32 %v1777, %v1892
        %v1931 = vadd.f32 %v1780, %v1892
        %v1932 = vadd.f32 %v1785, %v1892
        %v1933 = vadd.f32 %v1788, %v1892
        %v1934 = vadd.f32 %v1793, %v1892
        %v1935 = vadd.f32 %v1796, %v1892
        %v1936 = vadd.f32 %v1801, %v1892
        %v1937 = vadd.f32 %v1804, %v1892
        %v1938 = vadd.f32 %v1809, %v1892
        %v1939 = vadd.f32 %v1812, %v1892
        %v1940 = vadd.f32 %v1817, %v1892
        %v1941 = vadd.f32 %v1820, %v1892
        %v1942 = vadd.f32 %v1825, %v1892
        %v1943 = vadd.f32 %v1828, %v1892
        %v1944 = vadd.f32 %v1833, %v1892
        %v1945 = vadd.f32 %v1836, %v1892
        %v1946 = vadd.f32 %v1841, %v1892
        %v1947 = vadd.f32 %v1844, %v1892
        %v1948 = vadd.f32 %v1849, %v1892
        %v1949 = vadd.f32 %v1852, %v1892
        %v1950 = vadd.f32 %v1857, %v1892
        %v1951 = vadd.f32 %v1860, %v1892
        %v1952 = vadd.f32 %v1865, %v1892
        %v1953 = vadd.f32 %v1868, %v1892
        %v1954 = vadd.f32 %v1873, %v1892
        %v1955 = vadd.f32 %v1876, %v1892
        %v1956 = vadd.f32 %v1881, %v1892
        %v1957 = vadd.f32 %v1884, %v1892
        %v1958 = vmax.f32 %v1894, 0.0
        %v1959 = vmax.f32 %v1895, 0.0
        %v1960 = vmax.f32 %v1896, 0.0
        %v1961 = vmax.f32 %v1897, 0.0
        %v1962 = vmax.f32 %v1898, 0.0
        %v1963 = vmax.f32 %v1899, 0.0
        %v1964 = vmax.f32 %v1900, 0.0
        %v1965 = vmax.f32 %v1901, 0.0
        %v1966 = vmax.f32 %v1902, 0.0
        %v1967 = vmax.f32 %v1903, 0.0
        %v1968 = vmax.f32 %v1904, 0.0
        %v1969 = vmax.f32 %v1905, 0.0
        %v1970 = vmax.f32 %v1906, 0.0
        %v1971 = vmax.f32 %v1907, 0.0
        %v1972 = vmax.f32 %v1908, 0.0
        %v1973 = vmax.f32 %v1909, 0.0
        %v1974 = vmax.f32 %v1910, 0.0
        %v1975 = vmax.f32 %v1911, 0.0
        %v1976 = vmax.f32 %v1912, 0.0
        %v1977 = vmax.f32 %v1913, 0.0
        %v1978 = vmax.f32 %v1914, 0.0
        %v1979 = vmax.f32 %v1915, 0.0
        %v1980 = vmax.f32 %v1916, 0.0
        %v1981 = vmax.f32 %v1917, 0.0
        %v1982 = vmax.f32 %v1918, 0.0
        %v1983 = vmax.f32 %v1919, 0.0
        %v1984 = vmax.f32 %v1920, 0.0
        %v1985 = vmax.f32 %v1921, 0.0
        %v1986 = vmax.f32 %v1922, 0.0
        %v1987 = vmax.f32 %v1923, 0.0
        %v1988 = vmax.f32 %v1924, 0.0
        %v1989 = vmax.f32 %v1925, 0.0
        %v1990 = vmax.f32 %v1926, 0.0
        %v1991 = vmax.f32 %v1927, 0.0
        %v1992 = vmax.f32 %v1928, 0.0
        %v1993 = vmax.f32 %v1929, 0.0
        %v1994 = vmax.f32 %v1930, 0.0
        %v1995 = vmax.f32 %v1931, 0.0
        %v1996 = vmax.f32 %v1932, 0.0
        %v1997 = vmax.f32 %v1933, 0.0
        %v1998 = vmax.f32 %v1934, 0.0
        %v1999 = vmax.f32 %v1935, 0.0
        %v2000 = vmax.f32 %v1936, 0.0
        %v2001 = vmax.f32 %v1937, 0.0
        %v2002 = vmax.f32 %v1938, 0.0
        %v2003 = vmax.f32 %v1939, 0.0
        %v2004 = vmax.f32 %v1940, 0.0
        %v2005 = vmax.f32 %v1941, 0.0
        %v2006 = vmax.f32 %v1942, 0.0
        %v2007 = vmax.f32 %v1943, 0.0
        %v2008 = vmax.f32 %v1944, 0.0
        %v2009 = vmax.f32 %v1945, 0.0
        %v2010 = vmax.f32 %v1946, 0.0
        %v2011 = vmax.f32 %v1947, 0.0
        %v2012 = vmax.f32 %v1948, 0.0
        %v2013 = vmax.f32 %v1949, 0.0
        %v2014 = vmax.f32 %v1950, 0.0
        %v2015 = vmax.f32 %v1951, 0.0
        %v2016 = vmax.f32 %v1952, 0.0
        %v2017 = vmax.f32 %v1953, 0.0
        %v2018 = vmax.f32 %v1954, 0.0
        %v2019 = vmax.f32 %v1955, 0.0
        %v2020 = vmax.f32 %v1956, 0.0
        %v2021 = vmax.f32 %v1957, 0.0
        %v2022 = vpack.c.bf16 %v1959, %v1958
        %v2023 = vpack.c.bf16 %v1961, %v1960
        %v2024 = vpack.c.bf16 %v1963, %v1962
        %v2025 = vpack.c.bf16 %v1965, %v1964
        %v2026 = vpack.c.bf16 %v1967, %v1966
        %v2027 = vpack.c.bf16 %v1969, %v1968
        %v2028 = vpack.c.bf16 %v1971, %v1970
        %v2029 = vpack.c.bf16 %v1973, %v1972
        %v2030 = vpack.c.bf16 %v1975, %v1974
        %v2031 = vpack.c.bf16 %v1977, %v1976
        %v2032 = vpack.c.bf16 %v1979, %v1978
        %v2033 = vpack.c.bf16 %v1981, %v1980
        %v2034 = vpack.c.bf16 %v1983, %v1982
        %v2035 = vpack.c.bf16 %v1985, %v1984
        %v2036 = vpack.c.bf16 %v1987, %v1986
        %v2037 = vpack.c.bf16 %v1989, %v1988
        %v2038 = vpack.c.bf16 %v1991, %v1990
        %v2039 = vpack.c.bf16 %v1993, %v1992
        %v2040 = vpack.c.bf16 %v1995, %v1994
        %v2041 = vpack.c.bf16 %v1997, %v1996
        %v2042 = vpack.c.bf16 %v1999, %v1998
        %v2043 = vpack.c.bf16 %v2001, %v2000
        %v2044 = vpack.c.bf16 %v2003, %v2002
        %v2045 = vpack.c.bf16 %v2005, %v2004
        %v2046 = vpack.c.bf16 %v2007, %v2006
        %v2047 = vpack.c.bf16 %v2009, %v2008
        %v2048 = vpack.c.bf16 %v2011, %v2010
        %v2049 = vpack.c.bf16 %v2013, %v2012
        %v2050 = vpack.c.bf16 %v2015, %v2014
        %v2051 = vpack.c.bf16 %v2017, %v2016
        %v2052 = vpack.c.bf16 %v2019, %v2018
        %v2053 = vpack.c.bf16 %v2021, %v2020
        %v2054 = vld [vmem:[%s6] sm:$0xf]
        %v2055 = vld [vmem:[%s6 + $0x4] sm:$0xf]
        %v2056 = vld [vmem:[%s6 + $0x8] sm:$0xf]
        %v2057 = vld [vmem:[%s6 + $0xc] sm:$0xf]
        %v2058 = vld [vmem:[%s6 + $0x10] sm:$0xf]
        %v2059 = vld [vmem:[%s6 + $0x14] sm:$0xf]
        %v2060 = vld [vmem:[%s6 + $0x18] sm:$0xf]
        %v2061 = vld [vmem:[%s6 + $0x1c] sm:$0xf]
        %v2062 = vld [vmem:[%s6 + $0x20] sm:$0xf]
        %v2063 = vld [vmem:[%s6 + $0x24] sm:$0xf]
        %v2064 = vld [vmem:[%s6 + $0x28] sm:$0xf]
        %v2065 = vld [vmem:[%s6 + $0x2c] sm:$0xf]
        %v2066 = vld [vmem:[%s6 + $0x30] sm:$0xf]
        %v2067 = vld [vmem:[%s6 + $0x34] sm:$0xf]
        %v2068 = vld [vmem:[%s6 + $0x38] sm:$0xf]
        %v2069 = vld [vmem:[%s6 + $0x3c] sm:$0xf]
        %v2070 = vld [vmem:[%s7] sm:$0x1]
        %v2072 = vlaneseq
        %v2073 = vshrl.u32 %v2072, 7
        %v2074 = vsub.s32 0, %v2073
        %v2075 = vrot.slane %v2070, %v2074
        %v2093 = vunpack.c.l.b16 %v2054
        %v2094 = vunpack.c.l.b16 %v2055
        %v2095 = vunpack.c.l.b16 %v2056
        %v2096 = vunpack.c.l.b16 %v2057
        %v2097 = vunpack.c.l.b16 %v2058
        %v2098 = vunpack.c.l.b16 %v2059
        %v2099 = vunpack.c.l.b16 %v2060
        %v2100 = vunpack.c.l.b16 %v2061
        %v2101 = vunpack.c.l.b16 %v2062
        %v2102 = vunpack.c.l.b16 %v2063
        %v2103 = vunpack.c.l.b16 %v2064
        %v2104 = vunpack.c.l.b16 %v2065
        %v2105 = vunpack.c.l.b16 %v2066
        %v2106 = vunpack.c.l.b16 %v2067
        %v2107 = vunpack.c.l.b16 %v2068
        %v2108 = vunpack.c.l.b16 %v2069
        %v2109 = vpack.c.b16 %v2094, %v2093
        %v2110 = vpack.c.b16 %v2096, %v2095
        %v2111 = vpack.c.b16 %v2098, %v2097
        %v2112 = vpack.c.b16 %v2100, %v2099
        %v2113 = vpack.c.b16 %v2102, %v2101
        %v2114 = vpack.c.b16 %v2104, %v2103
        %v2115 = vpack.c.b16 %v2106, %v2105
        %v2116 = vpack.c.b16 %v2108, %v2107
        %2125 = vmatprep.subr.bf16.mxu0 0
        %2126 = vmatpush1.bf16.msra.mxu0 %v2109
        %2127 = vmatprep.subr.bf16.mxu0 0
        %2128 = vmatpush1.bf16.msra.mxu0 %v2110
        %2129 = vmatprep.subr.bf16.mxu0 0
        %2130 = vmatpush1.bf16.msra.mxu0 %v2111
        %2131 = vmatprep.subr.bf16.mxu0 0
        %2132 = vmatpush1.bf16.msra.mxu0 %v2112
        %2133 = vmatprep.subr.bf16.mxu0 0
        %2134 = vmatpush1.bf16.msra.mxu0 %v2113
        %2135 = vmatprep.subr.bf16.mxu0 0
        %2136 = vmatpush1.bf16.msra.mxu0 %v2114
        %2137 = vmatprep.subr.bf16.mxu0 0
        %2138 = vmatpush1.bf16.msra.mxu0 %v2115
        %2139 = vmatprep.subr.bf16.mxu0 0
        %2140 = vmatpush1.bf16.msra.mxu0 %v2116
        %2141 = vmatprep.subr.bf16.mxu0 0
        %2142 = vmatpush1.bf16.msra.mxu0 0
        %2143 = vmatprep.subr.bf16.mxu0 0
        %2144 = vmatpush1.bf16.msra.mxu0 0
        %2145 = vmatprep.subr.bf16.mxu0 0
        %2146 = vmatpush1.bf16.msra.mxu0 0
        %2147 = vmatprep.subr.bf16.mxu0 0
        %2148 = vmatpush1.bf16.msra.mxu0 0
        %2149 = vmatprep.subr.bf16.mxu0 0
        %2150 = vmatpush1.bf16.msra.mxu0 0
        %2151 = vmatprep.subr.bf16.mxu0 0
        %2152 = vmatpush1.bf16.msra.mxu0 0
        %2153 = vmatprep.subr.bf16.mxu0 0
        %2154 = vmatpush1.bf16.msra.mxu0 0
        %2155 = vmatprep.subr.bf16.mxu0 0
        %2156 = vmatpush1.bf16.msra.mxu0 0
        %2157 = vmatprep.mubr.bf16.mxu0 0
        %2158 = vmatmul.mubr.bf16.gmra.mrb[0].mxu0 %v2022
        %v2159 = vpop.f32.mrb[0].mxu0
        %v2160 = vadd.f32 %v2075, %v2159
        %v2161 = vpop.f32.mrb[0].mxu0
        %v2162 = vpop.f32.mrb[0].mxu0
        %v2163 = vadd.f32 %v2075, %v2162
        %v2164 = vpop.f32.mrb[0].mxu0
        %2165 = vmatprep.mubr.bf16.mxu0 0
        %2166 = vmatmul.mubr.bf16.gmra.mrb[0].mxu0 %v2023
        %v2167 = vpop.f32.mrb[0].mxu0
        %v2168 = vadd.f32 %v2075, %v2167
        %v2169 = vpop.f32.mrb[0].mxu0
        %v2170 = vpop.f32.mrb[0].mxu0
        %v2171 = vadd.f32 %v2075, %v2170
        %v2172 = vpop.f32.mrb[0].mxu0
        %2173 = vmatprep.mubr.bf16.mxu0 0
        %2174 = vmatmul.mubr.bf16.gmra.mrb[0].mxu0 %v2024
        %v2175 = vpop.f32.mrb[0].mxu0
        %v2176 = vadd.f32 %v2075, %v2175
        %v2177 = vpop.f32.mrb[0].mxu0
        %v2178 = vpop.f32.mrb[0].mxu0
        %v2179 = vadd.f32 %v2075, %v2178
        %v2180 = vpop.f32.mrb[0].mxu0
        %2181 = vmatprep.mubr.bf16.mxu0 0
        %2182 = vmatmul.mubr.bf16.gmra.mrb[0].mxu0 %v2025
        %v2183 = vpop.f32.mrb[0].mxu0
        %v2184 = vadd.f32 %v2075, %v2183
        %v2185 = vpop.f32.mrb[0].mxu0
        %v2186 = vpop.f32.mrb[0].mxu0
        %v2187 = vadd.f32 %v2075, %v2186
        %v2188 = vpop.f32.mrb[0].mxu0
        %2189 = vmatprep.mubr.bf16.mxu0 0
        %2190 = vmatmul.mubr.bf16.gmra.mrb[0].mxu0 %v2026
        %v2191 = vpop.f32.mrb[0].mxu0
        %v2192 = vadd.f32 %v2075, %v2191
        %v2193 = vpop.f32.mrb[0].mxu0
        %v2194 = vpop.f32.mrb[0].mxu0
        %v2195 = vadd.f32 %v2075, %v2194
        %v2196 = vpop.f32.mrb[0].mxu0
        %2197 = vmatprep.mubr.bf16.mxu0 0
        %2198 = vmatmul.mubr.bf16.gmra.mrb[0].mxu0 %v2027
        %v2199 = vpop.f32.mrb[0].mxu0
        %v2200 = vadd.f32 %v2075, %v2199
        %v2201 = vpop.f32.mrb[0].mxu0
        %v2202 = vpop.f32.mrb[0].mxu0
        %v2203 = vadd.f32 %v2075, %v2202
        %v2204 = vpop.f32.mrb[0].mxu0
        %2205 = vmatprep.mubr.bf16.mxu0 0
        %2206 = vmatmul.mubr.bf16.gmra.mrb[0].mxu0 %v2028
        %v2207 = vpop.f32.mrb[0].mxu0
        %v2208 = vadd.f32 %v2075, %v2207
        %v2209 = vpop.f32.mrb[0].mxu0
        %v2210 = vpop.f32.mrb[0].mxu0
        %v2211 = vadd.f32 %v2075, %v2210
        %v2212 = vpop.f32.mrb[0].mxu0
        %2213 = vmatprep.mubr.bf16.mxu0 0
        %2214 = vmatmul.mubr.bf16.gmra.mrb[0].mxu0 %v2029
        %v2215 = vpop.f32.mrb[0].mxu0
        %v2216 = vadd.f32 %v2075, %v2215
        %v2217 = vpop.f32.mrb[0].mxu0
        %v2218 = vpop.f32.mrb[0].mxu0
        %v2219 = vadd.f32 %v2075, %v2218
        %v2220 = vpop.f32.mrb[0].mxu0
        %2221 = vmatprep.mubr.bf16.mxu0 0
        %2222 = vmatmul.mubr.bf16.gmra.mrb[0].mxu0 %v2030
        %v2223 = vpop.f32.mrb[0].mxu0
        %v2224 = vadd.f32 %v2075, %v2223
        %v2225 = vpop.f32.mrb[0].mxu0
        %v2226 = vpop.f32.mrb[0].mxu0
        %v2227 = vadd.f32 %v2075, %v2226
        %v2228 = vpop.f32.mrb[0].mxu0
        %2229 = vmatprep.mubr.bf16.mxu0 0
        %2230 = vmatmul.mubr.bf16.gmra.mrb[0].mxu0 %v2031
        %v2231 = vpop.f32.mrb[0].mxu0
        %v2232 = vadd.f32 %v2075, %v2231
        %v2233 = vpop.f32.mrb[0].mxu0
        %v2234 = vpop.f32.mrb[0].mxu0
        %v2235 = vadd.f32 %v2075, %v2234
        %v2236 = vpop.f32.mrb[0].mxu0
        %2237 = vmatprep.mubr.bf16.mxu0 0
        %2238 = vmatmul.mubr.bf16.gmra.mrb[0].mxu0 %v2032
        %v2239 = vpop.f32.mrb[0].mxu0
        %v2240 = vadd.f32 %v2075, %v2239
        %v2241 = vpop.f32.mrb[0].mxu0
        %v2242 = vpop.f32.mrb[0].mxu0
        %v2243 = vadd.f32 %v2075, %v2242
        %v2244 = vpop.f32.mrb[0].mxu0
        %2245 = vmatprep.mubr.bf16.mxu0 0
        %2246 = vmatmul.mubr.bf16.gmra.mrb[0].mxu0 %v2033
        %v2247 = vpop.f32.mrb[0].mxu0
        %v2248 = vadd.f32 %v2075, %v2247
        %v2249 = vpop.f32.mrb[0].mxu0
        %v2250 = vpop.f32.mrb[0].mxu0
        %v2251 = vadd.f32 %v2075, %v2250
        %v2252 = vpop.f32.mrb[0].mxu0
        %2253 = vmatprep.mubr.bf16.mxu0 0
        %2254 = vmatmul.mubr.bf16.gmra.mrb[0].mxu0 %v2034
        %v2255 = vpop.f32.mrb[0].mxu0
        %v2256 = vadd.f32 %v2075, %v2255
        %v2257 = vpop.f32.mrb[0].mxu0
        %v2258 = vpop.f32.mrb[0].mxu0
        %v2259 = vadd.f32 %v2075, %v2258
        %v2260 = vpop.f32.mrb[0].mxu0
        %2261 = vmatprep.mubr.bf16.mxu0 0
        %2262 = vmatmul.mubr.bf16.gmra.mrb[0].mxu0 %v2035
        %v2263 = vpop.f32.mrb[0].mxu0
        %v2264 = vadd.f32 %v2075, %v2263
        %v2265 = vpop.f32.mrb[0].mxu0
        %v2266 = vpop.f32.mrb[0].mxu0
        %v2267 = vadd.f32 %v2075, %v2266
        %v2268 = vpop.f32.mrb[0].mxu0
        %2269 = vmatprep.mubr.bf16.mxu0 0
        %2270 = vmatmul.mubr.bf16.gmra.mrb[0].mxu0 %v2036
        %v2271 = vpop.f32.mrb[0].mxu0
        %v2272 = vadd.f32 %v2075, %v2271
        %v2273 = vpop.f32.mrb[0].mxu0
        %v2274 = vpop.f32.mrb[0].mxu0
        %v2275 = vadd.f32 %v2075, %v2274
        %v2276 = vpop.f32.mrb[0].mxu0
        %2277 = vmatprep.mubr.bf16.mxu0 0
        %2278 = vmatmul.mubr.bf16.gmra.mrb[0].mxu0 %v2037
        %v2279 = vpop.f32.mrb[0].mxu0
        %v2280 = vadd.f32 %v2075, %v2279
        %v2281 = vpop.f32.mrb[0].mxu0
        %v2282 = vpop.f32.mrb[0].mxu0
        %v2283 = vadd.f32 %v2075, %v2282
        %v2284 = vpop.f32.mrb[0].mxu0
        %2285 = vmatprep.mubr.bf16.mxu0 0
        %2286 = vmatmul.mubr.bf16.gmra.mrb[0].mxu0 %v2038
        %v2287 = vpop.f32.mrb[0].mxu0
        %v2288 = vadd.f32 %v2075, %v2287
        %v2289 = vpop.f32.mrb[0].mxu0
        %v2290 = vpop.f32.mrb[0].mxu0
        %v2291 = vadd.f32 %v2075, %v2290
        %v2292 = vpop.f32.mrb[0].mxu0
        %2293 = vmatprep.mubr.bf16.mxu0 0
        %2294 = vmatmul.mubr.bf16.gmra.mrb[0].mxu0 %v2039
        %v2295 = vpop.f32.mrb[0].mxu0
        %v2296 = vadd.f32 %v2075, %v2295
        %v2297 = vpop.f32.mrb[0].mxu0
        %v2298 = vpop.f32.mrb[0].mxu0
        %v2299 = vadd.f32 %v2075, %v2298
        %v2300 = vpop.f32.mrb[0].mxu0
        %2301 = vmatprep.mubr.bf16.mxu0 0
        %2302 = vmatmul.mubr.bf16.gmra.mrb[0].mxu0 %v2040
        %v2303 = vpop.f32.mrb[0].mxu0
        %v2304 = vadd.f32 %v2075, %v2303
        %v2305 = vpop.f32.mrb[0].mxu0
        %v2306 = vpop.f32.mrb[0].mxu0
        %v2307 = vadd.f32 %v2075, %v2306
        %v2308 = vpop.f32.mrb[0].mxu0
        %2309 = vmatprep.mubr.bf16.mxu0 0
        %2310 = vmatmul.mubr.bf16.gmra.mrb[0].mxu0 %v2041
        %v2311 = vpop.f32.mrb[0].mxu0
        %v2312 = vadd.f32 %v2075, %v2311
        %v2313 = vpop.f32.mrb[0].mxu0
        %v2314 = vpop.f32.mrb[0].mxu0
        %v2315 = vadd.f32 %v2075, %v2314
        %v2316 = vpop.f32.mrb[0].mxu0
        %2317 = vmatprep.mubr.bf16.mxu0 0
        %2318 = vmatmul.mubr.bf16.gmra.mrb[0].mxu0 %v2042
        %v2319 = vpop.f32.mrb[0].mxu0
        %v2320 = vadd.f32 %v2075, %v2319
        %v2321 = vpop.f32.mrb[0].mxu0
        %v2322 = vpop.f32.mrb[0].mxu0
        %v2323 = vadd.f32 %v2075, %v2322
        %v2324 = vpop.f32.mrb[0].mxu0
        %2325 = vmatprep.mubr.bf16.mxu0 0
        %2326 = vmatmul.mubr.bf16.gmra.mrb[0].mxu0 %v2043
        %v2327 = vpop.f32.mrb[0].mxu0
        %v2328 = vadd.f32 %v2075, %v2327
        %v2329 = vpop.f32.mrb[0].mxu0
        %v2330 = vpop.f32.mrb[0].mxu0
        %v2331 = vadd.f32 %v2075, %v2330
        %v2332 = vpop.f32.mrb[0].mxu0
        %2333 = vmatprep.mubr.bf16.mxu0 0
        %2334 = vmatmul.mubr.bf16.gmra.mrb[0].mxu0 %v2044
        %v2335 = vpop.f32.mrb[0].mxu0
        %v2336 = vadd.f32 %v2075, %v2335
        %v2337 = vpop.f32.mrb[0].mxu0
        %v2338 = vpop.f32.mrb[0].mxu0
        %v2339 = vadd.f32 %v2075, %v2338
        %v2340 = vpop.f32.mrb[0].mxu0
        %2341 = vmatprep.mubr.bf16.mxu0 0
        %2342 = vmatmul.mubr.bf16.gmra.mrb[0].mxu0 %v2045
        %v2343 = vpop.f32.mrb[0].mxu0
        %v2344 = vadd.f32 %v2075, %v2343
        %v2345 = vpop.f32.mrb[0].mxu0
        %v2346 = vpop.f32.mrb[0].mxu0
        %v2347 = vadd.f32 %v2075, %v2346
        %v2348 = vpop.f32.mrb[0].mxu0
        %2349 = vmatprep.mubr.bf16.mxu0 0
        %2350 = vmatmul.mubr.bf16.gmra.mrb[0].mxu0 %v2046
        %v2351 = vpop.f32.mrb[0].mxu0
        %v2352 = vadd.f32 %v2075, %v2351
        %v2353 = vpop.f32.mrb[0].mxu0
        %v2354 = vpop.f32.mrb[0].mxu0
        %v2355 = vadd.f32 %v2075, %v2354
        %v2356 = vpop.f32.mrb[0].mxu0
        %2357 = vmatprep.mubr.bf16.mxu0 0
        %2358 = vmatmul.mubr.bf16.gmra.mrb[0].mxu0 %v2047
        %v2359 = vpop.f32.mrb[0].mxu0
        %v2360 = vadd.f32 %v2075, %v2359
        %v2361 = vpop.f32.mrb[0].mxu0
        %v2362 = vpop.f32.mrb[0].mxu0
        %v2363 = vadd.f32 %v2075, %v2362
        %v2364 = vpop.f32.mrb[0].mxu0
        %2365 = vmatprep.mubr.bf16.mxu0 0
        %2366 = vmatmul.mubr.bf16.gmra.mrb[0].mxu0 %v2048
        %v2367 = vpop.f32.mrb[0].mxu0
        %v2368 = vadd.f32 %v2075, %v2367
        %v2369 = vpop.f32.mrb[0].mxu0
        %v2370 = vpop.f32.mrb[0].mxu0
        %v2371 = vadd.f32 %v2075, %v2370
        %v2372 = vpop.f32.mrb[0].mxu0
        %2373 = vmatprep.mubr.bf16.mxu0 0
        %2374 = vmatmul.mubr.bf16.gmra.mrb[0].mxu0 %v2049
        %v2375 = vpop.f32.mrb[0].mxu0
        %v2376 = vadd.f32 %v2075, %v2375
        %v2377 = vpop.f32.mrb[0].mxu0
        %v2378 = vpop.f32.mrb[0].mxu0
        %v2379 = vadd.f32 %v2075, %v2378
        %v2380 = vpop.f32.mrb[0].mxu0
        %2381 = vmatprep.mubr.bf16.mxu0 0
        %2382 = vmatmul.mubr.bf16.gmra.mrb[0].mxu0 %v2050
        %v2383 = vpop.f32.mrb[0].mxu0
        %v2384 = vadd.f32 %v2075, %v2383
        %v2385 = vpop.f32.mrb[0].mxu0
        %v2386 = vpop.f32.mrb[0].mxu0
        %v2387 = vadd.f32 %v2075, %v2386
        %v2388 = vpop.f32.mrb[0].mxu0
        %2389 = vmatprep.mubr.bf16.mxu0 0
        %2390 = vmatmul.mubr.bf16.gmra.mrb[0].mxu0 %v2051
        %v2391 = vpop.f32.mrb[0].mxu0
        %v2392 = vadd.f32 %v2075, %v2391
        %v2393 = vpop.f32.mrb[0].mxu0
        %v2394 = vpop.f32.mrb[0].mxu0
        %v2395 = vadd.f32 %v2075, %v2394
        %v2396 = vpop.f32.mrb[0].mxu0
        %2397 = vmatprep.mubr.bf16.mxu0 0
        %2398 = vmatmul.mubr.bf16.gmra.mrb[0].mxu0 %v2052
        %v2399 = vpop.f32.mrb[0].mxu0
        %v2400 = vadd.f32 %v2075, %v2399
        %v2401 = vpop.f32.mrb[0].mxu0
        %v2402 = vpop.f32.mrb[0].mxu0
        %v2403 = vadd.f32 %v2075, %v2402
        %v2404 = vpop.f32.mrb[0].mxu0
        %2405 = vmatprep.mubr.bf16.mxu0 0
        %2406 = vmatmul.mubr.bf16.gmra.mrb[0].mxu0 %v2053
        %v2407 = vpop.f32.mrb[0].mxu0
        %v2408 = vadd.f32 %v2075, %v2407
        %v2409 = vpop.f32.mrb[0].mxu0
        %v2410 = vpop.f32.mrb[0].mxu0
        %v2411 = vadd.f32 %v2075, %v2410
        %v2412 = vpop.f32.mrb[0].mxu0
        %2413 = vdwg.mxu0
        %v2414 = vmax.f32 %v2160, 0.0
        %v2415 = vmax.f32 %v2163, 0.0
        %v2416 = vmax.f32 %v2168, 0.0
        %v2417 = vmax.f32 %v2171, 0.0
        %v2418 = vmax.f32 %v2176, 0.0
        %v2419 = vmax.f32 %v2179, 0.0
        %v2420 = vmax.f32 %v2184, 0.0
        %v2421 = vmax.f32 %v2187, 0.0
        %v2422 = vmax.f32 %v2192, 0.0
        %v2423 = vmax.f32 %v2195, 0.0
        %v2424 = vmax.f32 %v2200, 0.0
        %v2425 = vmax.f32 %v2203, 0.0
        %v2426 = vmax.f32 %v2208, 0.0
        %v2427 = vmax.f32 %v2211, 0.0
        %v2428 = vmax.f32 %v2216, 0.0
        %v2429 = vmax.f32 %v2219, 0.0
        %v2430 = vmax.f32 %v2224, 0.0
        %v2431 = vmax.f32 %v2227, 0.0
        %v2432 = vmax.f32 %v2232, 0.0
        %v2433 = vmax.f32 %v2235, 0.0
        %v2434 = vmax.f32 %v2240, 0.0
        %v2435 = vmax.f32 %v2243, 0.0
        %v2436 = vmax.f32 %v2248, 0.0
        %v2437 = vmax.f32 %v2251, 0.0
        %v2438 = vmax.f32 %v2256, 0.0
        %v2439 = vmax.f32 %v2259, 0.0
        %v2440 = vmax.f32 %v2264, 0.0
        %v2441 = vmax.f32 %v2267, 0.0
        %v2442 = vmax.f32 %v2272, 0.0
        %v2443 = vmax.f32 %v2275, 0.0
        %v2444 = vmax.f32 %v2280, 0.0
        %v2445 = vmax.f32 %v2283, 0.0
        %v2446 = vmax.f32 %v2288, 0.0
        %v2447 = vmax.f32 %v2291, 0.0
        %v2448 = vmax.f32 %v2296, 0.0
        %v2449 = vmax.f32 %v2299, 0.0
        %v2450 = vmax.f32 %v2304, 0.0
        %v2451 = vmax.f32 %v2307, 0.0
        %v2452 = vmax.f32 %v2312, 0.0
        %v2453 = vmax.f32 %v2315, 0.0
        %v2454 = vmax.f32 %v2320, 0.0
        %v2455 = vmax.f32 %v2323, 0.0
        %v2456 = vmax.f32 %v2328, 0.0
        %v2457 = vmax.f32 %v2331, 0.0
        %v2458 = vmax.f32 %v2336, 0.0
        %v2459 = vmax.f32 %v2339, 0.0
        %v2460 = vmax.f32 %v2344, 0.0
        %v2461 = vmax.f32 %v2347, 0.0
        %v2462 = vmax.f32 %v2352, 0.0
        %v2463 = vmax.f32 %v2355, 0.0
        %v2464 = vmax.f32 %v2360, 0.0
        %v2465 = vmax.f32 %v2363, 0.0
        %v2466 = vmax.f32 %v2368, 0.0
        %v2467 = vmax.f32 %v2371, 0.0
        %v2468 = vmax.f32 %v2376, 0.0
        %v2469 = vmax.f32 %v2379, 0.0
        %v2470 = vmax.f32 %v2384, 0.0
        %v2471 = vmax.f32 %v2387, 0.0
        %v2472 = vmax.f32 %v2392, 0.0
        %v2473 = vmax.f32 %v2395, 0.0
        %v2474 = vmax.f32 %v2400, 0.0
        %v2475 = vmax.f32 %v2403, 0.0
        %v2476 = vmax.f32 %v2408, 0.0
        %v2477 = vmax.f32 %v2411, 0.0
        %v2478 = vpack.c.bf16 %v2415, %v2414
        %v2479 = vpack.c.bf16 %v2417, %v2416
        %v2480 = vpack.c.bf16 %v2419, %v2418
        %v2481 = vpack.c.bf16 %v2421, %v2420
        %v2482 = vpack.c.bf16 %v2423, %v2422
        %v2483 = vpack.c.bf16 %v2425, %v2424
        %v2484 = vpack.c.bf16 %v2427, %v2426
        %v2485 = vpack.c.bf16 %v2429, %v2428
        %v2486 = vpack.c.bf16 %v2431, %v2430
        %v2487 = vpack.c.bf16 %v2433, %v2432
        %v2488 = vpack.c.bf16 %v2435, %v2434
        %v2489 = vpack.c.bf16 %v2437, %v2436
        %v2490 = vpack.c.bf16 %v2439, %v2438
        %v2491 = vpack.c.bf16 %v2441, %v2440
        %v2492 = vpack.c.bf16 %v2443, %v2442
        %v2493 = vpack.c.bf16 %v2445, %v2444
        %v2494 = vpack.c.bf16 %v2447, %v2446
        %v2495 = vpack.c.bf16 %v2449, %v2448
        %v2496 = vpack.c.bf16 %v2451, %v2450
        %v2497 = vpack.c.bf16 %v2453, %v2452
        %v2498 = vpack.c.bf16 %v2455, %v2454
        %v2499 = vpack.c.bf16 %v2457, %v2456
        %v2500 = vpack.c.bf16 %v2459, %v2458
        %v2501 = vpack.c.bf16 %v2461, %v2460
        %v2502 = vpack.c.bf16 %v2463, %v2462
        %v2503 = vpack.c.bf16 %v2465, %v2464
        %v2504 = vpack.c.bf16 %v2467, %v2466
        %v2505 = vpack.c.bf16 %v2469, %v2468
        %v2506 = vpack.c.bf16 %v2471, %v2470
        %v2507 = vpack.c.bf16 %v2473, %v2472
        %v2508 = vpack.c.bf16 %v2475, %v2474
        %v2509 = vpack.c.bf16 %v2477, %v2476
        %v2510 = vlaneseq
        %v2511 = vshrl.u32 %v2510, 7
        %v2512 = vsub.s32 0, %v2511
        %v2513 = vrot.slane %v414, %v2512
        %v2514 = vlaneseq
        %v2515 = vshrl.u32 %v2514, 7
        %v2516 = vsub.s32 1, %v2515
        %v2517 = vrot.slane %v414, %v2516
        %v2518 = vlaneseq
        %v2519 = vshrl.u32 %v2518, 7
        %v2520 = vsub.s32 2, %v2519
        %v2521 = vrot.slane %v414, %v2520
        %v2522 = vlaneseq
        %v2523 = vshrl.u32 %v2522, 7
        %v2524 = vsub.s32 3, %v2523
        %v2525 = vrot.slane %v414, %v2524
        %vm2526 = vcmp.eq.s32.totalorder %v484, %v2513
        %vm2527 = vcmp.eq.s32.totalorder %v484, %v2517
        %vm2528 = vcmp.eq.s32.totalorder %v484, %v2521
        %vm2529 = vcmp.eq.s32.totalorder %v484, %v2525
        %vm2530 = vcmp.eq.s32.totalorder %v485, %v2513
        %vm2531 = vcmp.eq.s32.totalorder %v485, %v2517
        %vm2532 = vcmp.eq.s32.totalorder %v485, %v2521
        %vm2533 = vcmp.eq.s32.totalorder %v485, %v2525
        %vm2534 = vcmp.eq.s32.totalorder %v486, %v2513
        %vm2535 = vcmp.eq.s32.totalorder %v486, %v2517
        %vm2536 = vcmp.eq.s32.totalorder %v486, %v2521
        %vm2537 = vcmp.eq.s32.totalorder %v486, %v2525
        %vm2538 = vcmp.eq.s32.totalorder %v487, %v2513
        %vm2539 = vcmp.eq.s32.totalorder %v487, %v2517
        %vm2540 = vcmp.eq.s32.totalorder %v487, %v2521
        %vm2541 = vcmp.eq.s32.totalorder %v487, %v2525
        %vm2542 = vcmp.eq.s32.totalorder %v488, %v2513
        %vm2543 = vcmp.eq.s32.totalorder %v488, %v2517
        %vm2544 = vcmp.eq.s32.totalorder %v488, %v2521
        %vm2545 = vcmp.eq.s32.totalorder %v488, %v2525
        %vm2546 = vcmp.eq.s32.totalorder %v489, %v2513
        %vm2547 = vcmp.eq.s32.totalorder %v489, %v2517
        %vm2548 = vcmp.eq.s32.totalorder %v489, %v2521
        %vm2549 = vcmp.eq.s32.totalorder %v489, %v2525
        %vm2550 = vcmp.eq.s32.totalorder %v490, %v2513
        %vm2551 = vcmp.eq.s32.totalorder %v490, %v2517
        %vm2552 = vcmp.eq.s32.totalorder %v490, %v2521
        %vm2553 = vcmp.eq.s32.totalorder %v490, %v2525
        %vm2554 = vcmp.eq.s32.totalorder %v491, %v2513
        %vm2555 = vcmp.eq.s32.totalorder %v491, %v2517
        %vm2556 = vcmp.eq.s32.totalorder %v491, %v2521
        %vm2557 = vcmp.eq.s32.totalorder %v491, %v2525
        %vm2558 = vcmp.eq.s32.totalorder %v492, %v2513
        %vm2559 = vcmp.eq.s32.totalorder %v492, %v2517
        %vm2560 = vcmp.eq.s32.totalorder %v492, %v2521
        %vm2561 = vcmp.eq.s32.totalorder %v492, %v2525
        %vm2562 = vcmp.eq.s32.totalorder %v493, %v2513
        %vm2563 = vcmp.eq.s32.totalorder %v493, %v2517
        %vm2564 = vcmp.eq.s32.totalorder %v493, %v2521
        %vm2565 = vcmp.eq.s32.totalorder %v493, %v2525
        %vm2566 = vcmp.eq.s32.totalorder %v494, %v2513
        %vm2567 = vcmp.eq.s32.totalorder %v494, %v2517
        %vm2568 = vcmp.eq.s32.totalorder %v494, %v2521
        %vm2569 = vcmp.eq.s32.totalorder %v494, %v2525
        %vm2570 = vcmp.eq.s32.totalorder %v495, %v2513
        %vm2571 = vcmp.eq.s32.totalorder %v495, %v2517
        %vm2572 = vcmp.eq.s32.totalorder %v495, %v2521
        %vm2573 = vcmp.eq.s32.totalorder %v495, %v2525
        %vm2574 = vcmp.eq.s32.totalorder %v496, %v2513
        %vm2575 = vcmp.eq.s32.totalorder %v496, %v2517
        %vm2576 = vcmp.eq.s32.totalorder %v496, %v2521
        %vm2577 = vcmp.eq.s32.totalorder %v496, %v2525
        %vm2578 = vcmp.eq.s32.totalorder %v497, %v2513
        %vm2579 = vcmp.eq.s32.totalorder %v497, %v2517
        %vm2580 = vcmp.eq.s32.totalorder %v497, %v2521
        %vm2581 = vcmp.eq.s32.totalorder %v497, %v2525
        %vm2582 = vcmp.eq.s32.totalorder %v498, %v2513
        %vm2583 = vcmp.eq.s32.totalorder %v498, %v2517
        %vm2584 = vcmp.eq.s32.totalorder %v498, %v2521
        %vm2585 = vcmp.eq.s32.totalorder %v498, %v2525
        %vm2586 = vcmp.eq.s32.totalorder %v499, %v2513
        %vm2587 = vcmp.eq.s32.totalorder %v499, %v2517
        %vm2588 = vcmp.eq.s32.totalorder %v499, %v2521
        %vm2589 = vcmp.eq.s32.totalorder %v499, %v2525
        %v2590 = vsel %vm2526, 1, 0
        %v2591 = vsel %vm2527, 1, 0
        %v2592 = vsel %vm2528, 1, 0
        %v2593 = vsel %vm2529, 1, 0
        %v2594 = vsel %vm2530, 1, 0
        %v2595 = vsel %vm2531, 1, 0
        %v2596 = vsel %vm2532, 1, 0
        %v2597 = vsel %vm2533, 1, 0
        %v2598 = vsel %vm2534, 1, 0
        %v2599 = vsel %vm2535, 1, 0
        %v2600 = vsel %vm2536, 1, 0
        %v2601 = vsel %vm2537, 1, 0
        %v2602 = vsel %vm2538, 1, 0
        %v2603 = vsel %vm2539, 1, 0
        %v2604 = vsel %vm2540, 1, 0
        %v2605 = vsel %vm2541, 1, 0
        %v2606 = vsel %vm2542, 1, 0
        %v2607 = vsel %vm2543, 1, 0
        %v2608 = vsel %vm2544, 1, 0
        %v2609 = vsel %vm2545, 1, 0
        %v2610 = vsel %vm2546, 1, 0
        %v2611 = vsel %vm2547, 1, 0
        %v2612 = vsel %vm2548, 1, 0
        %v2613 = vsel %vm2549, 1, 0
        %v2614 = vsel %vm2550, 1, 0
        %v2615 = vsel %vm2551, 1, 0
        %v2616 = vsel %vm2552, 1, 0
        %v2617 = vsel %vm2553, 1, 0
        %v2618 = vsel %vm2554, 1, 0
        %v2619 = vsel %vm2555, 1, 0
        %v2620 = vsel %vm2556, 1, 0
        %v2621 = vsel %vm2557, 1, 0
        %v2622 = vsel %vm2558, 1, 0
        %v2623 = vsel %vm2559, 1, 0
        %v2624 = vsel %vm2560, 1, 0
        %v2625 = vsel %vm2561, 1, 0
        %v2626 = vsel %vm2562, 1, 0
        %v2627 = vsel %vm2563, 1, 0
        %v2628 = vsel %vm2564, 1, 0
        %v2629 = vsel %vm2565, 1, 0
        %v2630 = vsel %vm2566, 1, 0
        %v2631 = vsel %vm2567, 1, 0
        %v2632 = vsel %vm2568, 1, 0
        %v2633 = vsel %vm2569, 1, 0
        %v2634 = vsel %vm2570, 1, 0
        %v2635 = vsel %vm2571, 1, 0
        %v2636 = vsel %vm2572, 1, 0
        %v2637 = vsel %vm2573, 1, 0
        %v2638 = vsel %vm2574, 1, 0
        %v2639 = vsel %vm2575, 1, 0
        %v2640 = vsel %vm2576, 1, 0
        %v2641 = vsel %vm2577, 1, 0
        %v2642 = vsel %vm2578, 1, 0
        %v2643 = vsel %vm2579, 1, 0
        %v2644 = vsel %vm2580, 1, 0
        %v2645 = vsel %vm2581, 1, 0
        %v2646 = vsel %vm2582, 1, 0
        %v2647 = vsel %vm2583, 1, 0
        %v2648 = vsel %vm2584, 1, 0
        %v2649 = vsel %vm2585, 1, 0
        %v2650 = vsel %vm2586, 1, 0
        %v2651 = vsel %vm2587, 1, 0
        %v2652 = vsel %vm2588, 1, 0
        %v2653 = vsel %vm2589, 1, 0
        %v2654 = vcvt.s32.f32 %v2590
        %v2655 = vcvt.s32.f32 %v2591
        %v2656 = vcvt.s32.f32 %v2592
        %v2657 = vcvt.s32.f32 %v2593
        %v2658 = vcvt.s32.f32 %v2594
        %v2659 = vcvt.s32.f32 %v2595
        %v2660 = vcvt.s32.f32 %v2596
        %v2661 = vcvt.s32.f32 %v2597
        %v2662 = vcvt.s32.f32 %v2598
        %v2663 = vcvt.s32.f32 %v2599
        %v2664 = vcvt.s32.f32 %v2600
        %v2665 = vcvt.s32.f32 %v2601
        %v2666 = vcvt.s32.f32 %v2602
        %v2667 = vcvt.s32.f32 %v2603
        %v2668 = vcvt.s32.f32 %v2604
        %v2669 = vcvt.s32.f32 %v2605
        %v2670 = vcvt.s32.f32 %v2606
        %v2671 = vcvt.s32.f32 %v2607
        %v2672 = vcvt.s32.f32 %v2608
        %v2673 = vcvt.s32.f32 %v2609
        %v2674 = vcvt.s32.f32 %v2610
        %v2675 = vcvt.s32.f32 %v2611
        %v2676 = vcvt.s32.f32 %v2612
        %v2677 = vcvt.s32.f32 %v2613
        %v2678 = vcvt.s32.f32 %v2614
        %v2679 = vcvt.s32.f32 %v2615
        %v2680 = vcvt.s32.f32 %v2616
        %v2681 = vcvt.s32.f32 %v2617
        %v2682 = vcvt.s32.f32 %v2618
        %v2683 = vcvt.s32.f32 %v2619
        %v2684 = vcvt.s32.f32 %v2620
        %v2685 = vcvt.s32.f32 %v2621
        %v2686 = vcvt.s32.f32 %v2622
        %v2687 = vcvt.s32.f32 %v2623
        %v2688 = vcvt.s32.f32 %v2624
        %v2689 = vcvt.s32.f32 %v2625
        %v2690 = vcvt.s32.f32 %v2626
        %v2691 = vcvt.s32.f32 %v2627
        %v2692 = vcvt.s32.f32 %v2628
        %v2693 = vcvt.s32.f32 %v2629
        %v2694 = vcvt.s32.f32 %v2630
        %v2695 = vcvt.s32.f32 %v2631
        %v2696 = vcvt.s32.f32 %v2632
        %v2697 = vcvt.s32.f32 %v2633
        %v2698 = vcvt.s32.f32 %v2634
        %v2699 = vcvt.s32.f32 %v2635
        %v2700 = vcvt.s32.f32 %v2636
        %v2701 = vcvt.s32.f32 %v2637
        %v2702 = vcvt.s32.f32 %v2638
        %v2703 = vcvt.s32.f32 %v2639
        %v2704 = vcvt.s32.f32 %v2640
        %v2705 = vcvt.s32.f32 %v2641
        %v2706 = vcvt.s32.f32 %v2642
        %v2707 = vcvt.s32.f32 %v2643
        %v2708 = vcvt.s32.f32 %v2644
        %v2709 = vcvt.s32.f32 %v2645
        %v2710 = vcvt.s32.f32 %v2646
        %v2711 = vcvt.s32.f32 %v2647
        %v2712 = vcvt.s32.f32 %v2648
        %v2713 = vcvt.s32.f32 %v2649
        %v2714 = vcvt.s32.f32 %v2650
        %v2715 = vcvt.s32.f32 %v2651
        %v2716 = vcvt.s32.f32 %v2652
        %v2717 = vcvt.s32.f32 %v2653
        %v2718 = vpack.c.bf16 %v2658, %v2654
        %v2719 = vpack.c.bf16 %v2659, %v2655
        %v2720 = vpack.c.bf16 %v2660, %v2656
        %v2721 = vpack.c.bf16 %v2661, %v2657
        %v2722 = vpack.c.bf16 %v2666, %v2662
        %v2723 = vpack.c.bf16 %v2667, %v2663
        %v2724 = vpack.c.bf16 %v2668, %v2664
        %v2725 = vpack.c.bf16 %v2669, %v2665
        %v2726 = vpack.c.bf16 %v2674, %v2670
        %v2727 = vpack.c.bf16 %v2675, %v2671
        %v2728 = vpack.c.bf16 %v2676, %v2672
        %v2729 = vpack.c.bf16 %v2677, %v2673
        %v2730 = vpack.c.bf16 %v2682, %v2678
        %v2731 = vpack.c.bf16 %v2683, %v2679
        %v2732 = vpack.c.bf16 %v2684, %v2680
        %v2733 = vpack.c.bf16 %v2685, %v2681
        %v2734 = vpack.c.bf16 %v2690, %v2686
        %v2735 = vpack.c.bf16 %v2691, %v2687
        %v2736 = vpack.c.bf16 %v2692, %v2688
        %v2737 = vpack.c.bf16 %v2693, %v2689
        %v2738 = vpack.c.bf16 %v2698, %v2694
        %v2739 = vpack.c.bf16 %v2699, %v2695
        %v2740 = vpack.c.bf16 %v2700, %v2696
        %v2741 = vpack.c.bf16 %v2701, %v2697
        %v2742 = vpack.c.bf16 %v2706, %v2702
        %v2743 = vpack.c.bf16 %v2707, %v2703
        %v2744 = vpack.c.bf16 %v2708, %v2704
        %v2745 = vpack.c.bf16 %v2709, %v2705
        %v2746 = vpack.c.bf16 %v2714, %v2710
        %v2747 = vpack.c.bf16 %v2715, %v2711
        %v2748 = vpack.c.bf16 %v2716, %v2712
        %v2749 = vpack.c.bf16 %v2717, %v2713
        %v2750 = vlaneseq
        %v2751 = vshrl.u32 %v2750, 7
        %v2752 = vsub.s32 0, %v2751
        %v2753 = vrot.slane %v416, %v2752
        %v2754 = vlaneseq
        %v2755 = vshrl.u32 %v2754, 7
        %v2756 = vsub.s32 1, %v2755
        %v2757 = vrot.slane %v416, %v2756
        %v2758 = vlaneseq
        %v2759 = vshrl.u32 %v2758, 7
        %v2760 = vsub.s32 2, %v2759
        %v2761 = vrot.slane %v416, %v2760
        %v2762 = vlaneseq
        %v2763 = vshrl.u32 %v2762, 7
        %v2764 = vsub.s32 3, %v2763
        %v2765 = vrot.slane %v416, %v2764
        %vm2766 = vcmp.eq.s32.totalorder %v484, %v2753
        %vm2767 = vcmp.eq.s32.totalorder %v484, %v2757
        %vm2768 = vcmp.eq.s32.totalorder %v484, %v2761
        %vm2769 = vcmp.eq.s32.totalorder %v484, %v2765
        %vm2770 = vcmp.eq.s32.totalorder %v485, %v2753
        %vm2771 = vcmp.eq.s32.totalorder %v485, %v2757
        %vm2772 = vcmp.eq.s32.totalorder %v485, %v2761
        %vm2773 = vcmp.eq.s32.totalorder %v485, %v2765
        %vm2774 = vcmp.eq.s32.totalorder %v486, %v2753
        %vm2775 = vcmp.eq.s32.totalorder %v486, %v2757
        %vm2776 = vcmp.eq.s32.totalorder %v486, %v2761
        %vm2777 = vcmp.eq.s32.totalorder %v486, %v2765
        %vm2778 = vcmp.eq.s32.totalorder %v487, %v2753
        %vm2779 = vcmp.eq.s32.totalorder %v487, %v2757
        %vm2780 = vcmp.eq.s32.totalorder %v487, %v2761
        %vm2781 = vcmp.eq.s32.totalorder %v487, %v2765
        %vm2782 = vcmp.eq.s32.totalorder %v488, %v2753
        %vm2783 = vcmp.eq.s32.totalorder %v488, %v2757
        %vm2784 = vcmp.eq.s32.totalorder %v488, %v2761
        %vm2785 = vcmp.eq.s32.totalorder %v488, %v2765
        %vm2786 = vcmp.eq.s32.totalorder %v489, %v2753
        %vm2787 = vcmp.eq.s32.totalorder %v489, %v2757
        %vm2788 = vcmp.eq.s32.totalorder %v489, %v2761
        %vm2789 = vcmp.eq.s32.totalorder %v489, %v2765
        %vm2790 = vcmp.eq.s32.totalorder %v490, %v2753
        %vm2791 = vcmp.eq.s32.totalorder %v490, %v2757
        %vm2792 = vcmp.eq.s32.totalorder %v490, %v2761
        %vm2793 = vcmp.eq.s32.totalorder %v490, %v2765
        %vm2794 = vcmp.eq.s32.totalorder %v491, %v2753
        %vm2795 = vcmp.eq.s32.totalorder %v491, %v2757
        %vm2796 = vcmp.eq.s32.totalorder %v491, %v2761
        %vm2797 = vcmp.eq.s32.totalorder %v491, %v2765
        %vm2798 = vcmp.eq.s32.totalorder %v492, %v2753
        %vm2799 = vcmp.eq.s32.totalorder %v492, %v2757
        %vm2800 = vcmp.eq.s32.totalorder %v492, %v2761
        %vm2801 = vcmp.eq.s32.totalorder %v492, %v2765
        %vm2802 = vcmp.eq.s32.totalorder %v493, %v2753
        %vm2803 = vcmp.eq.s32.totalorder %v493, %v2757
        %vm2804 = vcmp.eq.s32.totalorder %v493, %v2761
        %vm2805 = vcmp.eq.s32.totalorder %v493, %v2765
        %vm2806 = vcmp.eq.s32.totalorder %v494, %v2753
        %vm2807 = vcmp.eq.s32.totalorder %v494, %v2757
        %vm2808 = vcmp.eq.s32.totalorder %v494, %v2761
        %vm2809 = vcmp.eq.s32.totalorder %v494, %v2765
        %vm2810 = vcmp.eq.s32.totalorder %v495, %v2753
        %vm2811 = vcmp.eq.s32.totalorder %v495, %v2757
        %vm2812 = vcmp.eq.s32.totalorder %v495, %v2761
        %vm2813 = vcmp.eq.s32.totalorder %v495, %v2765
        %vm2814 = vcmp.eq.s32.totalorder %v496, %v2753
        %vm2815 = vcmp.eq.s32.totalorder %v496, %v2757
        %vm2816 = vcmp.eq.s32.totalorder %v496, %v2761
        %vm2817 = vcmp.eq.s32.totalorder %v496, %v2765
        %vm2818 = vcmp.eq.s32.totalorder %v497, %v2753
        %vm2819 = vcmp.eq.s32.totalorder %v497, %v2757
        %vm2820 = vcmp.eq.s32.totalorder %v497, %v2761
        %vm2821 = vcmp.eq.s32.totalorder %v497, %v2765
        %vm2822 = vcmp.eq.s32.totalorder %v498, %v2753
        %vm2823 = vcmp.eq.s32.totalorder %v498, %v2757
        %vm2824 = vcmp.eq.s32.totalorder %v498, %v2761
        %vm2825 = vcmp.eq.s32.totalorder %v498, %v2765
        %vm2826 = vcmp.eq.s32.totalorder %v499, %v2753
        %vm2827 = vcmp.eq.s32.totalorder %v499, %v2757
        %vm2828 = vcmp.eq.s32.totalorder %v499, %v2761
        %vm2829 = vcmp.eq.s32.totalorder %v499, %v2765
        %v2830 = vsel %vm2766, 1, 0
        %v2831 = vsel %vm2767, 1, 0
        %v2832 = vsel %vm2768, 1, 0
        %v2833 = vsel %vm2769, 1, 0
        %v2834 = vsel %vm2770, 1, 0
        %v2835 = vsel %vm2771, 1, 0
        %v2836 = vsel %vm2772, 1, 0
        %v2837 = vsel %vm2773, 1, 0
        %v2838 = vsel %vm2774, 1, 0
        %v2839 = vsel %vm2775, 1, 0
        %v2840 = vsel %vm2776, 1, 0
        %v2841 = vsel %vm2777, 1, 0
        %v2842 = vsel %vm2778, 1, 0
        %v2843 = vsel %vm2779, 1, 0
        %v2844 = vsel %vm2780, 1, 0
        %v2845 = vsel %vm2781, 1, 0
        %v2846 = vsel %vm2782, 1, 0
        %v2847 = vsel %vm2783, 1, 0
        %v2848 = vsel %vm2784, 1, 0
        %v2849 = vsel %vm2785, 1, 0
        %v2850 = vsel %vm2786, 1, 0
        %v2851 = vsel %vm2787, 1, 0
        %v2852 = vsel %vm2788, 1, 0
        %v2853 = vsel %vm2789, 1, 0
        %v2854 = vsel %vm2790, 1, 0
        %v2855 = vsel %vm2791, 1, 0
        %v2856 = vsel %vm2792, 1, 0
        %v2857 = vsel %vm2793, 1, 0
        %v2858 = vsel %vm2794, 1, 0
        %v2859 = vsel %vm2795, 1, 0
        %v2860 = vsel %vm2796, 1, 0
        %v2861 = vsel %vm2797, 1, 0
        %v2862 = vsel %vm2798, 1, 0
        %v2863 = vsel %vm2799, 1, 0
        %v2864 = vsel %vm2800, 1, 0
        %v2865 = vsel %vm2801, 1, 0
        %v2866 = vsel %vm2802, 1, 0
        %v2867 = vsel %vm2803, 1, 0
        %v2868 = vsel %vm2804, 1, 0
        %v2869 = vsel %vm2805, 1, 0
        %v2870 = vsel %vm2806, 1, 0
        %v2871 = vsel %vm2807, 1, 0
        %v2872 = vsel %vm2808, 1, 0
        %v2873 = vsel %vm2809, 1, 0
        %v2874 = vsel %vm2810, 1, 0
        %v2875 = vsel %vm2811, 1, 0
        %v2876 = vsel %vm2812, 1, 0
        %v2877 = vsel %vm2813, 1, 0
        %v2878 = vsel %vm2814, 1, 0
        %v2879 = vsel %vm2815, 1, 0
        %v2880 = vsel %vm2816, 1, 0
        %v2881 = vsel %vm2817, 1, 0
        %v2882 = vsel %vm2818, 1, 0
        %v2883 = vsel %vm2819, 1, 0
        %v2884 = vsel %vm2820, 1, 0
        %v2885 = vsel %vm2821, 1, 0
        %v2886 = vsel %vm2822, 1, 0
        %v2887 = vsel %vm2823, 1, 0
        %v2888 = vsel %vm2824, 1, 0
        %v2889 = vsel %vm2825, 1, 0
        %v2890 = vsel %vm2826, 1, 0
        %v2891 = vsel %vm2827, 1, 0
        %v2892 = vsel %vm2828, 1, 0
        %v2893 = vsel %vm2829, 1, 0
        %v2894 = vcvt.s32.f32 %v2830
        %v2895 = vcvt.s32.f32 %v2831
        %v2896 = vcvt.s32.f32 %v2832
        %v2897 = vcvt.s32.f32 %v2833
        %v2898 = vcvt.s32.f32 %v2834
        %v2899 = vcvt.s32.f32 %v2835
        %v2900 = vcvt.s32.f32 %v2836
        %v2901 = vcvt.s32.f32 %v2837
        %v2902 = vcvt.s32.f32 %v2838
        %v2903 = vcvt.s32.f32 %v2839
        %v2904 = vcvt.s32.f32 %v2840
        %v2905 = vcvt.s32.f32 %v2841
        %v2906 = vcvt.s32.f32 %v2842
        %v2907 = vcvt.s32.f32 %v2843
        %v2908 = vcvt.s32.f32 %v2844
        %v2909 = vcvt.s32.f32 %v2845
        %v2910 = vcvt.s32.f32 %v2846
        %v2911 = vcvt.s32.f32 %v2847
        %v2912 = vcvt.s32.f32 %v2848
        %v2913 = vcvt.s32.f32 %v2849
        %v2914 = vcvt.s32.f32 %v2850
        %v2915 = vcvt.s32.f32 %v2851
        %v2916 = vcvt.s32.f32 %v2852
        %v2917 = vcvt.s32.f32 %v2853
        %v2918 = vcvt.s32.f32 %v2854
        %v2919 = vcvt.s32.f32 %v2855
        %v2920 = vcvt.s32.f32 %v2856
        %v2921 = vcvt.s32.f32 %v2857
        %v2922 = vcvt.s32.f32 %v2858
        %v2923 = vcvt.s32.f32 %v2859
        %v2924 = vcvt.s32.f32 %v2860
        %v2925 = vcvt.s32.f32 %v2861
        %v2926 = vcvt.s32.f32 %v2862
        %v2927 = vcvt.s32.f32 %v2863
        %v2928 = vcvt.s32.f32 %v2864
        %v2929 = vcvt.s32.f32 %v2865
        %v2930 = vcvt.s32.f32 %v2866
        %v2931 = vcvt.s32.f32 %v2867
        %v2932 = vcvt.s32.f32 %v2868
        %v2933 = vcvt.s32.f32 %v2869
        %v2934 = vcvt.s32.f32 %v2870
        %v2935 = vcvt.s32.f32 %v2871
        %v2936 = vcvt.s32.f32 %v2872
        %v2937 = vcvt.s32.f32 %v2873
        %v2938 = vcvt.s32.f32 %v2874
        %v2939 = vcvt.s32.f32 %v2875
        %v2940 = vcvt.s32.f32 %v2876
        %v2941 = vcvt.s32.f32 %v2877
        %v2942 = vcvt.s32.f32 %v2878
        %v2943 = vcvt.s32.f32 %v2879
        %v2944 = vcvt.s32.f32 %v2880
        %v2945 = vcvt.s32.f32 %v2881
        %v2946 = vcvt.s32.f32 %v2882
        %v2947 = vcvt.s32.f32 %v2883
        %v2948 = vcvt.s32.f32 %v2884
        %v2949 = vcvt.s32.f32 %v2885
        %v2950 = vcvt.s32.f32 %v2886
        %v2951 = vcvt.s32.f32 %v2887
        %v2952 = vcvt.s32.f32 %v2888
        %v2953 = vcvt.s32.f32 %v2889
        %v2954 = vcvt.s32.f32 %v2890
        %v2955 = vcvt.s32.f32 %v2891
        %v2956 = vcvt.s32.f32 %v2892
        %v2957 = vcvt.s32.f32 %v2893
        %v2958 = vpack.c.bf16 %v2898, %v2894
        %v2959 = vpack.c.bf16 %v2899, %v2895
        %v2960 = vpack.c.bf16 %v2900, %v2896
        %v2961 = vpack.c.bf16 %v2901, %v2897
        %v2962 = vpack.c.bf16 %v2906, %v2902
        %v2963 = vpack.c.bf16 %v2907, %v2903
        %v2964 = vpack.c.bf16 %v2908, %v2904
        %v2965 = vpack.c.bf16 %v2909, %v2905
        %v2966 = vpack.c.bf16 %v2914, %v2910
        %v2967 = vpack.c.bf16 %v2915, %v2911
        %v2968 = vpack.c.bf16 %v2916, %v2912
        %v2969 = vpack.c.bf16 %v2917, %v2913
        %v2970 = vpack.c.bf16 %v2922, %v2918
        %v2971 = vpack.c.bf16 %v2923, %v2919
        %v2972 = vpack.c.bf16 %v2924, %v2920
        %v2973 = vpack.c.bf16 %v2925, %v2921
        %v2974 = vpack.c.bf16 %v2930, %v2926
        %v2975 = vpack.c.bf16 %v2931, %v2927
        %v2976 = vpack.c.bf16 %v2932, %v2928
        %v2977 = vpack.c.bf16 %v2933, %v2929
        %v2978 = vpack.c.bf16 %v2938, %v2934
        %v2979 = vpack.c.bf16 %v2939, %v2935
        %v2980 = vpack.c.bf16 %v2940, %v2936
        %v2981 = vpack.c.bf16 %v2941, %v2937
        %v2982 = vpack.c.bf16 %v2946, %v2942
        %v2983 = vpack.c.bf16 %v2947, %v2943
        %v2984 = vpack.c.bf16 %v2948, %v2944
        %v2985 = vpack.c.bf16 %v2949, %v2945
        %v2986 = vpack.c.bf16 %v2954, %v2950
        %v2987 = vpack.c.bf16 %v2955, %v2951
        %v2988 = vpack.c.bf16 %v2956, %v2952
        %v2989 = vpack.c.bf16 %v2957, %v2953
        %2990 = vmatprep.subr.bf16.mxu0 0
        %2991 = vmatpush1.bf16.msra.mxu0 %v2478
        %2992 = vmatprep.subr.bf16.mxu0 0
        %2993 = vmatpush1.bf16.msra.mxu0 %v2479
        %2994 = vmatprep.subr.bf16.mxu0 0
        %2995 = vmatpush1.bf16.msra.mxu0 %v2480
        %2996 = vmatprep.subr.bf16.mxu0 0
        %2997 = vmatpush1.bf16.msra.mxu0 %v2481
        %2998 = vmatprep.subr.bf16.mxu0 0
        %2999 = vmatpush1.bf16.msra.mxu0 %v2482
        %3000 = vmatprep.subr.bf16.mxu0 0
        %3001 = vmatpush1.bf16.msra.mxu0 %v2483
        %3002 = vmatprep.subr.bf16.mxu0 0
        %3003 = vmatpush1.bf16.msra.mxu0 %v2484
        %3004 = vmatprep.subr.bf16.mxu0 0
        %3005 = vmatpush1.bf16.msra.mxu0 %v2485
        %3006 = vmatprep.subr.bf16.mxu0 0
        %3007 = vmatpush1.bf16.msra.mxu0 %v2486
        %3008 = vmatprep.subr.bf16.mxu0 0
        %3009 = vmatpush1.bf16.msra.mxu0 %v2487
        %3010 = vmatprep.subr.bf16.mxu0 0
        %3011 = vmatpush1.bf16.msra.mxu0 %v2488
        %3012 = vmatprep.subr.bf16.mxu0 0
        %3013 = vmatpush1.bf16.msra.mxu0 %v2489
        %3014 = vmatprep.subr.bf16.mxu0 0
        %3015 = vmatpush1.bf16.msra.mxu0 %v2490
        %3016 = vmatprep.subr.bf16.mxu0 0
        %3017 = vmatpush1.bf16.msra.mxu0 %v2491
        %3018 = vmatprep.subr.bf16.mxu0 0
        %3019 = vmatpush1.bf16.msra.mxu0 %v2492
        %3020 = vmatprep.subr.bf16.mxu0 0
        %3021 = vmatpush1.bf16.msra.mxu0 %v2493
        %3022 = vmatprep.mubr.bf16.mxu0 %v2719
        %3023 = vmatmul.mubr.bf16.gmra.mrb[0].mxu0 %v2718
        %v3024 = vpop.f32.mrb[0].mxu0
        %v3025 = vadd.f32 0.0, %v3024
        %v3026 = vpop.f32.mrb[0].mxu0
        %v3027 = vpop.f32.mrb[0].mxu0
        %v3028 = vadd.f32 0.0, %v3027
        %v3029 = vpop.f32.mrb[0].mxu0
        %3030 = vmatprep.mubr.bf16.mxu0 %v2723
        %3031 = vmatmul.mubr.bf16.gmra.mrb[0].mxu0 %v2722
        %v3032 = vpop.f32.mrb[0].mxu0
        %v3033 = vadd.f32 0.0, %v3032
        %v3034 = vpop.f32.mrb[0].mxu0
        %v3035 = vpop.f32.mrb[0].mxu0
        %v3036 = vadd.f32 0.0, %v3035
        %v3037 = vpop.f32.mrb[0].mxu0
        %3038 = vmatprep.mubr.bf16.mxu0 %v2727
        %3039 = vmatmul.mubr.bf16.gmra.mrb[0].mxu0 %v2726
        %v3040 = vpop.f32.mrb[0].mxu0
        %v3041 = vadd.f32 0.0, %v3040
        %v3042 = vpop.f32.mrb[0].mxu0
        %v3043 = vpop.f32.mrb[0].mxu0
        %v3044 = vadd.f32 0.0, %v3043
        %v3045 = vpop.f32.mrb[0].mxu0
        %3046 = vmatprep.mubr.bf16.mxu0 %v2731
        %3047 = vmatmul.mubr.bf16.gmra.mrb[0].mxu0 %v2730
        %v3048 = vpop.f32.mrb[0].mxu0
        %v3049 = vadd.f32 0.0, %v3048
        %v3050 = vpop.f32.mrb[0].mxu0
        %v3051 = vpop.f32.mrb[0].mxu0
        %v3052 = vadd.f32 0.0, %v3051
        %v3053 = vpop.f32.mrb[0].mxu0
        %3054 = vmatprep.mubr.bf16.mxu0 %v2735
        %3055 = vmatmul.mubr.bf16.gmra.mrb[0].mxu0 %v2734
        %v3056 = vpop.f32.mrb[0].mxu0
        %v3057 = vadd.f32 0.0, %v3056
        %v3058 = vpop.f32.mrb[0].mxu0
        %v3059 = vpop.f32.mrb[0].mxu0
        %v3060 = vadd.f32 0.0, %v3059
        %v3061 = vpop.f32.mrb[0].mxu0
        %3062 = vmatprep.mubr.bf16.mxu0 %v2739
        %3063 = vmatmul.mubr.bf16.gmra.mrb[0].mxu0 %v2738
        %v3064 = vpop.f32.mrb[0].mxu0
        %v3065 = vadd.f32 0.0, %v3064
        %v3066 = vpop.f32.mrb[0].mxu0
        %v3067 = vpop.f32.mrb[0].mxu0
        %v3068 = vadd.f32 0.0, %v3067
        %v3069 = vpop.f32.mrb[0].mxu0
        %3070 = vmatprep.mubr.bf16.mxu0 %v2743
        %3071 = vmatmul.mubr.bf16.gmra.mrb[0].mxu0 %v2742
        %v3072 = vpop.f32.mrb[0].mxu0
        %v3073 = vadd.f32 0.0, %v3072
        %v3074 = vpop.f32.mrb[0].mxu0
        %v3075 = vpop.f32.mrb[0].mxu0
        %v3076 = vadd.f32 0.0, %v3075
        %v3077 = vpop.f32.mrb[0].mxu0
        %3078 = vmatprep.mubr.bf16.mxu0 %v2747
        %3079 = vmatmul.mubr.bf16.gmra.mrb[0].mxu0 %v2746
        %v3080 = vpop.f32.mrb[0].mxu0
        %v3081 = vadd.f32 0.0, %v3080
        %v3082 = vpop.f32.mrb[0].mxu0
        %v3083 = vpop.f32.mrb[0].mxu0
        %v3084 = vadd.f32 0.0, %v3083
        %v3085 = vpop.f32.mrb[0].mxu0
        %3086 = vdwg.mxu0
        %3087 = vmatprep.subr.bf16.mxu0 0
        %3088 = vmatpush1.bf16.msra.mxu0 %v2494
        %3089 = vmatprep.subr.bf16.mxu0 0
        %3090 = vmatpush1.bf16.msra.mxu0 %v2495
        %3091 = vmatprep.subr.bf16.mxu0 0
        %3092 = vmatpush1.bf16.msra.mxu0 %v2496
        %3093 = vmatprep.subr.bf16.mxu0 0
        %3094 = vmatpush1.bf16.msra.mxu0 %v2497
        %3095 = vmatprep.subr.bf16.mxu0 0
        %3096 = vmatpush1.bf16.msra.mxu0 %v2498
        %3097 = vmatprep.subr.bf16.mxu0 0
        %3098 = vmatpush1.bf16.msra.mxu0 %v2499
        %3099 = vmatprep.subr.bf16.mxu0 0
        %3100 = vmatpush1.bf16.msra.mxu0 %v2500
        %3101 = vmatprep.subr.bf16.mxu0 0
        %3102 = vmatpush1.bf16.msra.mxu0 %v2501
        %3103 = vmatprep.subr.bf16.mxu0 0
        %3104 = vmatpush1.bf16.msra.mxu0 %v2502
        %3105 = vmatprep.subr.bf16.mxu0 0
        %3106 = vmatpush1.bf16.msra.mxu0 %v2503
        %3107 = vmatprep.subr.bf16.mxu0 0
        %3108 = vmatpush1.bf16.msra.mxu0 %v2504
        %3109 = vmatprep.subr.bf16.mxu0 0
        %3110 = vmatpush1.bf16.msra.mxu0 %v2505
        %3111 = vmatprep.subr.bf16.mxu0 0
        %3112 = vmatpush1.bf16.msra.mxu0 %v2506
        %3113 = vmatprep.subr.bf16.mxu0 0
        %3114 = vmatpush1.bf16.msra.mxu0 %v2507
        %3115 = vmatprep.subr.bf16.mxu0 0
        %3116 = vmatpush1.bf16.msra.mxu0 %v2508
        %3117 = vmatprep.subr.bf16.mxu0 0
        %3118 = vmatpush1.bf16.msra.mxu0 %v2509
        %3119 = vmatprep.mubr.bf16.mxu0 %v2721
        %3120 = vmatmul.mubr.bf16.gmra.mrb[0].mxu0 %v2720
        %v3121 = vpop.f32.mrb[0].mxu0
        %v3122 = vadd.f32 %v3025, %v3121
        %v3123 = vpop.f32.mrb[0].mxu0
        %v3124 = vpop.f32.mrb[0].mxu0
        %v3125 = vadd.f32 %v3028, %v3124
        %v3126 = vpop.f32.mrb[0].mxu0
        %3127 = vmatprep.mubr.bf16.mxu0 %v2725
        %3128 = vmatmul.mubr.bf16.gmra.mrb[0].mxu0 %v2724
        %v3129 = vpop.f32.mrb[0].mxu0
        %v3130 = vadd.f32 %v3033, %v3129
        %v3131 = vpop.f32.mrb[0].mxu0
        %v3132 = vpop.f32.mrb[0].mxu0
        %v3133 = vadd.f32 %v3036, %v3132
        %v3134 = vpop.f32.mrb[0].mxu0
        %3135 = vmatprep.mubr.bf16.mxu0 %v2729
        %3136 = vmatmul.mubr.bf16.gmra.mrb[0].mxu0 %v2728
        %v3137 = vpop.f32.mrb[0].mxu0
        %v3138 = vadd.f32 %v3041, %v3137
        %v3139 = vpop.f32.mrb[0].mxu0
        %v3140 = vpop.f32.mrb[0].mxu0
        %v3141 = vadd.f32 %v3044, %v3140
        %v3142 = vpop.f32.mrb[0].mxu0
        %3143 = vmatprep.mubr.bf16.mxu0 %v2733
        %3144 = vmatmul.mubr.bf16.gmra.mrb[0].mxu0 %v2732
        %v3145 = vpop.f32.mrb[0].mxu0
        %v3146 = vadd.f32 %v3049, %v3145
        %v3147 = vpop.f32.mrb[0].mxu0
        %v3148 = vpop.f32.mrb[0].mxu0
        %v3149 = vadd.f32 %v3052, %v3148
        %v3150 = vpop.f32.mrb[0].mxu0
        %3151 = vmatprep.mubr.bf16.mxu0 %v2737
        %3152 = vmatmul.mubr.bf16.gmra.mrb[0].mxu0 %v2736
        %v3153 = vpop.f32.mrb[0].mxu0
        %v3154 = vadd.f32 %v3057, %v3153
        %v3155 = vpop.f32.mrb[0].mxu0
        %v3156 = vpop.f32.mrb[0].mxu0
        %v3157 = vadd.f32 %v3060, %v3156
        %v3158 = vpop.f32.mrb[0].mxu0
        %3159 = vmatprep.mubr.bf16.mxu0 %v2741
        %3160 = vmatmul.mubr.bf16.gmra.mrb[0].mxu0 %v2740
        %v3161 = vpop.f32.mrb[0].mxu0
        %v3162 = vadd.f32 %v3065, %v3161
        %v3163 = vpop.f32.mrb[0].mxu0
        %v3164 = vpop.f32.mrb[0].mxu0
        %v3165 = vadd.f32 %v3068, %v3164
        %v3166 = vpop.f32.mrb[0].mxu0
        %3167 = vmatprep.mubr.bf16.mxu0 %v2745
        %3168 = vmatmul.mubr.bf16.gmra.mrb[0].mxu0 %v2744
        %v3169 = vpop.f32.mrb[0].mxu0
        %v3170 = vadd.f32 %v3073, %v3169
        %v3171 = vpop.f32.mrb[0].mxu0
        %v3172 = vpop.f32.mrb[0].mxu0
        %v3173 = vadd.f32 %v3076, %v3172
        %v3174 = vpop.f32.mrb[0].mxu0
        %3175 = vmatprep.mubr.bf16.mxu0 %v2749
        %3176 = vmatmul.mubr.bf16.gmra.mrb[0].mxu0 %v2748
        %v3177 = vpop.f32.mrb[0].mxu0
        %v3178 = vadd.f32 %v3081, %v3177
        %v3179 = vpop.f32.mrb[0].mxu0
        %v3180 = vpop.f32.mrb[0].mxu0
        %v3181 = vadd.f32 %v3084, %v3180
        %v3182 = vpop.f32.mrb[0].mxu0
        %3183 = vdwg.mxu0
        %3216 = vrot.lane.b32.xlu0 %v2478, 96
        %v3217 = vpop.permute.xlu0 %3216
        %3218 = vrot.lane.b32.xlu0 %v2479, 96
        %v3219 = vpop.permute.xlu0 %3218
        %3220 = vrot.lane.b32.xlu0 %v2480, 96
        %v3221 = vpop.permute.xlu0 %3220
        %3222 = vrot.lane.b32.xlu0 %v2481, 96
        %v3223 = vpop.permute.xlu0 %3222
        %3224 = vrot.lane.b32.xlu0 %v2482, 96
        %v3225 = vpop.permute.xlu0 %3224
        %3226 = vrot.lane.b32.xlu0 %v2483, 96
        %v3227 = vpop.permute.xlu0 %3226
        %3228 = vrot.lane.b32.xlu0 %v2484, 96
        %v3229 = vpop.permute.xlu0 %3228
        %3230 = vrot.lane.b32.xlu0 %v2485, 96
        %v3231 = vpop.permute.xlu0 %3230
        %3232 = vrot.lane.b32.xlu0 %v2486, 96
        %v3233 = vpop.permute.xlu0 %3232
        %3234 = vrot.lane.b32.xlu0 %v2487, 96
        %v3235 = vpop.permute.xlu0 %3234
        %3236 = vrot.lane.b32.xlu0 %v2488, 96
        %v3237 = vpop.permute.xlu0 %3236
        %3238 = vrot.lane.b32.xlu0 %v2489, 96
        %v3239 = vpop.permute.xlu0 %3238
        %3240 = vrot.lane.b32.xlu0 %v2490, 96
        %v3241 = vpop.permute.xlu0 %3240
        %3242 = vrot.lane.b32.xlu0 %v2491, 96
        %v3243 = vpop.permute.xlu0 %3242
        %3244 = vrot.lane.b32.xlu0 %v2492, 96
        %v3245 = vpop.permute.xlu0 %3244
        %3246 = vrot.lane.b32.xlu0 %v2493, 96
        %v3247 = vpop.permute.xlu0 %3246
        %3248 = vrot.lane.b32.xlu0 %v2494, 96
        %v3249 = vpop.permute.xlu0 %3248
        %3250 = vrot.lane.b32.xlu0 %v2495, 96
        %v3251 = vpop.permute.xlu0 %3250
        %3252 = vrot.lane.b32.xlu0 %v2496, 96
        %v3253 = vpop.permute.xlu0 %3252
        %3254 = vrot.lane.b32.xlu0 %v2497, 96
        %v3255 = vpop.permute.xlu0 %3254
        %3256 = vrot.lane.b32.xlu0 %v2498, 96
        %v3257 = vpop.permute.xlu0 %3256
        %3258 = vrot.lane.b32.xlu0 %v2499, 96
        %v3259 = vpop.permute.xlu0 %3258
        %3260 = vrot.lane.b32.xlu0 %v2500, 96
        %v3261 = vpop.permute.xlu0 %3260
        %3262 = vrot.lane.b32.xlu0 %v2501, 96
        %v3263 = vpop.permute.xlu0 %3262
        %3264 = vrot.lane.b32.xlu0 %v2502, 96
        %v3265 = vpop.permute.xlu0 %3264
        %3266 = vrot.lane.b32.xlu0 %v2503, 96
        %v3267 = vpop.permute.xlu0 %3266
        %3268 = vrot.lane.b32.xlu0 %v2504, 96
        %v3269 = vpop.permute.xlu0 %3268
        %3270 = vrot.lane.b32.xlu0 %v2505, 96
        %v3271 = vpop.permute.xlu0 %3270
        %3272 = vrot.lane.b32.xlu0 %v2506, 96
        %v3273 = vpop.permute.xlu0 %3272
        %3274 = vrot.lane.b32.xlu0 %v2507, 96
        %v3275 = vpop.permute.xlu0 %3274
        %3276 = vrot.lane.b32.xlu0 %v2508, 96
        %v3277 = vpop.permute.xlu0 %3276
        %3278 = vrot.lane.b32.xlu0 %v2509, 96
        %v3279 = vpop.permute.xlu0 %3278
        %3312 = vmatprep.subr.bf16.mxu0 0
        %3313 = vmatpush1.bf16.msra.mxu0 %v3217
        %3314 = vmatprep.subr.bf16.mxu0 0
        %3315 = vmatpush1.bf16.msra.mxu0 %v3219
        %3316 = vmatprep.subr.bf16.mxu0 0
        %3317 = vmatpush1.bf16.msra.mxu0 %v3221
        %3318 = vmatprep.subr.bf16.mxu0 0
        %3319 = vmatpush1.bf16.msra.mxu0 %v3223
        %3320 = vmatprep.subr.bf16.mxu0 0
        %3321 = vmatpush1.bf16.msra.mxu0 %v3225
        %3322 = vmatprep.subr.bf16.mxu0 0
        %3323 = vmatpush1.bf16.msra.mxu0 %v3227
        %3324 = vmatprep.subr.bf16.mxu0 0
        %3325 = vmatpush1.bf16.msra.mxu0 %v3229
        %3326 = vmatprep.subr.bf16.mxu0 0
        %3327 = vmatpush1.bf16.msra.mxu0 %v3231
        %3328 = vmatprep.subr.bf16.mxu0 0
        %3329 = vmatpush1.bf16.msra.mxu0 %v3233
        %3330 = vmatprep.subr.bf16.mxu0 0
        %3331 = vmatpush1.bf16.msra.mxu0 %v3235
        %3332 = vmatprep.subr.bf16.mxu0 0
        %3333 = vmatpush1.bf16.msra.mxu0 %v3237
        %3334 = vmatprep.subr.bf16.mxu0 0
        %3335 = vmatpush1.bf16.msra.mxu0 %v3239
        %3336 = vmatprep.subr.bf16.mxu0 0
        %3337 = vmatpush1.bf16.msra.mxu0 %v3241
        %3338 = vmatprep.subr.bf16.mxu0 0
        %3339 = vmatpush1.bf16.msra.mxu0 %v3243
        %3340 = vmatprep.subr.bf16.mxu0 0
        %3341 = vmatpush1.bf16.msra.mxu0 %v3245
        %3342 = vmatprep.subr.bf16.mxu0 0
        %3343 = vmatpush1.bf16.msra.mxu0 %v3247
        %3344 = vmatprep.mubr.bf16.mxu0 %v2959
        %3345 = vmatmul.mubr.bf16.gmra.mrb[0].mxu0 %v2958
        %v3346 = vpop.f32.mrb[0].mxu0
        %v3347 = vadd.f32 0.0, %v3346
        %v3348 = vpop.f32.mrb[0].mxu0
        %v3349 = vpop.f32.mrb[0].mxu0
        %v3350 = vadd.f32 0.0, %v3349
        %v3351 = vpop.f32.mrb[0].mxu0
        %3352 = vmatprep.mubr.bf16.mxu0 %v2963
        %3353 = vmatmul.mubr.bf16.gmra.mrb[0].mxu0 %v2962
        %v3354 = vpop.f32.mrb[0].mxu0
        %v3355 = vadd.f32 0.0, %v3354
        %v3356 = vpop.f32.mrb[0].mxu0
        %v3357 = vpop.f32.mrb[0].mxu0
        %v3358 = vadd.f32 0.0, %v3357
        %v3359 = vpop.f32.mrb[0].mxu0
        %3360 = vmatprep.mubr.bf16.mxu0 %v2967
        %3361 = vmatmul.mubr.bf16.gmra.mrb[0].mxu0 %v2966
        %v3362 = vpop.f32.mrb[0].mxu0
        %v3363 = vadd.f32 0.0, %v3362
        %v3364 = vpop.f32.mrb[0].mxu0
        %v3365 = vpop.f32.mrb[0].mxu0
        %v3366 = vadd.f32 0.0, %v3365
        %v3367 = vpop.f32.mrb[0].mxu0
        %3368 = vmatprep.mubr.bf16.mxu0 %v2971
        %3369 = vmatmul.mubr.bf16.gmra.mrb[0].mxu0 %v2970
        %v3370 = vpop.f32.mrb[0].mxu0
        %v3371 = vadd.f32 0.0, %v3370
        %v3372 = vpop.f32.mrb[0].mxu0
        %v3373 = vpop.f32.mrb[0].mxu0
        %v3374 = vadd.f32 0.0, %v3373
        %v3375 = vpop.f32.mrb[0].mxu0
        %3376 = vmatprep.mubr.bf16.mxu0 %v2975
        %3377 = vmatmul.mubr.bf16.gmra.mrb[0].mxu0 %v2974
        %v3378 = vpop.f32.mrb[0].mxu0
        %v3379 = vadd.f32 0.0, %v3378
        %v3380 = vpop.f32.mrb[0].mxu0
        %v3381 = vpop.f32.mrb[0].mxu0
        %v3382 = vadd.f32 0.0, %v3381
        %v3383 = vpop.f32.mrb[0].mxu0
        %3384 = vmatprep.mubr.bf16.mxu0 %v2979
        %3385 = vmatmul.mubr.bf16.gmra.mrb[0].mxu0 %v2978
        %v3386 = vpop.f32.mrb[0].mxu0
        %v3387 = vadd.f32 0.0, %v3386
        %v3388 = vpop.f32.mrb[0].mxu0
        %v3389 = vpop.f32.mrb[0].mxu0
        %v3390 = vadd.f32 0.0, %v3389
        %v3391 = vpop.f32.mrb[0].mxu0
        %3392 = vmatprep.mubr.bf16.mxu0 %v2983
        %3393 = vmatmul.mubr.bf16.gmra.mrb[0].mxu0 %v2982
        %v3394 = vpop.f32.mrb[0].mxu0
        %v3395 = vadd.f32 0.0, %v3394
        %v3396 = vpop.f32.mrb[0].mxu0
        %v3397 = vpop.f32.mrb[0].mxu0
        %v3398 = vadd.f32 0.0, %v3397
        %v3399 = vpop.f32.mrb[0].mxu0
        %3400 = vmatprep.mubr.bf16.mxu0 %v2987
        %3401 = vmatmul.mubr.bf16.gmra.mrb[0].mxu0 %v2986
        %v3402 = vpop.f32.mrb[0].mxu0
        %v3403 = vadd.f32 0.0, %v3402
        %v3404 = vpop.f32.mrb[0].mxu0
        %v3405 = vpop.f32.mrb[0].mxu0
        %v3406 = vadd.f32 0.0, %v3405
        %v3407 = vpop.f32.mrb[0].mxu0
        %3408 = vdwg.mxu0
        %3409 = vmatprep.subr.bf16.mxu0 0
        %3410 = vmatpush1.bf16.msra.mxu0 %v3249
        %3411 = vmatprep.subr.bf16.mxu0 0
        %3412 = vmatpush1.bf16.msra.mxu0 %v3251
        %3413 = vmatprep.subr.bf16.mxu0 0
        %3414 = vmatpush1.bf16.msra.mxu0 %v3253
        %3415 = vmatprep.subr.bf16.mxu0 0
        %3416 = vmatpush1.bf16.msra.mxu0 %v3255
        %3417 = vmatprep.subr.bf16.mxu0 0
        %3418 = vmatpush1.bf16.msra.mxu0 %v3257
        %3419 = vmatprep.subr.bf16.mxu0 0
        %3420 = vmatpush1.bf16.msra.mxu0 %v3259
        %3421 = vmatprep.subr.bf16.mxu0 0
        %3422 = vmatpush1.bf16.msra.mxu0 %v3261
        %3423 = vmatprep.subr.bf16.mxu0 0
        %3424 = vmatpush1.bf16.msra.mxu0 %v3263
        %3425 = vmatprep.subr.bf16.mxu0 0
        %3426 = vmatpush1.bf16.msra.mxu0 %v3265
        %3427 = vmatprep.subr.bf16.mxu0 0
        %3428 = vmatpush1.bf16.msra.mxu0 %v3267
        %3429 = vmatprep.subr.bf16.mxu0 0
        %3430 = vmatpush1.bf16.msra.mxu0 %v3269
        %3431 = vmatprep.subr.bf16.mxu0 0
        %3432 = vmatpush1.bf16.msra.mxu0 %v3271
        %3433 = vmatprep.subr.bf16.mxu0 0
        %3434 = vmatpush1.bf16.msra.mxu0 %v3273
        %3435 = vmatprep.subr.bf16.mxu0 0
        %3436 = vmatpush1.bf16.msra.mxu0 %v3275
        %3437 = vmatprep.subr.bf16.mxu0 0
        %3438 = vmatpush1.bf16.msra.mxu0 %v3277
        %3439 = vmatprep.subr.bf16.mxu0 0
        %3440 = vmatpush1.bf16.msra.mxu0 %v3279
        %3441 = vmatprep.mubr.bf16.mxu0 %v2961
        %3442 = vmatmul.mubr.bf16.gmra.mrb[0].mxu0 %v2960
        %v3443 = vpop.f32.mrb[0].mxu0
        %v3444 = vadd.f32 %v3347, %v3443
        %v3445 = vpop.f32.mrb[0].mxu0
        %v3446 = vpop.f32.mrb[0].mxu0
        %v3447 = vadd.f32 %v3350, %v3446
        %v3448 = vpop.f32.mrb[0].mxu0
        %3449 = vmatprep.mubr.bf16.mxu0 %v2965
        %3450 = vmatmul.mubr.bf16.gmra.mrb[0].mxu0 %v2964
        %v3451 = vpop.f32.mrb[0].mxu0
        %v3452 = vadd.f32 %v3355, %v3451
        %v3453 = vpop.f32.mrb[0].mxu0
        %v3454 = vpop.f32.mrb[0].mxu0
        %v3455 = vadd.f32 %v3358, %v3454
        %v3456 = vpop.f32.mrb[0].mxu0
        %3457 = vmatprep.mubr.bf16.mxu0 %v2969
        %3458 = vmatmul.mubr.bf16.gmra.mrb[0].mxu0 %v2968
        %v3459 = vpop.f32.mrb[0].mxu0
        %v3460 = vadd.f32 %v3363, %v3459
        %v3461 = vpop.f32.mrb[0].mxu0
        %v3462 = vpop.f32.mrb[0].mxu0
        %v3463 = vadd.f32 %v3366, %v3462
        %v3464 = vpop.f32.mrb[0].mxu0
        %3465 = vmatprep.mubr.bf16.mxu0 %v2973
        %3466 = vmatmul.mubr.bf16.gmra.mrb[0].mxu0 %v2972
        %v3467 = vpop.f32.mrb[0].mxu0
        %v3468 = vadd.f32 %v3371, %v3467
        %v3469 = vpop.f32.mrb[0].mxu0
        %v3470 = vpop.f32.mrb[0].mxu0
        %v3471 = vadd.f32 %v3374, %v3470
        %v3472 = vpop.f32.mrb[0].mxu0
        %3473 = vmatprep.mubr.bf16.mxu0 %v2977
        %3474 = vmatmul.mubr.bf16.gmra.mrb[0].mxu0 %v2976
        %v3475 = vpop.f32.mrb[0].mxu0
        %v3476 = vadd.f32 %v3379, %v3475
        %v3477 = vpop.f32.mrb[0].mxu0
        %v3478 = vpop.f32.mrb[0].mxu0
        %v3479 = vadd.f32 %v3382, %v3478
        %v3480 = vpop.f32.mrb[0].mxu0
        %3481 = vmatprep.mubr.bf16.mxu0 %v2981
        %3482 = vmatmul.mubr.bf16.gmra.mrb[0].mxu0 %v2980
        %v3483 = vpop.f32.mrb[0].mxu0
        %v3484 = vadd.f32 %v3387, %v3483
        %v3485 = vpop.f32.mrb[0].mxu0
        %v3486 = vpop.f32.mrb[0].mxu0
        %v3487 = vadd.f32 %v3390, %v3486
        %v3488 = vpop.f32.mrb[0].mxu0
        %3489 = vmatprep.mubr.bf16.mxu0 %v2985
        %3490 = vmatmul.mubr.bf16.gmra.mrb[0].mxu0 %v2984
        %v3491 = vpop.f32.mrb[0].mxu0
        %v3492 = vadd.f32 %v3395, %v3491
        %v3493 = vpop.f32.mrb[0].mxu0
        %v3494 = vpop.f32.mrb[0].mxu0
        %v3495 = vadd.f32 %v3398, %v3494
        %v3496 = vpop.f32.mrb[0].mxu0
        %3497 = vmatprep.mubr.bf16.mxu0 %v2989
        %3498 = vmatmul.mubr.bf16.gmra.mrb[0].mxu0 %v2988
        %v3499 = vpop.f32.mrb[0].mxu0
        %v3500 = vadd.f32 %v3403, %v3499
        %v3501 = vpop.f32.mrb[0].mxu0
        %v3502 = vpop.f32.mrb[0].mxu0
        %v3503 = vadd.f32 %v3406, %v3502
        %v3504 = vpop.f32.mrb[0].mxu0
        %3505 = vdwg.mxu0
        %v3506 = vld [vmem:[#allocation2] sm:$0xff]
        %v3507 = vld [vmem:[#allocation2 + $0x8] sm:$0xff]
        %v3508 = vld [vmem:[#allocation2 + $0x10] sm:$0xff]
        %v3509 = vld [vmem:[#allocation2 + $0x18] sm:$0xff]
        %v3510 = vld [vmem:[#allocation2 + $0x20] sm:$0xff]
        %v3511 = vld [vmem:[#allocation2 + $0x28] sm:$0xff]
        %v3512 = vld [vmem:[#allocation2 + $0x30] sm:$0xff]
        %v3513 = vld [vmem:[#allocation2 + $0x38] sm:$0xff]
        %v3514 = vld [vmem:[#allocation2 + $0x40] sm:$0xff]
        %v3515 = vld [vmem:[#allocation2 + $0x48] sm:$0xff]
        %v3516 = vld [vmem:[#allocation2 + $0x50] sm:$0xff]
        %v3517 = vld [vmem:[#allocation2 + $0x58] sm:$0xff]
        %v3518 = vld [vmem:[#allocation2 + $0x60] sm:$0xff]
        %v3519 = vld [vmem:[#allocation2 + $0x68] sm:$0xff]
        %v3520 = vld [vmem:[#allocation2 + $0x70] sm:$0xff]
        %v3521 = vld [vmem:[#allocation2 + $0x78] sm:$0xff]
        %3538 = vrot.lane.b32.xlu0 %v3444, 32
        %v3539 = vpop.permute.xlu0 %3538
        %3540 = vrot.lane.b32.xlu0 %v3447, 32
        %v3541 = vpop.permute.xlu0 %3540
        %3542 = vrot.lane.b32.xlu0 %v3452, 32
        %v3543 = vpop.permute.xlu0 %3542
        %3544 = vrot.lane.b32.xlu0 %v3455, 32
        %v3545 = vpop.permute.xlu0 %3544
        %3546 = vrot.lane.b32.xlu0 %v3460, 32
        %v3547 = vpop.permute.xlu0 %3546
        %3548 = vrot.lane.b32.xlu0 %v3463, 32
        %v3549 = vpop.permute.xlu0 %3548
        %3550 = vrot.lane.b32.xlu0 %v3468, 32
        %v3551 = vpop.permute.xlu0 %3550
        %3552 = vrot.lane.b32.xlu0 %v3471, 32
        %v3553 = vpop.permute.xlu0 %3552
        %3554 = vrot.lane.b32.xlu0 %v3476, 32
        %v3555 = vpop.permute.xlu0 %3554
        %3556 = vrot.lane.b32.xlu0 %v3479, 32
        %v3557 = vpop.permute.xlu0 %3556
        %3558 = vrot.lane.b32.xlu0 %v3484, 32
        %v3559 = vpop.permute.xlu0 %3558
        %3560 = vrot.lane.b32.xlu0 %v3487, 32
        %v3561 = vpop.permute.xlu0 %3560
        %3562 = vrot.lane.b32.xlu0 %v3492, 32
        %v3563 = vpop.permute.xlu0 %3562
        %3564 = vrot.lane.b32.xlu0 %v3495, 32
        %v3565 = vpop.permute.xlu0 %3564
        %3566 = vrot.lane.b32.xlu0 %v3500, 32
        %v3567 = vpop.permute.xlu0 %3566
        %3568 = vrot.lane.b32.xlu0 %v3503, 32
        %v3569 = vpop.permute.xlu0 %3568
        %vm3586 = vcmask 261120
        %v3587 = vsel %vm3586, %v3122, %v3539
        %v3588 = vsel %vm3586, %v3125, %v3541
        %v3589 = vsel %vm3586, %v3130, %v3543
        %v3590 = vsel %vm3586, %v3133, %v3545
        %v3591 = vsel %vm3586, %v3138, %v3547
        %v3592 = vsel %vm3586, %v3141, %v3549
        %v3593 = vsel %vm3586, %v3146, %v3551
        %v3594 = vsel %vm3586, %v3149, %v3553
        %v3595 = vsel %vm3586, %v3154, %v3555
        %v3596 = vsel %vm3586, %v3157, %v3557
        %v3597 = vsel %vm3586, %v3162, %v3559
        %v3598 = vsel %vm3586, %v3165, %v3561
        %v3599 = vsel %vm3586, %v3170, %v3563
        %v3600 = vsel %vm3586, %v3173, %v3565
        %v3601 = vsel %vm3586, %v3178, %v3567
        %v3602 = vsel %vm3586, %v3181, %v3569
        %v3603 = vadd.f32 %v3506, %v3587
        %v3604 = vadd.f32 %v3507, %v3588
        %v3605 = vadd.f32 %v3508, %v3589
        %v3606 = vadd.f32 %v3509, %v3590
        %v3607 = vadd.f32 %v3510, %v3591
        %v3608 = vadd.f32 %v3511, %v3592
        %v3609 = vadd.f32 %v3512, %v3593
        %v3610 = vadd.f32 %v3513, %v3594
        %v3611 = vadd.f32 %v3514, %v3595
        %v3612 = vadd.f32 %v3515, %v3596
        %v3613 = vadd.f32 %v3516, %v3597
        %v3614 = vadd.f32 %v3517, %v3598
        %v3615 = vadd.f32 %v3518, %v3599
        %v3616 = vadd.f32 %v3519, %v3600
        %v3617 = vadd.f32 %v3520, %v3601
        %v3618 = vadd.f32 %v3521, %v3602
        %vm3619 = vcmask 523264
        %3620 = vst.msk [vmem:[#allocation2] sm:$0xff] %vm3619, %v3603
        %3621 = vst.msk [vmem:[#allocation2 + $0x8] sm:$0xff] %vm3619, %v3604
        %3622 = vst.msk [vmem:[#allocation2 + $0x10] sm:$0xff] %vm3619, %v3605
        %3623 = vst.msk [vmem:[#allocation2 + $0x18] sm:$0xff] %vm3619, %v3606
        %3624 = vst.msk [vmem:[#allocation2 + $0x20] sm:$0xff] %vm3619, %v3607
        %3625 = vst.msk [vmem:[#allocation2 + $0x28] sm:$0xff] %vm3619, %v3608
        %3626 = vst.msk [vmem:[#allocation2 + $0x30] sm:$0xff] %vm3619, %v3609
        %3627 = vst.msk [vmem:[#allocation2 + $0x38] sm:$0xff] %vm3619, %v3610
        %3628 = vst.msk [vmem:[#allocation2 + $0x40] sm:$0xff] %vm3619, %v3611
        %3629 = vst.msk [vmem:[#allocation2 + $0x48] sm:$0xff] %vm3619, %v3612
        %3630 = vst.msk [vmem:[#allocation2 + $0x50] sm:$0xff] %vm3619, %v3613
        %3631 = vst.msk [vmem:[#allocation2 + $0x58] sm:$0xff] %vm3619, %v3614
        %3632 = vst.msk [vmem:[#allocation2 + $0x60] sm:$0xff] %vm3619, %v3615
        %3633 = vst.msk [vmem:[#allocation2 + $0x68] sm:$0xff] %vm3619, %v3616
        %3634 = vst.msk [vmem:[#allocation2 + $0x70] sm:$0xff] %vm3619, %v3617
        %3635 = vst.msk [vmem:[#allocation2 + $0x78] sm:$0xff] %vm3619, %v3618
        %p3636 = scmp.eq.s32.totalorder %s22, 1
        // Predicated region
        $region65: #{tpu_custom_call.1} parent=59 // pred_check
          %p3637 = pneg %p3636
        $region66: #{tpu_custom_call.1} parent=59 // pred_check_branch
          %3639 = sbr.rel (%p3637) target = $region68
        $region67: #{tpu_custom_call.1} parent=59 // pred_region
          %v3640 = vld [vmem:[#allocation2] sm:$0xff]
          %v3641 = vld [vmem:[#allocation2 + $0x8] sm:$0xff]
          %v3642 = vld [vmem:[#allocation2 + $0x10] sm:$0xff]
          %v3643 = vld [vmem:[#allocation2 + $0x18] sm:$0xff]
          %v3644 = vld [vmem:[#allocation2 + $0x20] sm:$0xff]
          %v3645 = vld [vmem:[#allocation2 + $0x28] sm:$0xff]
          %v3646 = vld [vmem:[#allocation2 + $0x30] sm:$0xff]
          %v3647 = vld [vmem:[#allocation2 + $0x38] sm:$0xff]
          %v3648 = vld [vmem:[#allocation2 + $0x40] sm:$0xff]
          %v3649 = vld [vmem:[#allocation2 + $0x48] sm:$0xff]
          %v3650 = vld [vmem:[#allocation2 + $0x50] sm:$0xff]
          %v3651 = vld [vmem:[#allocation2 + $0x58] sm:$0xff]
          %v3652 = vld [vmem:[#allocation2 + $0x60] sm:$0xff]
          %v3653 = vld [vmem:[#allocation2 + $0x68] sm:$0xff]
          %v3654 = vld [vmem:[#allocation2 + $0x70] sm:$0xff]
          %v3655 = vld [vmem:[#allocation2 + $0x78] sm:$0xff]
          %v3656 = vld [vmem:[%s8] sm:$0xff]
          %v3657 = vld [vmem:[%s8 + $0x8] sm:$0xff]
          %v3658 = vld [vmem:[%s8 + $0x10] sm:$0xff]
          %v3659 = vld [vmem:[%s8 + $0x18] sm:$0xff]
          %v3660 = vld [vmem:[%s8 + $0x20] sm:$0xff]
          %v3661 = vld [vmem:[%s8 + $0x28] sm:$0xff]
          %v3662 = vld [vmem:[%s8 + $0x30] sm:$0xff]
          %v3663 = vld [vmem:[%s8 + $0x38] sm:$0xff]
          %v3664 = vld [vmem:[%s9] sm:$0x1]
          %v3666 = vlaneseq
          %v3667 = vshrl.u32 %v3666, 7
          %v3668 = vsub.s32 0, %v3667
          %v3669 = vrot.slane %v3664, %v3668
          %v3672 = vsel %vm3619, %v3640, 0
          %v3675 = vsel %vm3619, %v3641, 0
          %v3678 = vsel %vm3619, %v3642, 0
          %v3681 = vsel %vm3619, %v3643, 0
          %v3684 = vsel %vm3619, %v3644, 0
          %v3687 = vsel %vm3619, %v3645, 0
          %v3690 = vsel %vm3619, %v3646, 0
          %v3693 = vsel %vm3619, %v3647, 0
          %v3696 = vsel %vm3619, %v3648, 0
          %v3699 = vsel %vm3619, %v3649, 0
          %v3702 = vsel %vm3619, %v3650, 0
          %v3705 = vsel %vm3619, %v3651, 0
          %v3708 = vsel %vm3619, %v3652, 0
          %v3711 = vsel %vm3619, %v3653, 0
          %v3714 = vsel %vm3619, %v3654, 0
          %v3717 = vsel %vm3619, %v3655, 0
          %3719 = vmatprep.subr.mxu0 0.0
          %3720 = vmatpush1.msra.mxu0 %v3656
          %3721 = vmatprep.subr.mxu0 0.0
          %3722 = vmatpush1.msra.mxu0 %v3657
          %3723 = vmatprep.subr.mxu0 0.0
          %3724 = vmatpush1.msra.mxu0 %v3658
          %3725 = vmatprep.subr.mxu0 0.0
          %3726 = vmatpush1.msra.mxu0 %v3659
          %3727 = vmatprep.subr.mxu0 0.0
          %3728 = vmatpush1.msra.mxu0 %v3660
          %3729 = vmatprep.subr.mxu0 0.0
          %3730 = vmatpush1.msra.mxu0 %v3661
          %3731 = vmatprep.subr.mxu0 0.0
          %3732 = vmatpush1.msra.mxu0 %v3662
          %3733 = vmatprep.subr.mxu0 0.0
          %3734 = vmatpush1.msra.mxu0 %v3663
          %3735 = vmatprep.subr.mxu0 0.0
          %3736 = vmatpush1.msra.mxu0 0.0
          %3737 = vmatprep.subr.mxu0 0.0
          %3738 = vmatpush1.msra.mxu0 0.0
          %3739 = vmatprep.subr.mxu0 0.0
          %3740 = vmatpush1.msra.mxu0 0.0
          %3741 = vmatprep.subr.mxu0 0.0
          %3742 = vmatpush1.msra.mxu0 0.0
          %3743 = vmatprep.subr.mxu0 0.0
          %3744 = vmatpush1.msra.mxu0 0.0
          %3745 = vmatprep.subr.mxu0 0.0
          %3746 = vmatpush1.msra.mxu0 0.0
          %3747 = vmatprep.subr.mxu0 0.0
          %3748 = vmatpush1.msra.mxu0 0.0
          %3749 = vmatprep.subr.mxu0 0.0
          %3750 = vmatpush1.msra.mxu0 0.0
          %3751 = vmatprep.subr.mxu0 0.0
          %3752 = vmatpush1.msra.mxu0 0.0
          %3753 = vmatprep.subr.mxu0 0.0
          %3754 = vmatpush1.msra.mxu0 0.0
          %3755 = vmatprep.subr.mxu0 0.0
          %3756 = vmatpush1.msra.mxu0 0.0
          %3757 = vmatprep.subr.mxu0 0.0
          %3758 = vmatpush1.msra.mxu0 0.0
          %3759 = vmatprep.subr.mxu0 0.0
          %3760 = vmatpush1.msra.mxu0 0.0
          %3761 = vmatprep.subr.mxu0 0.0
          %3762 = vmatpush1.msra.mxu0 0.0
          %3763 = vmatprep.subr.mxu0 0.0
          %3764 = vmatpush1.msra.mxu0 0.0
          %3765 = vmatprep.subr.mxu0 0.0
          %3766 = vmatpush1.msra.mxu0 0.0
          %3767 = vmatprep.subr.mxu0 0.0
          %3768 = vmatpush1.msra.mxu0 0.0
          %3769 = vmatprep.subr.mxu0 0.0
          %3770 = vmatpush1.msra.mxu0 0.0
          %3771 = vmatprep.subr.mxu0 0.0
          %3772 = vmatpush1.msra.mxu0 0.0
          %3773 = vmatprep.subr.mxu0 0.0
          %3774 = vmatpush1.msra.mxu0 0.0
          %3775 = vmatprep.subr.mxu0 0.0
          %3776 = vmatpush1.msra.mxu0 0.0
          %3777 = vmatprep.subr.mxu0 0.0
          %3778 = vmatpush1.msra.mxu0 0.0
          %3779 = vmatprep.subr.mxu0 0.0
          %3780 = vmatpush1.msra.mxu0 0.0
          %3781 = vmatprep.subr.mxu0 0.0
          %3782 = vmatpush1.msra.mxu0 0.0
          %3783 = vmatprep.mubr.f32.mxu0 0.0
          %3784 = vmatmul.mubr.f32.gmra.mrb[0].mxu0 %v3672
          %v3785 = vpop.f32.mrb[0].mxu0
          %v3786 = vadd.f32 %v3669, %v3785
          %v3787 = vpop.f32.mrb[0].mxu0
          %3788 = vmatprep.mubr.f32.mxu0 0.0
          %3789 = vmatmul.mubr.f32.gmra.mrb[0].mxu0 %v3675
          %v3790 = vpop.f32.mrb[0].mxu0
          %v3791 = vadd.f32 %v3669, %v3790
          %v3792 = vpop.f32.mrb[0].mxu0
          %3793 = vmatprep.mubr.f32.mxu0 0.0
          %3794 = vmatmul.mubr.f32.gmra.mrb[0].mxu0 %v3678
          %v3795 = vpop.f32.mrb[0].mxu0
          %v3796 = vadd.f32 %v3669, %v3795
          %v3797 = vpop.f32.mrb[0].mxu0
          %3798 = vmatprep.mubr.f32.mxu0 0.0
          %3799 = vmatmul.mubr.f32.gmra.mrb[0].mxu0 %v3681
          %v3800 = vpop.f32.mrb[0].mxu0
          %v3801 = vadd.f32 %v3669, %v3800
          %v3802 = vpop.f32.mrb[0].mxu0
          %3803 = vmatprep.mubr.f32.mxu0 0.0
          %3804 = vmatmul.mubr.f32.gmra.mrb[0].mxu0 %v3684
          %v3805 = vpop.f32.mrb[0].mxu0
          %v3806 = vadd.f32 %v3669, %v3805
          %v3807 = vpop.f32.mrb[0].mxu0
          %3808 = vmatprep.mubr.f32.mxu0 0.0
          %3809 = vmatmul.mubr.f32.gmra.mrb[0].mxu0 %v3687
          %v3810 = vpop.f32.mrb[0].mxu0
          %v3811 = vadd.f32 %v3669, %v3810
          %v3812 = vpop.f32.mrb[0].mxu0
          %3813 = vmatprep.mubr.f32.mxu0 0.0
          %3814 = vmatmul.mubr.f32.gmra.mrb[0].mxu0 %v3690
          %v3815 = vpop.f32.mrb[0].mxu0
          %v3816 = vadd.f32 %v3669, %v3815
          %v3817 = vpop.f32.mrb[0].mxu0
          %3818 = vmatprep.mubr.f32.mxu0 0.0
          %3819 = vmatmul.mubr.f32.gmra.mrb[0].mxu0 %v3693
          %v3820 = vpop.f32.mrb[0].mxu0
          %v3821 = vadd.f32 %v3669, %v3820
          %v3822 = vpop.f32.mrb[0].mxu0
          %3823 = vmatprep.mubr.f32.mxu0 0.0
          %3824 = vmatmul.mubr.f32.gmra.mrb[0].mxu0 %v3696
          %v3825 = vpop.f32.mrb[0].mxu0
          %v3826 = vadd.f32 %v3669, %v3825
          %v3827 = vpop.f32.mrb[0].mxu0
          %3828 = vmatprep.mubr.f32.mxu0 0.0
          %3829 = vmatmul.mubr.f32.gmra.mrb[0].mxu0 %v3699
          %v3830 = vpop.f32.mrb[0].mxu0
          %v3831 = vadd.f32 %v3669, %v3830
          %v3832 = vpop.f32.mrb[0].mxu0
          %3833 = vmatprep.mubr.f32.mxu0 0.0
          %3834 = vmatmul.mubr.f32.gmra.mrb[0].mxu0 %v3702
          %v3835 = vpop.f32.mrb[0].mxu0
          %v3836 = vadd.f32 %v3669, %v3835
          %v3837 = vpop.f32.mrb[0].mxu0
          %3838 = vmatprep.mubr.f32.mxu0 0.0
          %3839 = vmatmul.mubr.f32.gmra.mrb[0].mxu0 %v3705
          %v3840 = vpop.f32.mrb[0].mxu0
          %v3841 = vadd.f32 %v3669, %v3840
          %v3842 = vpop.f32.mrb[0].mxu0
          %3843 = vmatprep.mubr.f32.mxu0 0.0
          %3844 = vmatmul.mubr.f32.gmra.mrb[0].mxu0 %v3708
          %v3845 = vpop.f32.mrb[0].mxu0
          %v3846 = vadd.f32 %v3669, %v3845
          %v3847 = vpop.f32.mrb[0].mxu0
          %3848 = vmatprep.mubr.f32.mxu0 0.0
          %3849 = vmatmul.mubr.f32.gmra.mrb[0].mxu0 %v3711
          %v3850 = vpop.f32.mrb[0].mxu0
          %v3851 = vadd.f32 %v3669, %v3850
          %v3852 = vpop.f32.mrb[0].mxu0
          %3853 = vmatprep.mubr.f32.mxu0 0.0
          %3854 = vmatmul.mubr.f32.gmra.mrb[0].mxu0 %v3714
          %v3855 = vpop.f32.mrb[0].mxu0
          %v3856 = vadd.f32 %v3669, %v3855
          %v3857 = vpop.f32.mrb[0].mxu0
          %3858 = vmatprep.mubr.f32.mxu0 0.0
          %3859 = vmatmul.mubr.f32.gmra.mrb[0].mxu0 %v3717
          %v3860 = vpop.f32.mrb[0].mxu0
          %v3861 = vadd.f32 %v3669, %v3860
          %v3862 = vpop.f32.mrb[0].mxu0
          %3863 = vdwg.mxu0
          %v3864 = vmax.f32 %v3786, 0.0
          %v3865 = vmax.f32 %v3791, 0.0
          %v3866 = vmax.f32 %v3796, 0.0
          %v3867 = vmax.f32 %v3801, 0.0
          %v3868 = vmax.f32 %v3806, 0.0
          %v3869 = vmax.f32 %v3811, 0.0
          %v3870 = vmax.f32 %v3816, 0.0
          %v3871 = vmax.f32 %v3821, 0.0
          %v3872 = vmax.f32 %v3826, 0.0
          %v3873 = vmax.f32 %v3831, 0.0
          %v3874 = vmax.f32 %v3836, 0.0
          %v3875 = vmax.f32 %v3841, 0.0
          %v3876 = vmax.f32 %v3846, 0.0
          %v3877 = vmax.f32 %v3851, 0.0
          %v3878 = vmax.f32 %v3856, 0.0
          %v3879 = vmax.f32 %v3861, 0.0
          %3880 = vst [vmem:[#allocation3] sm:$0xff] %v3864
          %3881 = vst [vmem:[#allocation3 + $0x8] sm:$0xff] %v3865
          %3882 = vst [vmem:[#allocation3 + $0x10] sm:$0xff] %v3866
          %3883 = vst [vmem:[#allocation3 + $0x18] sm:$0xff] %v3867
          %3884 = vst [vmem:[#allocation3 + $0x20] sm:$0xff] %v3868
          %3885 = vst [vmem:[#allocation3 + $0x28] sm:$0xff] %v3869
          %3886 = vst [vmem:[#allocation3 + $0x30] sm:$0xff] %v3870
          %3887 = vst [vmem:[#allocation3 + $0x38] sm:$0xff] %v3871
          %3888 = vst [vmem:[#allocation3 + $0x40] sm:$0xff] %v3872
          %3889 = vst [vmem:[#allocation3 + $0x48] sm:$0xff] %v3873
          %3890 = vst [vmem:[#allocation3 + $0x50] sm:$0xff] %v3874
          %3891 = vst [vmem:[#allocation3 + $0x58] sm:$0xff] %v3875
          %3892 = vst [vmem:[#allocation3 + $0x60] sm:$0xff] %v3876
          %3893 = vst [vmem:[#allocation3 + $0x68] sm:$0xff] %v3877
          %3894 = vst [vmem:[#allocation3 + $0x70] sm:$0xff] %v3878
          %3895 = vst [vmem:[#allocation3 + $0x78] sm:$0xff] %v3879
        $region68: #{tpu_custom_call.1} parent=59 // pred_fallthru
          _
        // Predicated region
        $region69: #{tpu_custom_call.1} parent=59 // pred_check
          %p3896 = pneg %p260
        $region70: #{tpu_custom_call.1} parent=59 // pred_check_branch
          %3898 = sbr.rel (%p3896) target = $region72
        $region71: #{tpu_custom_call.1} parent=59 // pred_region
          %s3900 = ssub.s32 2048, 2048
          %3901 = vsyncadd [#allocation4], %s3900
          %s3902 = sshll.u32 [#allocation3], 4
          %s3903 = int_to_ptr.vmem [resolvable:$true] %s3902
          %3908 = dma.vmem_to_hbm [thread:$0]  %s3903, 2048, %s10, [#allocation4], 128, 128, 8
        $region72: #{tpu_custom_call.1} parent=59 // pred_fallthru
          _
        // Predicated region
        $region73: #{tpu_custom_call.1} parent=59 // pred_check
          %p3909 = pneg %p260
        $region74: #{tpu_custom_call.1} parent=59 // pred_check_branch
          %3911 = sbr.rel (%p3909) target = $region76
        $region75: #{tpu_custom_call.1} parent=59 // pred_region
          %3912 = dma.done [#allocation4], 2048
        $region76: #{tpu_custom_call.1} parent=59 // pred_fallthru
          _
      $region60: #{tpu_custom_call.1} parent=5 // pred_fallthru
        _
      %p3913 = scmp.le.s32.totalorder 2, %s17
      // Predicated region
      $region77: #{tpu_custom_call.1} parent=5 // pred_check
        %p3914 = pneg %p3913
      $region78: #{tpu_custom_call.1} parent=5 // pred_check_branch
        %3916 = sbr.rel (%p3914) target = $region80
      $region79: #{tpu_custom_call.1} parent=5 // pred_region
        %s3917 = ssub.s32 %s17, 2
      $region80: #{tpu_custom_call.1} parent=5 // pred_fallthru
        _
    $region6: #{tpu_custom_call.1} parent=1 // loop_footer
      %s21 = sadd.s32 1, %s17
    $region7: #{tpu_custom_call.1} parent=1 // loop_footer_branch
      %16 = sbr.rel target = $region3
    $region8: #{tpu_custom_call.1} parent=1 // loop_exit
      _
    %3918 = vsyncpa [#allocation4], 1
    %s3919 = scalar_lea.sflag [#allocation4], 1
    %3920 = vsyncpa %s3919, 1

</llo_original>
